<compile_context>
chip_gen: v7x
topology: tpu7x:2x2x1
jax: 0.10.0
libtpu: 0.0.40
codegen_flags: <defaults>
</compile_context>

<pallas_src>
import functools

import numpy as np

import jax
import jax.numpy as jnp
from jax.experimental import pallas as pl
from jax.experimental.pallas import tpu as pltpu


# ----------------------------------------------------------------------------
# Fused kernel: one grid step == `Nb` images, everything stays in registers/VMEM.
# Activations are (C, H*W): channels on sublanes, flattened spatial on lanes.
# ----------------------------------------------------------------------------
def _fused_unet_kernel(x_ref, mean_ref, std_ref, rstd_ref,
                       w1_ref, b1_ref, w2_ref, b2_ref, wd_ref, bd_ref,
                       wo_ref, bo_ref, mfull_ref, mdil_ref, mpar_ref,
                       o_ref, *, H, W, Nb):
    HW = H * W

    def shift(v, s):
        """result[..., p] = v[..., p + s] (zero where p + s is out of range)."""
        if s == 0:
            return v
        pad = jnp.zeros(v.shape[:-1] + (abs(s),), v.dtype)
        if s > 0:
            return jnp.concatenate([v[..., s:], pad], axis=-1)
        return jnp.concatenate([pad, v[..., :s]], axis=-1)

    def conv3x3(v, w_ref, b_ref, mask_ref, dilation):
        """relu(3x3 'SAME' conv).  v: (cin, HW); w_ref: (9, cout, cin)."""
        acc = None
        for t in range(9):
            ky, kx = t // 3 - 1, t % 3 - 1
            tap = shift(v, dilation * (ky * W + kx))
            if ky or kx:                           # center-tap mask is all-ones
                tap = tap * mask_ref[t:t + 1, :]
            part = jnp.dot(w_ref[t], tap, preferred_element_type=jnp.float32)
            acc = part if acc is None else acc + part
        return jnp.maximum(acc + b_ref[...], 0.0)

    for b in range(Nb):                 # static unroll; amortizes per-step cost
        x = x_ref[b]                                                  # (Cin, HW)
        xn = (x - mean_ref[...]) * rstd_ref[...]                      # normalize

        # enc1: full-resolution 3x3 conv + relu.
        e1 = conv3x3(xn, w1_ref, b1_ref, mfull_ref, dilation=1)       # (C1, HW)

        # 2x2 maxpool kept at full resolution: the even/even "anchor" lanes hold
        # the pooled values; the other lanes are never consumed downstream.
        p1 = jnp.maximum(jnp.maximum(e1, shift(e1, 1)),
                         jnp.maximum(shift(e1, W), shift(e1, W + 1)))

        # enc2: 3x3 conv at half resolution == x2-dilated conv on the anchors.
        e2 = conv3x3(p1, w2_ref, b2_ref, mdil_ref, dilation=2)        # (C2, HW)

        # nearest 2x upsample: every lane takes the value at its block anchor.
        u1 = (e2 * mpar_ref[0:1, :]
              + shift(e2, -1) * mpar_ref[1:2, :]
              + shift(e2, -W) * mpar_ref[2:3, :]
              + shift(e2, -(W + 1)) * mpar_ref[3:4, :])               # (C2, HW)

        # dec1: 3x3 conv + relu over the [u1 ; e1] skip concat (8-aligned
        # sublane stack, single register concat).
        cat = jnp.concatenate([u1, e1], axis=0)                       # (C2+C1, HW)
        d1 = conv3x3(cat, wd_ref, bd_ref, mfull_ref, dilation=1)      # (C1, HW)

        # final 1x1 conv fused with denormalize (* std + mean) and clamp.
        y = jnp.dot(wo_ref[...], d1, preferred_element_type=jnp.float32)
        y = y + bo_ref[...]
        y = jnp.clip(y * std_ref[...] + mean_ref[...], 0.0, 1.0)
        o_ref[b] = y.astype(o_ref.dtype)                              # (Cout, HW)


# ----------------------------------------------------------------------------
# Trace-time (numpy) constant masks.
# ----------------------------------------------------------------------------
def _make_conv_masks(H, W, dilation):
    # (9, H*W): row t = (ky+1)*3 + (kx+1) is 1 where the tap source pixel
    # (y + dilation*ky, x + dilation*kx) lies inside the image.
    yy = np.arange(H).reshape(H, 1, 1, 1)
    xx = np.arange(W).reshape(1, W, 1, 1)
    ky = np.arange(-1, 2).reshape(1, 1, 3, 1)
    kx = np.arange(-1, 2).reshape(1, 1, 1, 3)
    ok = ((yy + dilation * ky >= 0) & (yy + dilation * ky < H) &
          (xx + dilation * kx >= 0) & (xx + dilation * kx < W))
    ok = ok.transpose(2, 3, 0, 1).reshape(9, H * W)
    return jnp.asarray(ok, dtype=jnp.float32)


def _make_parity_masks(H, W):
    # (4, H*W): rows = (y even,x even), (even,odd), (odd,even), (odd,odd).
    yy = (np.arange(H) % 2).reshape(H, 1)
    xx = (np.arange(W) % 2).reshape(1, W)
    rows = []
    for py in (0, 1):
        for px in (0, 1):
            rows.append(((yy == py) & (xx == px)).reshape(1, H * W))
    return jnp.asarray(np.concatenate(rows, axis=0), dtype=jnp.float32)


def _prep_w(w):
    # (3, 3, cin, cout) HWIO -> (9, cout, cin), tap-major (t = ky*3 + kx).
    kh, kw, cin, cout = w.shape
    return jnp.transpose(w, (0, 1, 3, 2)).reshape(kh * kw, cout, cin)


# ----------------------------------------------------------------------------
# Public wrapper: NCHW in, NCHW out, single pallas_call (reshapes only).
# ----------------------------------------------------------------------------
def normalized_unet_forward(x_nchw, params, *, images_per_step=None):
    N, Cin, H, W = x_nchw.shape
    assert H % 2 == 0 and W % 2 == 0
    HW = H * W
    C1 = params["enc1_w"].shape[-1]
    C2 = params["enc2_w"].shape[-1]
    Cout = params["out_w"].shape[-1]

    if images_per_step is None:
        # Fewer, fatter grid steps amortize the ~600-cycle per-step overhead;
        # keep grid length >= 2 when possible so both v7x TensorCores get work.
        nb = max(1, min(8, N // 2))
        while N % nb:
            nb -= 1
    else:
        nb = int(images_per_step)
        assert N % nb == 0
    grid_n = N // nb

    x = x_nchw.reshape(N, Cin, HW)                    # free reshape, stays NCHW

    mean = params["mean"].reshape(Cin, 1)
    std = params["std"].reshape(Cin, 1)
    rstd = 1.0 / std                                  # multiply, not divide
    w1, b1 = _prep_w(params["enc1_w"]), params["enc1_b"].reshape(C1, 1)
    w2, b2 = _prep_w(params["enc2_w"]), params["enc2_b"].reshape(C2, 1)
    wd, bd = _prep_w(params["dec1_w"]), params["dec1_b"].reshape(C1, 1)
    wo, bo = params["out_w"].T, params["out_b"].reshape(Cout, 1)
    mfull = _make_conv_masks(H, W, 1)                 # (9, HW) full-res conv
    mdil = _make_conv_masks(H, W, 2)                  # (9, HW) dilated (enc2)
    mpar = _make_parity_masks(H, W)                   # (4, HW) upsample select

    kern = functools.partial(_fused_unet_kernel, H=H, W=W, Nb=nb)

    def const_spec(a):
        return pl.BlockSpec(a.shape, lambda n, nd=a.ndim: (0,) * nd)

    out = pl.pallas_call(
        kern,
        out_shape=jax.ShapeDtypeStruct((N, Cout, HW), jnp.float32),
        grid=(grid_n,),
        in_specs=[
            pl.BlockSpec((nb, Cin, HW), lambda n: (n, 0, 0)),          # x
            const_spec(mean), const_spec(std), const_spec(rstd),
            const_spec(w1), const_spec(b1),
            const_spec(w2), const_spec(b2),
            const_spec(wd), const_spec(bd),
            const_spec(wo), const_spec(bo),
            const_spec(mfull), const_spec(mdil), const_spec(mpar),
        ],
        out_specs=pl.BlockSpec((nb, Cout, HW), lambda n: (n, 0, 0)),
        compiler_params=pltpu.CompilerParams(dimension_semantics=("parallel",)),
    )(x, mean, std, rstd, w1, b1, w2, b2, wd, bd, wo, bo, mfull, mdil, mpar)

    return out.reshape(N, Cout, H, W)


# ----------------------------------------------------------------------------
# Pure-JAX reference (same math, XLA ops, NCHW) for validation.
# ----------------------------------------------------------------------------
def _reference_forward(x, params):
    mean, std = params["mean"], params["std"]                      # (1,3,1,1)
    xn = (x - mean) / std

    def conv(a, w, b):
        y = jax.lax.conv_general_dilated(
            a, w, window_strides=(1, 1), padding="SAME",
            dimension_numbers=("NCHW", "HWIO", "NCHW"),
            precision=jax.lax.Precision.HIGHEST)
        return y + b.reshape(1, -1, 1, 1)

    e1 = jax.nn.relu(conv(xn, params["enc1_w"], params["enc1_b"]))
    N, C1, H, W = e1.shape
    p1 = e1.reshape(N, C1, H // 2, 2, W // 2, 2).max(axis=(3, 5))
    e2 = jax.nn.relu(conv(p1, params["enc2_w"], params["enc2_b"]))
    u1 = jnp.repeat(jnp.repeat(e2, 2, axis=2), 2, axis=3)
    cat = jnp.concatenate([u1, e1], axis=1)
    d1 = jax.nn.relu(conv(cat, params["dec1_w"], params["dec1_b"]))
    y = jnp.einsum("nchw,co->nohw", d1, params["out_w"],
                   precision=jax.lax.Precision.HIGHEST)
    y = y + params["out_b"].reshape(1, -1, 1, 1)
    return jnp.clip(y * std + mean, 0.0, 1.0)


def make_params(key, c1=8, c2=16):
    ks = jax.random.split(key, 8)
    scale = 0.1
    return {
        # Buffers exactly as the PyTorch module registers them (1, 3, 1, 1).
        "mean": jnp.full((1, 3, 1, 1), 0.5, jnp.float32),
        "std": jnp.full((1, 3, 1, 1), 0.5, jnp.float32),
        "enc1_w": scale * jax.random.normal(ks[0], (3, 3, 3, c1), jnp.float32),
        "enc1_b": scale * jax.random.normal(ks[1], (c1,), jnp.float32),
        "enc2_w": scale * jax.random.normal(ks[2], (3, 3, c1, c2), jnp.float32),
        "enc2_b": scale * jax.random.normal(ks[3], (c2,), jnp.float32),
        "dec1_w": scale * jax.random.normal(ks[4], (3, 3, c1 + c2, c1), jnp.float32),
        "dec1_b": scale * jax.random.normal(ks[5], (c1,), jnp.float32),
        "out_w": scale * jax.random.normal(ks[6], (c1, 3), jnp.float32),
        "out_b": scale * jax.random.normal(ks[7], (3,), jnp.float32),
    }


if __name__ == "__main__":
    key = jax.random.PRNGKey(0)
    k_x, k_p = jax.random.split(key)

    # NCHW input (PyTorch convention), values in [0, 1] like an image.
    x = jax.random.uniform(k_x, (2, 3, 16, 16), jnp.float32)
    params = make_params(k_p)

    out = jax.block_until_ready(jax.jit(normalized_unet_forward)(x, params))
    ref = jax.block_until_ready(jax.jit(_reference_forward)(x, params))

    assert out.shape == (2, 3, 16, 16), out.shape
    assert bool(jnp.all(jnp.isfinite(out)))
    assert bool(jnp.all((out >= 0.0) & (out <= 1.0)))              # clamp held
    max_err = float(jnp.max(jnp.abs(out - ref)))
    assert max_err < 2e-3, f"mismatch vs reference: max abs err {max_err}"
    print("KERNEL_OK")
</pallas_src>

<mosaic_0001>
module attributes {stable_mosaic.version = 11 : i64} {
  func.func @_fused_unet_kernel(%arg0: i32, %arg1: memref<1x3x256xf32, #tpu.memory_space<vmem>>, %arg2: memref<3x1xf32, #tpu.memory_space<vmem>>, %arg3: memref<3x1xf32, #tpu.memory_space<vmem>>, %arg4: memref<3x1xf32, #tpu.memory_space<vmem>>, %arg5: memref<9x8x3xf32, #tpu.memory_space<vmem>>, %arg6: memref<8x1xf32, #tpu.memory_space<vmem>>, %arg7: memref<9x16x8xf32, #tpu.memory_space<vmem>>, %arg8: memref<16x1xf32, #tpu.memory_space<vmem>>, %arg9: memref<9x8x24xf32, #tpu.memory_space<vmem>>, %arg10: memref<8x1xf32, #tpu.memory_space<vmem>>, %arg11: memref<3x8xf32, #tpu.memory_space<vmem>>, %arg12: memref<3x1xf32, #tpu.memory_space<vmem>>, %arg13: memref<9x256xf32, #tpu.memory_space<vmem>>, %arg14: memref<9x256xf32, #tpu.memory_space<vmem>>, %arg15: memref<4x256xf32, #tpu.memory_space<vmem>>, %arg16: memref<1x3x256xf32, #tpu.memory_space<vmem>>) attributes {dimension_semantics = [#tpu.dimension_semantics<parallel>], iteration_bounds = array<i64: 2>, scalar_prefetch = 0 : i64, scratch_operands = 0 : i64, tpu.core_type = #tpu.core_type<tc>, window_params = [{transform_indices = @transform_0, window_bounds = array<i64: 1, 3, 256>}, {pipeline_mode = #tpu.pipeline_mode<synchronous>, transform_indices = @transform_1, window_bounds = array<i64: 3, 1>}, {pipeline_mode = #tpu.pipeline_mode<synchronous>, transform_indices = @transform_2, window_bounds = array<i64: 3, 1>}, {pipeline_mode = #tpu.pipeline_mode<synchronous>, transform_indices = @transform_3, window_bounds = array<i64: 3, 1>}, {pipeline_mode = #tpu.pipeline_mode<synchronous>, transform_indices = @transform_4, window_bounds = array<i64: 9, 8, 3>}, {pipeline_mode = #tpu.pipeline_mode<synchronous>, transform_indices = @transform_5, window_bounds = array<i64: 8, 1>}, {pipeline_mode = #tpu.pipeline_mode<synchronous>, transform_indices = @transform_6, window_bounds = array<i64: 9, 16, 8>}, {pipeline_mode = #tpu.pipeline_mode<synchronous>, transform_indices = @transform_7, window_bounds = array<i64: 16, 1>}, {pipeline_mode = #tpu.pipeline_mode<synchronous>, transform_indices = @transform_8, window_bounds = array<i64: 9, 8, 24>}, {pipeline_mode = #tpu.pipeline_mode<synchronous>, transform_indices = @transform_9, window_bounds = array<i64: 8, 1>}, {pipeline_mode = #tpu.pipeline_mode<synchronous>, transform_indices = @transform_10, window_bounds = array<i64: 3, 8>}, {pipeline_mode = #tpu.pipeline_mode<synchronous>, transform_indices = @transform_11, window_bounds = array<i64: 3, 1>}, {pipeline_mode = #tpu.pipeline_mode<synchronous>, transform_indices = @transform_12, window_bounds = array<i64: 9, 256>}, {pipeline_mode = #tpu.pipeline_mode<synchronous>, transform_indices = @transform_13, window_bounds = array<i64: 9, 256>}, {pipeline_mode = #tpu.pipeline_mode<synchronous>, transform_indices = @transform_14, window_bounds = array<i64: 4, 256>}, {transform_indices = @transform_15, window_bounds = array<i64: 1, 3, 256>}]} {
    %c0 = arith.constant 0 : index
    %c0_0 = arith.constant 0 : index
    %c0_1 = arith.constant 0 : index
    %0 = vector.load %arg1[%c0, %c0_0, %c0_1] : memref<1x3x256xf32, #tpu.memory_space<vmem>>, vector<1x3x256xf32>
    %1 = vector.shape_cast %0 : vector<1x3x256xf32> to vector<3x256xf32>
    %c0_2 = arith.constant 0 : index
    %c0_3 = arith.constant 0 : index
    %2 = vector.load %arg2[%c0_2, %c0_3] : memref<3x1xf32, #tpu.memory_space<vmem>>, vector<3x1xf32>
    %3 = vector.broadcast %2 : vector<3x1xf32> to vector<3x256xf32>
    %4 = arith.subf %1, %3 : vector<3x256xf32>
    %c0_4 = arith.constant 0 : index
    %c0_5 = arith.constant 0 : index
    %5 = vector.load %arg4[%c0_4, %c0_5] : memref<3x1xf32, #tpu.memory_space<vmem>>, vector<3x1xf32>
    %6 = vector.broadcast %5 : vector<3x1xf32> to vector<3x256xf32>
    %7 = arith.mulf %4, %6 : vector<3x256xf32>
    %cst = arith.constant 0.000000e+00 : f32
    %8 = vector.broadcast %cst : f32 to vector<3x17xf32>
    %9 = vector.extract_strided_slice %7 {offsets = [0, 0], sizes = [3, 239], strides = [1, 1]} : vector<3x256xf32> to vector<3x239xf32>
    %10 = tpu.concatenate %8, %9 in 1 : vector<3x17xf32>, vector<3x239xf32> -> vector<3x256xf32>
    %c0_6 = arith.constant 0 : index
    %c0_7 = arith.constant 0 : index
    %11 = vector.load %arg13[%c0_6, %c0_7] : memref<9x256xf32, #tpu.memory_space<vmem>>, vector<1x256xf32>
    %12 = vector.broadcast %11 : vector<1x256xf32> to vector<3x256xf32>
    %13 = arith.mulf %10, %12 : vector<3x256xf32>
    %c0_8 = arith.constant 0 : index
    %c0_9 = arith.constant 0 : index
    %c0_10 = arith.constant 0 : index
    %14 = vector.load %arg5[%c0_8, %c0_9, %c0_10] : memref<9x8x3xf32, #tpu.memory_space<vmem>>, vector<1x8x3xf32>
    %15 = vector.shape_cast %14 : vector<1x8x3xf32> to vector<8x3xf32>
    %cst_11 = arith.constant dense<0.000000e+00> : vector<8x256xf32>
    %16 = tpu.matmul %15, %13, %cst_11 {dimension_numbers = #tpu.dot_dimension_numbers<[1], [0], [0], [1], [0, 0, 1, 1], [], []>} : vector<8x3xf32>, vector<3x256xf32>, vector<8x256xf32> -> vector<8x256xf32>
    %cst_12 = arith.constant 0.000000e+00 : f32
    %17 = vector.broadcast %cst_12 : f32 to vector<3x16xf32>
    %18 = vector.extract_strided_slice %7 {offsets = [0, 0], sizes = [3, 240], strides = [1, 1]} : vector<3x256xf32> to vector<3x240xf32>
    %19 = tpu.concatenate %17, %18 in 1 : vector<3x16xf32>, vector<3x240xf32> -> vector<3x256xf32>
    %c1 = arith.constant 1 : index
    %c0_13 = arith.constant 0 : index
    %20 = vector.load %arg13[%c1, %c0_13] : memref<9x256xf32, #tpu.memory_space<vmem>>, vector<1x256xf32>
    %21 = vector.broadcast %20 : vector<1x256xf32> to vector<3x256xf32>
    %22 = arith.mulf %19, %21 : vector<3x256xf32>
    %c1_14 = arith.constant 1 : index
    %c0_15 = arith.constant 0 : index
    %c0_16 = arith.constant 0 : index
    %23 = vector.load %arg5[%c1_14, %c0_15, %c0_16] : memref<9x8x3xf32, #tpu.memory_space<vmem>>, vector<1x8x3xf32>
    %24 = vector.shape_cast %23 : vector<1x8x3xf32> to vector<8x3xf32>
    %cst_17 = arith.constant dense<0.000000e+00> : vector<8x256xf32>
    %25 = tpu.matmul %24, %22, %cst_17 {dimension_numbers = #tpu.dot_dimension_numbers<[1], [0], [0], [1], [0, 0, 1, 1], [], []>} : vector<8x3xf32>, vector<3x256xf32>, vector<8x256xf32> -> vector<8x256xf32>
    %26 = arith.addf %16, %25 : vector<8x256xf32>
    %cst_18 = arith.constant 0.000000e+00 : f32
    %27 = vector.broadcast %cst_18 : f32 to vector<3x15xf32>
    %28 = vector.extract_strided_slice %7 {offsets = [0, 0], sizes = [3, 241], strides = [1, 1]} : vector<3x256xf32> to vector<3x241xf32>
    %29 = tpu.concatenate %27, %28 in 1 : vector<3x15xf32>, vector<3x241xf32> -> vector<3x256xf32>
    %c2 = arith.constant 2 : index
    %c0_19 = arith.constant 0 : index
    %30 = vector.load %arg13[%c2, %c0_19] : memref<9x256xf32, #tpu.memory_space<vmem>>, vector<1x256xf32>
    %31 = vector.broadcast %30 : vector<1x256xf32> to vector<3x256xf32>
    %32 = arith.mulf %29, %31 : vector<3x256xf32>
    %c2_20 = arith.constant 2 : index
    %c0_21 = arith.constant 0 : index
    %c0_22 = arith.constant 0 : index
    %33 = vector.load %arg5[%c2_20, %c0_21, %c0_22] : memref<9x8x3xf32, #tpu.memory_space<vmem>>, vector<1x8x3xf32>
    %34 = vector.shape_cast %33 : vector<1x8x3xf32> to vector<8x3xf32>
    %cst_23 = arith.constant dense<0.000000e+00> : vector<8x256xf32>
    %35 = tpu.matmul %34, %32, %cst_23 {dimension_numbers = #tpu.dot_dimension_numbers<[1], [0], [0], [1], [0, 0, 1, 1], [], []>} : vector<8x3xf32>, vector<3x256xf32>, vector<8x256xf32> -> vector<8x256xf32>
    %36 = arith.addf %26, %35 : vector<8x256xf32>
    %cst_24 = arith.constant 0.000000e+00 : f32
    %37 = vector.broadcast %cst_24 : f32 to vector<3x1xf32>
    %38 = vector.extract_strided_slice %7 {offsets = [0, 0], sizes = [3, 255], strides = [1, 1]} : vector<3x256xf32> to vector<3x255xf32>
    %39 = tpu.concatenate %37, %38 in 1 : vector<3x1xf32>, vector<3x255xf32> -> vector<3x256xf32>
    %c3 = arith.constant 3 : index
    %c0_25 = arith.constant 0 : index
    %40 = vector.load %arg13[%c3, %c0_25] : memref<9x256xf32, #tpu.memory_space<vmem>>, vector<1x256xf32>
    %41 = vector.broadcast %40 : vector<1x256xf32> to vector<3x256xf32>
    %42 = arith.mulf %39, %41 : vector<3x256xf32>
    %c3_26 = arith.constant 3 : index
    %c0_27 = arith.constant 0 : index
    %c0_28 = arith.constant 0 : index
    %43 = vector.load %arg5[%c3_26, %c0_27, %c0_28] : memref<9x8x3xf32, #tpu.memory_space<vmem>>, vector<1x8x3xf32>
    %44 = vector.shape_cast %43 : vector<1x8x3xf32> to vector<8x3xf32>
    %cst_29 = arith.constant dense<0.000000e+00> : vector<8x256xf32>
    %45 = tpu.matmul %44, %42, %cst_29 {dimension_numbers = #tpu.dot_dimension_numbers<[1], [0], [0], [1], [0, 0, 1, 1], [], []>} : vector<8x3xf32>, vector<3x256xf32>, vector<8x256xf32> -> vector<8x256xf32>
    %46 = arith.addf %36, %45 : vector<8x256xf32>
    %c4 = arith.constant 4 : index
    %c0_30 = arith.constant 0 : index
    %c0_31 = arith.constant 0 : index
    %47 = vector.load %arg5[%c4, %c0_30, %c0_31] : memref<9x8x3xf32, #tpu.memory_space<vmem>>, vector<1x8x3xf32>
    %48 = vector.shape_cast %47 : vector<1x8x3xf32> to vector<8x3xf32>
    %cst_32 = arith.constant dense<0.000000e+00> : vector<8x256xf32>
    %49 = tpu.matmul %48, %7, %cst_32 {dimension_numbers = #tpu.dot_dimension_numbers<[1], [0], [0], [1], [0, 0, 1, 1], [], []>} : vector<8x3xf32>, vector<3x256xf32>, vector<8x256xf32> -> vector<8x256xf32>
    %50 = arith.addf %46, %49 : vector<8x256xf32>
    %cst_33 = arith.constant 0.000000e+00 : f32
    %51 = vector.broadcast %cst_33 : f32 to vector<3x1xf32>
    %52 = vector.extract_strided_slice %7 {offsets = [0, 1], sizes = [3, 255], strides = [1, 1]} : vector<3x256xf32> to vector<3x255xf32>
    %53 = tpu.concatenate %52, %51 in 1 : vector<3x255xf32>, vector<3x1xf32> -> vector<3x256xf32>
    %c5 = arith.constant 5 : index
    %c0_34 = arith.constant 0 : index
    %54 = vector.load %arg13[%c5, %c0_34] : memref<9x256xf32, #tpu.memory_space<vmem>>, vector<1x256xf32>
    %55 = vector.broadcast %54 : vector<1x256xf32> to vector<3x256xf32>
    %56 = arith.mulf %53, %55 : vector<3x256xf32>
    %c5_35 = arith.constant 5 : index
    %c0_36 = arith.constant 0 : index
    %c0_37 = arith.constant 0 : index
    %57 = vector.load %arg5[%c5_35, %c0_36, %c0_37] : memref<9x8x3xf32, #tpu.memory_space<vmem>>, vector<1x8x3xf32>
    %58 = vector.shape_cast %57 : vector<1x8x3xf32> to vector<8x3xf32>
    %cst_38 = arith.constant dense<0.000000e+00> : vector<8x256xf32>
    %59 = tpu.matmul %58, %56, %cst_38 {dimension_numbers = #tpu.dot_dimension_numbers<[1], [0], [0], [1], [0, 0, 1, 1], [], []>} : vector<8x3xf32>, vector<3x256xf32>, vector<8x256xf32> -> vector<8x256xf32>
    %60 = arith.addf %50, %59 : vector<8x256xf32>
    %cst_39 = arith.constant 0.000000e+00 : f32
    %61 = vector.broadcast %cst_39 : f32 to vector<3x15xf32>
    %62 = vector.extract_strided_slice %7 {offsets = [0, 15], sizes = [3, 241], strides = [1, 1]} : vector<3x256xf32> to vector<3x241xf32>
    %63 = tpu.concatenate %62, %61 in 1 : vector<3x241xf32>, vector<3x15xf32> -> vector<3x256xf32>
    %c6 = arith.constant 6 : index
    %c0_40 = arith.constant 0 : index
    %64 = vector.load %arg13[%c6, %c0_40] : memref<9x256xf32, #tpu.memory_space<vmem>>, vector<1x256xf32>
    %65 = vector.broadcast %64 : vector<1x256xf32> to vector<3x256xf32>
    %66 = arith.mulf %63, %65 : vector<3x256xf32>
    %c6_41 = arith.constant 6 : index
    %c0_42 = arith.constant 0 : index
    %c0_43 = arith.constant 0 : index
    %67 = vector.load %arg5[%c6_41, %c0_42, %c0_43] : memref<9x8x3xf32, #tpu.memory_space<vmem>>, vector<1x8x3xf32>
    %68 = vector.shape_cast %67 : vector<1x8x3xf32> to vector<8x3xf32>
    %cst_44 = arith.constant dense<0.000000e+00> : vector<8x256xf32>
    %69 = tpu.matmul %68, %66, %cst_44 {dimension_numbers = #tpu.dot_dimension_numbers<[1], [0], [0], [1], [0, 0, 1, 1], [], []>} : vector<8x3xf32>, vector<3x256xf32>, vector<8x256xf32> -> vector<8x256xf32>
    %70 = arith.addf %60, %69 : vector<8x256xf32>
    %cst_45 = arith.constant 0.000000e+00 : f32
    %71 = vector.broadcast %cst_45 : f32 to vector<3x16xf32>
    %72 = vector.extract_strided_slice %7 {offsets = [0, 16], sizes = [3, 240], strides = [1, 1]} : vector<3x256xf32> to vector<3x240xf32>
    %73 = tpu.concatenate %72, %71 in 1 : vector<3x240xf32>, vector<3x16xf32> -> vector<3x256xf32>
    %c7 = arith.constant 7 : index
    %c0_46 = arith.constant 0 : index
    %74 = vector.load %arg13[%c7, %c0_46] : memref<9x256xf32, #tpu.memory_space<vmem>>, vector<1x256xf32>
    %75 = vector.broadcast %74 : vector<1x256xf32> to vector<3x256xf32>
    %76 = arith.mulf %73, %75 : vector<3x256xf32>
    %c7_47 = arith.constant 7 : index
    %c0_48 = arith.constant 0 : index
    %c0_49 = arith.constant 0 : index
    %77 = vector.load %arg5[%c7_47, %c0_48, %c0_49] : memref<9x8x3xf32, #tpu.memory_space<vmem>>, vector<1x8x3xf32>
    %78 = vector.shape_cast %77 : vector<1x8x3xf32> to vector<8x3xf32>
    %cst_50 = arith.constant dense<0.000000e+00> : vector<8x256xf32>
    %79 = tpu.matmul %78, %76, %cst_50 {dimension_numbers = #tpu.dot_dimension_numbers<[1], [0], [0], [1], [0, 0, 1, 1], [], []>} : vector<8x3xf32>, vector<3x256xf32>, vector<8x256xf32> -> vector<8x256xf32>
    %80 = arith.addf %70, %79 : vector<8x256xf32>
    %cst_51 = arith.constant 0.000000e+00 : f32
    %81 = vector.broadcast %cst_51 : f32 to vector<3x17xf32>
    %82 = vector.extract_strided_slice %7 {offsets = [0, 17], sizes = [3, 239], strides = [1, 1]} : vector<3x256xf32> to vector<3x239xf32>
    %83 = tpu.concatenate %82, %81 in 1 : vector<3x239xf32>, vector<3x17xf32> -> vector<3x256xf32>
    %c8 = arith.constant 8 : index
    %c0_52 = arith.constant 0 : index
    %84 = vector.load %arg13[%c8, %c0_52] : memref<9x256xf32, #tpu.memory_space<vmem>>, vector<1x256xf32>
    %85 = vector.broadcast %84 : vector<1x256xf32> to vector<3x256xf32>
    %86 = arith.mulf %83, %85 : vector<3x256xf32>
    %c8_53 = arith.constant 8 : index
    %c0_54 = arith.constant 0 : index
    %c0_55 = arith.constant 0 : index
    %87 = vector.load %arg5[%c8_53, %c0_54, %c0_55] : memref<9x8x3xf32, #tpu.memory_space<vmem>>, vector<1x8x3xf32>
    %88 = vector.shape_cast %87 : vector<1x8x3xf32> to vector<8x3xf32>
    %cst_56 = arith.constant dense<0.000000e+00> : vector<8x256xf32>
    %89 = tpu.matmul %88, %86, %cst_56 {dimension_numbers = #tpu.dot_dimension_numbers<[1], [0], [0], [1], [0, 0, 1, 1], [], []>} : vector<8x3xf32>, vector<3x256xf32>, vector<8x256xf32> -> vector<8x256xf32>
    %90 = arith.addf %80, %89 : vector<8x256xf32>
    %c0_57 = arith.constant 0 : index
    %c0_58 = arith.constant 0 : index
    %91 = vector.load %arg6[%c0_57, %c0_58] : memref<8x1xf32, #tpu.memory_space<vmem>>, vector<8x1xf32>
    %92 = vector.broadcast %91 : vector<8x1xf32> to vector<8x256xf32>
    %93 = arith.addf %90, %92 : vector<8x256xf32>
    %cst_59 = arith.constant 0.000000e+00 : f32
    %94 = vector.broadcast %cst_59 : f32 to vector<8x256xf32>
    %95 = arith.maximumf %93, %94 : vector<8x256xf32>
    %cst_60 = arith.constant 0.000000e+00 : f32
    %96 = vector.broadcast %cst_60 : f32 to vector<8x1xf32>
    %97 = vector.extract_strided_slice %95 {offsets = [0, 1], sizes = [8, 255], strides = [1, 1]} : vector<8x256xf32> to vector<8x255xf32>
    %98 = tpu.concatenate %97, %96 in 1 : vector<8x255xf32>, vector<8x1xf32> -> vector<8x256xf32>
    %99 = arith.maximumf %95, %98 : vector<8x256xf32>
    %cst_61 = arith.constant 0.000000e+00 : f32
    %100 = vector.broadcast %cst_61 : f32 to vector<8x16xf32>
    %101 = vector.extract_strided_slice %95 {offsets = [0, 16], sizes = [8, 240], strides = [1, 1]} : vector<8x256xf32> to vector<8x240xf32>
    %102 = tpu.concatenate %101, %100 in 1 : vector<8x240xf32>, vector<8x16xf32> -> vector<8x256xf32>
    %cst_62 = arith.constant 0.000000e+00 : f32
    %103 = vector.broadcast %cst_62 : f32 to vector<8x17xf32>
    %104 = vector.extract_strided_slice %95 {offsets = [0, 17], sizes = [8, 239], strides = [1, 1]} : vector<8x256xf32> to vector<8x239xf32>
    %105 = tpu.concatenate %104, %103 in 1 : vector<8x239xf32>, vector<8x17xf32> -> vector<8x256xf32>
    %106 = arith.maximumf %102, %105 : vector<8x256xf32>
    %107 = arith.maximumf %99, %106 : vector<8x256xf32>
    %cst_63 = arith.constant 0.000000e+00 : f32
    %108 = vector.broadcast %cst_63 : f32 to vector<8x34xf32>
    %109 = vector.extract_strided_slice %107 {offsets = [0, 0], sizes = [8, 222], strides = [1, 1]} : vector<8x256xf32> to vector<8x222xf32>
    %110 = tpu.concatenate %108, %109 in 1 : vector<8x34xf32>, vector<8x222xf32> -> vector<8x256xf32>
    %c0_64 = arith.constant 0 : index
    %c0_65 = arith.constant 0 : index
    %111 = vector.load %arg14[%c0_64, %c0_65] : memref<9x256xf32, #tpu.memory_space<vmem>>, vector<1x256xf32>
    %112 = vector.broadcast %111 : vector<1x256xf32> to vector<8x256xf32>
    %113 = arith.mulf %110, %112 : vector<8x256xf32>
    %c0_66 = arith.constant 0 : index
    %c0_67 = arith.constant 0 : index
    %c0_68 = arith.constant 0 : index
    %114 = vector.load %arg7[%c0_66, %c0_67, %c0_68] : memref<9x16x8xf32, #tpu.memory_space<vmem>>, vector<1x16x8xf32>
    %115 = vector.shape_cast %114 : vector<1x16x8xf32> to vector<16x8xf32>
    %cst_69 = arith.constant dense<0.000000e+00> : vector<16x256xf32>
    %116 = tpu.matmul %115, %113, %cst_69 {dimension_numbers = #tpu.dot_dimension_numbers<[1], [0], [0], [1], [0, 0, 1, 1], [], []>} : vector<16x8xf32>, vector<8x256xf32>, vector<16x256xf32> -> vector<16x256xf32>
    %cst_70 = arith.constant 0.000000e+00 : f32
    %117 = vector.broadcast %cst_70 : f32 to vector<8x32xf32>
    %118 = vector.extract_strided_slice %107 {offsets = [0, 0], sizes = [8, 224], strides = [1, 1]} : vector<8x256xf32> to vector<8x224xf32>
    %119 = tpu.concatenate %117, %118 in 1 : vector<8x32xf32>, vector<8x224xf32> -> vector<8x256xf32>
    %c1_71 = arith.constant 1 : index
    %c0_72 = arith.constant 0 : index
    %120 = vector.load %arg14[%c1_71, %c0_72] : memref<9x256xf32, #tpu.memory_space<vmem>>, vector<1x256xf32>
    %121 = vector.broadcast %120 : vector<1x256xf32> to vector<8x256xf32>
    %122 = arith.mulf %119, %121 : vector<8x256xf32>
    %c1_73 = arith.constant 1 : index
    %c0_74 = arith.constant 0 : index
    %c0_75 = arith.constant 0 : index
    %123 = vector.load %arg7[%c1_73, %c0_74, %c0_75] : memref<9x16x8xf32, #tpu.memory_space<vmem>>, vector<1x16x8xf32>
    %124 = vector.shape_cast %123 : vector<1x16x8xf32> to vector<16x8xf32>
    %cst_76 = arith.constant dense<0.000000e+00> : vector<16x256xf32>
    %125 = tpu.matmul %124, %122, %cst_76 {dimension_numbers = #tpu.dot_dimension_numbers<[1], [0], [0], [1], [0, 0, 1, 1], [], []>} : vector<16x8xf32>, vector<8x256xf32>, vector<16x256xf32> -> vector<16x256xf32>
    %126 = arith.addf %116, %125 : vector<16x256xf32>
    %cst_77 = arith.constant 0.000000e+00 : f32
    %127 = vector.broadcast %cst_77 : f32 to vector<8x30xf32>
    %128 = vector.extract_strided_slice %107 {offsets = [0, 0], sizes = [8, 226], strides = [1, 1]} : vector<8x256xf32> to vector<8x226xf32>
    %129 = tpu.concatenate %127, %128 in 1 : vector<8x30xf32>, vector<8x226xf32> -> vector<8x256xf32>
    %c2_78 = arith.constant 2 : index
    %c0_79 = arith.constant 0 : index
    %130 = vector.load %arg14[%c2_78, %c0_79] : memref<9x256xf32, #tpu.memory_space<vmem>>, vector<1x256xf32>
    %131 = vector.broadcast %130 : vector<1x256xf32> to vector<8x256xf32>
    %132 = arith.mulf %129, %131 : vector<8x256xf32>
    %c2_80 = arith.constant 2 : index
    %c0_81 = arith.constant 0 : index
    %c0_82 = arith.constant 0 : index
    %133 = vector.load %arg7[%c2_80, %c0_81, %c0_82] : memref<9x16x8xf32, #tpu.memory_space<vmem>>, vector<1x16x8xf32>
    %134 = vector.shape_cast %133 : vector<1x16x8xf32> to vector<16x8xf32>
    %cst_83 = arith.constant dense<0.000000e+00> : vector<16x256xf32>
    %135 = tpu.matmul %134, %132, %cst_83 {dimension_numbers = #tpu.dot_dimension_numbers<[1], [0], [0], [1], [0, 0, 1, 1], [], []>} : vector<16x8xf32>, vector<8x256xf32>, vector<16x256xf32> -> vector<16x256xf32>
    %136 = arith.addf %126, %135 : vector<16x256xf32>
    %cst_84 = arith.constant 0.000000e+00 : f32
    %137 = vector.broadcast %cst_84 : f32 to vector<8x2xf32>
    %138 = vector.extract_strided_slice %107 {offsets = [0, 0], sizes = [8, 254], strides = [1, 1]} : vector<8x256xf32> to vector<8x254xf32>
    %139 = tpu.concatenate %137, %138 in 1 : vector<8x2xf32>, vector<8x254xf32> -> vector<8x256xf32>
    %c3_85 = arith.constant 3 : index
    %c0_86 = arith.constant 0 : index
    %140 = vector.load %arg14[%c3_85, %c0_86] : memref<9x256xf32, #tpu.memory_space<vmem>>, vector<1x256xf32>
    %141 = vector.broadcast %140 : vector<1x256xf32> to vector<8x256xf32>
    %142 = arith.mulf %139, %141 : vector<8x256xf32>
    %c3_87 = arith.constant 3 : index
    %c0_88 = arith.constant 0 : index
    %c0_89 = arith.constant 0 : index
    %143 = vector.load %arg7[%c3_87, %c0_88, %c0_89] : memref<9x16x8xf32, #tpu.memory_space<vmem>>, vector<1x16x8xf32>
    %144 = vector.shape_cast %143 : vector<1x16x8xf32> to vector<16x8xf32>
    %cst_90 = arith.constant dense<0.000000e+00> : vector<16x256xf32>
    %145 = tpu.matmul %144, %142, %cst_90 {dimension_numbers = #tpu.dot_dimension_numbers<[1], [0], [0], [1], [0, 0, 1, 1], [], []>} : vector<16x8xf32>, vector<8x256xf32>, vector<16x256xf32> -> vector<16x256xf32>
    %146 = arith.addf %136, %145 : vector<16x256xf32>
    %c4_91 = arith.constant 4 : index
    %c0_92 = arith.constant 0 : index
    %c0_93 = arith.constant 0 : index
    %147 = vector.load %arg7[%c4_91, %c0_92, %c0_93] : memref<9x16x8xf32, #tpu.memory_space<vmem>>, vector<1x16x8xf32>
    %148 = vector.shape_cast %147 : vector<1x16x8xf32> to vector<16x8xf32>
    %cst_94 = arith.constant dense<0.000000e+00> : vector<16x256xf32>
    %149 = tpu.matmul %148, %107, %cst_94 {dimension_numbers = #tpu.dot_dimension_numbers<[1], [0], [0], [1], [0, 0, 1, 1], [], []>} : vector<16x8xf32>, vector<8x256xf32>, vector<16x256xf32> -> vector<16x256xf32>
    %150 = arith.addf %146, %149 : vector<16x256xf32>
    %cst_95 = arith.constant 0.000000e+00 : f32
    %151 = vector.broadcast %cst_95 : f32 to vector<8x2xf32>
    %152 = vector.extract_strided_slice %107 {offsets = [0, 2], sizes = [8, 254], strides = [1, 1]} : vector<8x256xf32> to vector<8x254xf32>
    %153 = tpu.concatenate %152, %151 in 1 : vector<8x254xf32>, vector<8x2xf32> -> vector<8x256xf32>
    %c5_96 = arith.constant 5 : index
    %c0_97 = arith.constant 0 : index
    %154 = vector.load %arg14[%c5_96, %c0_97] : memref<9x256xf32, #tpu.memory_space<vmem>>, vector<1x256xf32>
    %155 = vector.broadcast %154 : vector<1x256xf32> to vector<8x256xf32>
    %156 = arith.mulf %153, %155 : vector<8x256xf32>
    %c5_98 = arith.constant 5 : index
    %c0_99 = arith.constant 0 : index
    %c0_100 = arith.constant 0 : index
    %157 = vector.load %arg7[%c5_98, %c0_99, %c0_100] : memref<9x16x8xf32, #tpu.memory_space<vmem>>, vector<1x16x8xf32>
    %158 = vector.shape_cast %157 : vector<1x16x8xf32> to vector<16x8xf32>
    %cst_101 = arith.constant dense<0.000000e+00> : vector<16x256xf32>
    %159 = tpu.matmul %158, %156, %cst_101 {dimension_numbers = #tpu.dot_dimension_numbers<[1], [0], [0], [1], [0, 0, 1, 1], [], []>} : vector<16x8xf32>, vector<8x256xf32>, vector<16x256xf32> -> vector<16x256xf32>
    %160 = arith.addf %150, %159 : vector<16x256xf32>
    %cst_102 = arith.constant 0.000000e+00 : f32
    %161 = vector.broadcast %cst_102 : f32 to vector<8x30xf32>
    %162 = vector.extract_strided_slice %107 {offsets = [0, 30], sizes = [8, 226], strides = [1, 1]} : vector<8x256xf32> to vector<8x226xf32>
    %163 = tpu.concatenate %162, %161 in 1 : vector<8x226xf32>, vector<8x30xf32> -> vector<8x256xf32>
    %c6_103 = arith.constant 6 : index
    %c0_104 = arith.constant 0 : index
    %164 = vector.load %arg14[%c6_103, %c0_104] : memref<9x256xf32, #tpu.memory_space<vmem>>, vector<1x256xf32>
    %165 = vector.broadcast %164 : vector<1x256xf32> to vector<8x256xf32>
    %166 = arith.mulf %163, %165 : vector<8x256xf32>
    %c6_105 = arith.constant 6 : index
    %c0_106 = arith.constant 0 : index
    %c0_107 = arith.constant 0 : index
    %167 = vector.load %arg7[%c6_105, %c0_106, %c0_107] : memref<9x16x8xf32, #tpu.memory_space<vmem>>, vector<1x16x8xf32>
    %168 = vector.shape_cast %167 : vector<1x16x8xf32> to vector<16x8xf32>
    %cst_108 = arith.constant dense<0.000000e+00> : vector<16x256xf32>
    %169 = tpu.matmul %168, %166, %cst_108 {dimension_numbers = #tpu.dot_dimension_numbers<[1], [0], [0], [1], [0, 0, 1, 1], [], []>} : vector<16x8xf32>, vector<8x256xf32>, vector<16x256xf32> -> vector<16x256xf32>
    %170 = arith.addf %160, %169 : vector<16x256xf32>
    %cst_109 = arith.constant 0.000000e+00 : f32
    %171 = vector.broadcast %cst_109 : f32 to vector<8x32xf32>
    %172 = vector.extract_strided_slice %107 {offsets = [0, 32], sizes = [8, 224], strides = [1, 1]} : vector<8x256xf32> to vector<8x224xf32>
    %173 = tpu.concatenate %172, %171 in 1 : vector<8x224xf32>, vector<8x32xf32> -> vector<8x256xf32>
    %c7_110 = arith.constant 7 : index
    %c0_111 = arith.constant 0 : index
    %174 = vector.load %arg14[%c7_110, %c0_111] : memref<9x256xf32, #tpu.memory_space<vmem>>, vector<1x256xf32>
    %175 = vector.broadcast %174 : vector<1x256xf32> to vector<8x256xf32>
    %176 = arith.mulf %173, %175 : vector<8x256xf32>
    %c7_112 = arith.constant 7 : index
    %c0_113 = arith.constant 0 : index
    %c0_114 = arith.constant 0 : index
    %177 = vector.load %arg7[%c7_112, %c0_113, %c0_114] : memref<9x16x8xf32, #tpu.memory_space<vmem>>, vector<1x16x8xf32>
    %178 = vector.shape_cast %177 : vector<1x16x8xf32> to vector<16x8xf32>
    %cst_115 = arith.constant dense<0.000000e+00> : vector<16x256xf32>
    %179 = tpu.matmul %178, %176, %cst_115 {dimension_numbers = #tpu.dot_dimension_numbers<[1], [0], [0], [1], [0, 0, 1, 1], [], []>} : vector<16x8xf32>, vector<8x256xf32>, vector<16x256xf32> -> vector<16x256xf32>
    %180 = arith.addf %170, %179 : vector<16x256xf32>
    %cst_116 = arith.constant 0.000000e+00 : f32
    %181 = vector.broadcast %cst_116 : f32 to vector<8x34xf32>
    %182 = vector.extract_strided_slice %107 {offsets = [0, 34], sizes = [8, 222], strides = [1, 1]} : vector<8x256xf32> to vector<8x222xf32>
    %183 = tpu.concatenate %182, %181 in 1 : vector<8x222xf32>, vector<8x34xf32> -> vector<8x256xf32>
    %c8_117 = arith.constant 8 : index
    %c0_118 = arith.constant 0 : index
    %184 = vector.load %arg14[%c8_117, %c0_118] : memref<9x256xf32, #tpu.memory_space<vmem>>, vector<1x256xf32>
    %185 = vector.broadcast %184 : vector<1x256xf32> to vector<8x256xf32>
    %186 = arith.mulf %183, %185 : vector<8x256xf32>
    %c8_119 = arith.constant 8 : index
    %c0_120 = arith.constant 0 : index
    %c0_121 = arith.constant 0 : index
    %187 = vector.load %arg7[%c8_119, %c0_120, %c0_121] : memref<9x16x8xf32, #tpu.memory_space<vmem>>, vector<1x16x8xf32>
    %188 = vector.shape_cast %187 : vector<1x16x8xf32> to vector<16x8xf32>
    %cst_122 = arith.constant dense<0.000000e+00> : vector<16x256xf32>
    %189 = tpu.matmul %188, %186, %cst_122 {dimension_numbers = #tpu.dot_dimension_numbers<[1], [0], [0], [1], [0, 0, 1, 1], [], []>} : vector<16x8xf32>, vector<8x256xf32>, vector<16x256xf32> -> vector<16x256xf32>
    %190 = arith.addf %180, %189 : vector<16x256xf32>
    %c0_123 = arith.constant 0 : index
    %c0_124 = arith.constant 0 : index
    %191 = vector.load %arg8[%c0_123, %c0_124] : memref<16x1xf32, #tpu.memory_space<vmem>>, vector<16x1xf32>
    %192 = vector.broadcast %191 : vector<16x1xf32> to vector<16x256xf32>
    %193 = arith.addf %190, %192 : vector<16x256xf32>
    %cst_125 = arith.constant 0.000000e+00 : f32
    %194 = vector.broadcast %cst_125 : f32 to vector<16x256xf32>
    %195 = arith.maximumf %193, %194 : vector<16x256xf32>
    %c0_126 = arith.constant 0 : index
    %c0_127 = arith.constant 0 : index
    %196 = vector.load %arg15[%c0_126, %c0_127] : memref<4x256xf32, #tpu.memory_space<vmem>>, vector<1x256xf32>
    %197 = vector.broadcast %196 : vector<1x256xf32> to vector<16x256xf32>
    %198 = arith.mulf %195, %197 : vector<16x256xf32>
    %cst_128 = arith.constant 0.000000e+00 : f32
    %199 = vector.broadcast %cst_128 : f32 to vector<16x1xf32>
    %200 = vector.extract_strided_slice %195 {offsets = [0, 0], sizes = [16, 255], strides = [1, 1]} : vector<16x256xf32> to vector<16x255xf32>
    %201 = tpu.concatenate %199, %200 in 1 : vector<16x1xf32>, vector<16x255xf32> -> vector<16x256xf32>
    %c1_129 = arith.constant 1 : index
    %c0_130 = arith.constant 0 : index
    %202 = vector.load %arg15[%c1_129, %c0_130] : memref<4x256xf32, #tpu.memory_space<vmem>>, vector<1x256xf32>
    %203 = vector.broadcast %202 : vector<1x256xf32> to vector<16x256xf32>
    %204 = arith.mulf %201, %203 : vector<16x256xf32>
    %205 = arith.addf %198, %204 : vector<16x256xf32>
    %cst_131 = arith.constant 0.000000e+00 : f32
    %206 = vector.broadcast %cst_131 : f32 to vector<16x16xf32>
    %207 = vector.extract_strided_slice %195 {offsets = [0, 0], sizes = [16, 240], strides = [1, 1]} : vector<16x256xf32> to vector<16x240xf32>
    %208 = tpu.concatenate %206, %207 in 1 : vector<16x16xf32>, vector<16x240xf32> -> vector<16x256xf32>
    %c2_132 = arith.constant 2 : index
    %c0_133 = arith.constant 0 : index
    %209 = vector.load %arg15[%c2_132, %c0_133] : memref<4x256xf32, #tpu.memory_space<vmem>>, vector<1x256xf32>
    %210 = vector.broadcast %209 : vector<1x256xf32> to vector<16x256xf32>
    %211 = arith.mulf %208, %210 : vector<16x256xf32>
    %212 = arith.addf %205, %211 : vector<16x256xf32>
    %cst_134 = arith.constant 0.000000e+00 : f32
    %213 = vector.broadcast %cst_134 : f32 to vector<16x17xf32>
    %214 = vector.extract_strided_slice %195 {offsets = [0, 0], sizes = [16, 239], strides = [1, 1]} : vector<16x256xf32> to vector<16x239xf32>
    %215 = tpu.concatenate %213, %214 in 1 : vector<16x17xf32>, vector<16x239xf32> -> vector<16x256xf32>
    %c3_135 = arith.constant 3 : index
    %c0_136 = arith.constant 0 : index
    %216 = vector.load %arg15[%c3_135, %c0_136] : memref<4x256xf32, #tpu.memory_space<vmem>>, vector<1x256xf32>
    %217 = vector.broadcast %216 : vector<1x256xf32> to vector<16x256xf32>
    %218 = arith.mulf %215, %217 : vector<16x256xf32>
    %219 = arith.addf %212, %218 : vector<16x256xf32>
    %220 = tpu.concatenate %219, %95 in 0 : vector<16x256xf32>, vector<8x256xf32> -> vector<24x256xf32>
    %cst_137 = arith.constant 0.000000e+00 : f32
    %221 = vector.broadcast %cst_137 : f32 to vector<24x17xf32>
    %222 = vector.extract_strided_slice %220 {offsets = [0, 0], sizes = [24, 239], strides = [1, 1]} : vector<24x256xf32> to vector<24x239xf32>
    %223 = tpu.concatenate %221, %222 in 1 : vector<24x17xf32>, vector<24x239xf32> -> vector<24x256xf32>
    %c0_138 = arith.constant 0 : index
    %c0_139 = arith.constant 0 : index
    %224 = vector.load %arg13[%c0_138, %c0_139] : memref<9x256xf32, #tpu.memory_space<vmem>>, vector<1x256xf32>
    %225 = vector.broadcast %224 : vector<1x256xf32> to vector<24x256xf32>
    %226 = arith.mulf %223, %225 : vector<24x256xf32>
    %c0_140 = arith.constant 0 : index
    %c0_141 = arith.constant 0 : index
    %c0_142 = arith.constant 0 : index
    %227 = vector.load %arg9[%c0_140, %c0_141, %c0_142] : memref<9x8x24xf32, #tpu.memory_space<vmem>>, vector<1x8x24xf32>
    %228 = vector.shape_cast %227 : vector<1x8x24xf32> to vector<8x24xf32>
    %cst_143 = arith.constant dense<0.000000e+00> : vector<8x256xf32>
    %229 = tpu.matmul %228, %226, %cst_143 {dimension_numbers = #tpu.dot_dimension_numbers<[1], [0], [0], [1], [0, 0, 1, 1], [], []>} : vector<8x24xf32>, vector<24x256xf32>, vector<8x256xf32> -> vector<8x256xf32>
    %cst_144 = arith.constant 0.000000e+00 : f32
    %230 = vector.broadcast %cst_144 : f32 to vector<24x16xf32>
    %231 = vector.extract_strided_slice %220 {offsets = [0, 0], sizes = [24, 240], strides = [1, 1]} : vector<24x256xf32> to vector<24x240xf32>
    %232 = tpu.concatenate %230, %231 in 1 : vector<24x16xf32>, vector<24x240xf32> -> vector<24x256xf32>
    %c1_145 = arith.constant 1 : index
    %c0_146 = arith.constant 0 : index
    %233 = vector.load %arg13[%c1_145, %c0_146] : memref<9x256xf32, #tpu.memory_space<vmem>>, vector<1x256xf32>
    %234 = vector.broadcast %233 : vector<1x256xf32> to vector<24x256xf32>
    %235 = arith.mulf %232, %234 : vector<24x256xf32>
    %c1_147 = arith.constant 1 : index
    %c0_148 = arith.constant 0 : index
    %c0_149 = arith.constant 0 : index
    %236 = vector.load %arg9[%c1_147, %c0_148, %c0_149] : memref<9x8x24xf32, #tpu.memory_space<vmem>>, vector<1x8x24xf32>
    %237 = vector.shape_cast %236 : vector<1x8x24xf32> to vector<8x24xf32>
    %cst_150 = arith.constant dense<0.000000e+00> : vector<8x256xf32>
    %238 = tpu.matmul %237, %235, %cst_150 {dimension_numbers = #tpu.dot_dimension_numbers<[1], [0], [0], [1], [0, 0, 1, 1], [], []>} : vector<8x24xf32>, vector<24x256xf32>, vector<8x256xf32> -> vector<8x256xf32>
    %239 = arith.addf %229, %238 : vector<8x256xf32>
    %cst_151 = arith.constant 0.000000e+00 : f32
    %240 = vector.broadcast %cst_151 : f32 to vector<24x15xf32>
    %241 = vector.extract_strided_slice %220 {offsets = [0, 0], sizes = [24, 241], strides = [1, 1]} : vector<24x256xf32> to vector<24x241xf32>
    %242 = tpu.concatenate %240, %241 in 1 : vector<24x15xf32>, vector<24x241xf32> -> vector<24x256xf32>
    %c2_152 = arith.constant 2 : index
    %c0_153 = arith.constant 0 : index
    %243 = vector.load %arg13[%c2_152, %c0_153] : memref<9x256xf32, #tpu.memory_space<vmem>>, vector<1x256xf32>
    %244 = vector.broadcast %243 : vector<1x256xf32> to vector<24x256xf32>
    %245 = arith.mulf %242, %244 : vector<24x256xf32>
    %c2_154 = arith.constant 2 : index
    %c0_155 = arith.constant 0 : index
    %c0_156 = arith.constant 0 : index
    %246 = vector.load %arg9[%c2_154, %c0_155, %c0_156] : memref<9x8x24xf32, #tpu.memory_space<vmem>>, vector<1x8x24xf32>
    %247 = vector.shape_cast %246 : vector<1x8x24xf32> to vector<8x24xf32>
    %cst_157 = arith.constant dense<0.000000e+00> : vector<8x256xf32>
    %248 = tpu.matmul %247, %245, %cst_157 {dimension_numbers = #tpu.dot_dimension_numbers<[1], [0], [0], [1], [0, 0, 1, 1], [], []>} : vector<8x24xf32>, vector<24x256xf32>, vector<8x256xf32> -> vector<8x256xf32>
    %249 = arith.addf %239, %248 : vector<8x256xf32>
    %cst_158 = arith.constant 0.000000e+00 : f32
    %250 = vector.broadcast %cst_158 : f32 to vector<24x1xf32>
    %251 = vector.extract_strided_slice %220 {offsets = [0, 0], sizes = [24, 255], strides = [1, 1]} : vector<24x256xf32> to vector<24x255xf32>
    %252 = tpu.concatenate %250, %251 in 1 : vector<24x1xf32>, vector<24x255xf32> -> vector<24x256xf32>
    %c3_159 = arith.constant 3 : index
    %c0_160 = arith.constant 0 : index
    %253 = vector.load %arg13[%c3_159, %c0_160] : memref<9x256xf32, #tpu.memory_space<vmem>>, vector<1x256xf32>
    %254 = vector.broadcast %253 : vector<1x256xf32> to vector<24x256xf32>
    %255 = arith.mulf %252, %254 : vector<24x256xf32>
    %c3_161 = arith.constant 3 : index
    %c0_162 = arith.constant 0 : index
    %c0_163 = arith.constant 0 : index
    %256 = vector.load %arg9[%c3_161, %c0_162, %c0_163] : memref<9x8x24xf32, #tpu.memory_space<vmem>>, vector<1x8x24xf32>
    %257 = vector.shape_cast %256 : vector<1x8x24xf32> to vector<8x24xf32>
    %cst_164 = arith.constant dense<0.000000e+00> : vector<8x256xf32>
    %258 = tpu.matmul %257, %255, %cst_164 {dimension_numbers = #tpu.dot_dimension_numbers<[1], [0], [0], [1], [0, 0, 1, 1], [], []>} : vector<8x24xf32>, vector<24x256xf32>, vector<8x256xf32> -> vector<8x256xf32>
    %259 = arith.addf %249, %258 : vector<8x256xf32>
    %c4_165 = arith.constant 4 : index
    %c0_166 = arith.constant 0 : index
    %c0_167 = arith.constant 0 : index
    %260 = vector.load %arg9[%c4_165, %c0_166, %c0_167] : memref<9x8x24xf32, #tpu.memory_space<vmem>>, vector<1x8x24xf32>
    %261 = vector.shape_cast %260 : vector<1x8x24xf32> to vector<8x24xf32>
    %cst_168 = arith.constant dense<0.000000e+00> : vector<8x256xf32>
    %262 = tpu.matmul %261, %220, %cst_168 {dimension_numbers = #tpu.dot_dimension_numbers<[1], [0], [0], [1], [0, 0, 1, 1], [], []>} : vector<8x24xf32>, vector<24x256xf32>, vector<8x256xf32> -> vector<8x256xf32>
    %263 = arith.addf %259, %262 : vector<8x256xf32>
    %cst_169 = arith.constant 0.000000e+00 : f32
    %264 = vector.broadcast %cst_169 : f32 to vector<24x1xf32>
    %265 = vector.extract_strided_slice %220 {offsets = [0, 1], sizes = [24, 255], strides = [1, 1]} : vector<24x256xf32> to vector<24x255xf32>
    %266 = tpu.concatenate %265, %264 in 1 : vector<24x255xf32>, vector<24x1xf32> -> vector<24x256xf32>
    %c5_170 = arith.constant 5 : index
    %c0_171 = arith.constant 0 : index
    %267 = vector.load %arg13[%c5_170, %c0_171] : memref<9x256xf32, #tpu.memory_space<vmem>>, vector<1x256xf32>
    %268 = vector.broadcast %267 : vector<1x256xf32> to vector<24x256xf32>
    %269 = arith.mulf %266, %268 : vector<24x256xf32>
    %c5_172 = arith.constant 5 : index
    %c0_173 = arith.constant 0 : index
    %c0_174 = arith.constant 0 : index
    %270 = vector.load %arg9[%c5_172, %c0_173, %c0_174] : memref<9x8x24xf32, #tpu.memory_space<vmem>>, vector<1x8x24xf32>
    %271 = vector.shape_cast %270 : vector<1x8x24xf32> to vector<8x24xf32>
    %cst_175 = arith.constant dense<0.000000e+00> : vector<8x256xf32>
    %272 = tpu.matmul %271, %269, %cst_175 {dimension_numbers = #tpu.dot_dimension_numbers<[1], [0], [0], [1], [0, 0, 1, 1], [], []>} : vector<8x24xf32>, vector<24x256xf32>, vector<8x256xf32> -> vector<8x256xf32>
    %273 = arith.addf %263, %272 : vector<8x256xf32>
    %cst_176 = arith.constant 0.000000e+00 : f32
    %274 = vector.broadcast %cst_176 : f32 to vector<24x15xf32>
    %275 = vector.extract_strided_slice %220 {offsets = [0, 15], sizes = [24, 241], strides = [1, 1]} : vector<24x256xf32> to vector<24x241xf32>
    %276 = tpu.concatenate %275, %274 in 1 : vector<24x241xf32>, vector<24x15xf32> -> vector<24x256xf32>
    %c6_177 = arith.constant 6 : index
    %c0_178 = arith.constant 0 : index
    %277 = vector.load %arg13[%c6_177, %c0_178] : memref<9x256xf32, #tpu.memory_space<vmem>>, vector<1x256xf32>
    %278 = vector.broadcast %277 : vector<1x256xf32> to vector<24x256xf32>
    %279 = arith.mulf %276, %278 : vector<24x256xf32>
    %c6_179 = arith.constant 6 : index
    %c0_180 = arith.constant 0 : index
    %c0_181 = arith.constant 0 : index
    %280 = vector.load %arg9[%c6_179, %c0_180, %c0_181] : memref<9x8x24xf32, #tpu.memory_space<vmem>>, vector<1x8x24xf32>
    %281 = vector.shape_cast %280 : vector<1x8x24xf32> to vector<8x24xf32>
    %cst_182 = arith.constant dense<0.000000e+00> : vector<8x256xf32>
    %282 = tpu.matmul %281, %279, %cst_182 {dimension_numbers = #tpu.dot_dimension_numbers<[1], [0], [0], [1], [0, 0, 1, 1], [], []>} : vector<8x24xf32>, vector<24x256xf32>, vector<8x256xf32> -> vector<8x256xf32>
    %283 = arith.addf %273, %282 : vector<8x256xf32>
    %cst_183 = arith.constant 0.000000e+00 : f32
    %284 = vector.broadcast %cst_183 : f32 to vector<24x16xf32>
    %285 = vector.extract_strided_slice %220 {offsets = [0, 16], sizes = [24, 240], strides = [1, 1]} : vector<24x256xf32> to vector<24x240xf32>
    %286 = tpu.concatenate %285, %284 in 1 : vector<24x240xf32>, vector<24x16xf32> -> vector<24x256xf32>
    %c7_184 = arith.constant 7 : index
    %c0_185 = arith.constant 0 : index
    %287 = vector.load %arg13[%c7_184, %c0_185] : memref<9x256xf32, #tpu.memory_space<vmem>>, vector<1x256xf32>
    %288 = vector.broadcast %287 : vector<1x256xf32> to vector<24x256xf32>
    %289 = arith.mulf %286, %288 : vector<24x256xf32>
    %c7_186 = arith.constant 7 : index
    %c0_187 = arith.constant 0 : index
    %c0_188 = arith.constant 0 : index
    %290 = vector.load %arg9[%c7_186, %c0_187, %c0_188] : memref<9x8x24xf32, #tpu.memory_space<vmem>>, vector<1x8x24xf32>
    %291 = vector.shape_cast %290 : vector<1x8x24xf32> to vector<8x24xf32>
    %cst_189 = arith.constant dense<0.000000e+00> : vector<8x256xf32>
    %292 = tpu.matmul %291, %289, %cst_189 {dimension_numbers = #tpu.dot_dimension_numbers<[1], [0], [0], [1], [0, 0, 1, 1], [], []>} : vector<8x24xf32>, vector<24x256xf32>, vector<8x256xf32> -> vector<8x256xf32>
    %293 = arith.addf %283, %292 : vector<8x256xf32>
    %cst_190 = arith.constant 0.000000e+00 : f32
    %294 = vector.broadcast %cst_190 : f32 to vector<24x17xf32>
    %295 = vector.extract_strided_slice %220 {offsets = [0, 17], sizes = [24, 239], strides = [1, 1]} : vector<24x256xf32> to vector<24x239xf32>
    %296 = tpu.concatenate %295, %294 in 1 : vector<24x239xf32>, vector<24x17xf32> -> vector<24x256xf32>
    %c8_191 = arith.constant 8 : index
    %c0_192 = arith.constant 0 : index
    %297 = vector.load %arg13[%c8_191, %c0_192] : memref<9x256xf32, #tpu.memory_space<vmem>>, vector<1x256xf32>
    %298 = vector.broadcast %297 : vector<1x256xf32> to vector<24x256xf32>
    %299 = arith.mulf %296, %298 : vector<24x256xf32>
    %c8_193 = arith.constant 8 : index
    %c0_194 = arith.constant 0 : index
    %c0_195 = arith.constant 0 : index
    %300 = vector.load %arg9[%c8_193, %c0_194, %c0_195] : memref<9x8x24xf32, #tpu.memory_space<vmem>>, vector<1x8x24xf32>
    %301 = vector.shape_cast %300 : vector<1x8x24xf32> to vector<8x24xf32>
    %cst_196 = arith.constant dense<0.000000e+00> : vector<8x256xf32>
    %302 = tpu.matmul %301, %299, %cst_196 {dimension_numbers = #tpu.dot_dimension_numbers<[1], [0], [0], [1], [0, 0, 1, 1], [], []>} : vector<8x24xf32>, vector<24x256xf32>, vector<8x256xf32> -> vector<8x256xf32>
    %303 = arith.addf %293, %302 : vector<8x256xf32>
    %c0_197 = arith.constant 0 : index
    %c0_198 = arith.constant 0 : index
    %304 = vector.load %arg10[%c0_197, %c0_198] : memref<8x1xf32, #tpu.memory_space<vmem>>, vector<8x1xf32>
    %305 = vector.broadcast %304 : vector<8x1xf32> to vector<8x256xf32>
    %306 = arith.addf %303, %305 : vector<8x256xf32>
    %cst_199 = arith.constant 0.000000e+00 : f32
    %307 = vector.broadcast %cst_199 : f32 to vector<8x256xf32>
    %308 = arith.maximumf %306, %307 : vector<8x256xf32>
    %c0_200 = arith.constant 0 : index
    %c0_201 = arith.constant 0 : index
    %309 = vector.load %arg11[%c0_200, %c0_201] : memref<3x8xf32, #tpu.memory_space<vmem>>, vector<3x8xf32>
    %cst_202 = arith.constant dense<0.000000e+00> : vector<3x256xf32>
    %310 = tpu.matmul %309, %308, %cst_202 {dimension_numbers = #tpu.dot_dimension_numbers<[1], [0], [0], [1], [0, 0, 1, 1], [], []>} : vector<3x8xf32>, vector<8x256xf32>, vector<3x256xf32> -> vector<3x256xf32>
    %c0_203 = arith.constant 0 : index
    %c0_204 = arith.constant 0 : index
    %311 = vector.load %arg12[%c0_203, %c0_204] : memref<3x1xf32, #tpu.memory_space<vmem>>, vector<3x1xf32>
    %312 = vector.broadcast %311 : vector<3x1xf32> to vector<3x256xf32>
    %313 = arith.addf %310, %312 : vector<3x256xf32>
    %c0_205 = arith.constant 0 : index
    %c0_206 = arith.constant 0 : index
    %314 = vector.load %arg3[%c0_205, %c0_206] : memref<3x1xf32, #tpu.memory_space<vmem>>, vector<3x1xf32>
    %315 = vector.broadcast %314 : vector<3x1xf32> to vector<3x256xf32>
    %316 = arith.mulf %313, %315 : vector<3x256xf32>
    %c0_207 = arith.constant 0 : index
    %c0_208 = arith.constant 0 : index
    %317 = vector.load %arg2[%c0_207, %c0_208] : memref<3x1xf32, #tpu.memory_space<vmem>>, vector<3x1xf32>
    %318 = vector.broadcast %317 : vector<3x1xf32> to vector<3x256xf32>
    %319 = arith.addf %316, %318 : vector<3x256xf32>
    %cst_209 = arith.constant 0.000000e+00 : f32
    %cst_210 = arith.constant 1.000000e+00 : f32
    %320 = vector.broadcast %cst_209 : f32 to vector<3x256xf32>
    %321 = arith.maximumf %320, %319 : vector<3x256xf32>
    %322 = vector.broadcast %cst_210 : f32 to vector<3x256xf32>
    %323 = arith.minimumf %322, %321 : vector<3x256xf32>
    %c0_211 = arith.constant 0 : index
    %c0_212 = arith.constant 0 : index
    %c0_213 = arith.constant 0 : index
    %324 = vector.load %arg16[%c0_211, %c0_212, %c0_213] : memref<1x3x256xf32, #tpu.memory_space<vmem>>, vector<1x3x256xf32>
    %325 = vector.shape_cast %324 : vector<1x3x256xf32> to vector<3x256xf32>
    %326 = vector.shape_cast %323 : vector<3x256xf32> to vector<1x3x256xf32>
    tpu.vector_store %arg16[%c0_211, %c0_212, %c0_213], %326 {strides = array<i32>} : memref<1x3x256xf32, #tpu.memory_space<vmem>>, vector<1x3x256xf32>,
    return
  }
  func.func @transform_0(%arg0: i32) -> (i32, i32, i32) {
    %c0_i32 = arith.constant 0 : i32
    %c0_i32_0 = arith.constant 0 : i32
    %c0_i32_1 = arith.constant 0 : i32
    return %arg0, %c0_i32, %c0_i32_0 : i32, i32, i32
  }
  func.func @transform_1(%arg0: i32) -> (i32, i32) {
    %c0_i32 = arith.constant 0 : i32
    %c0_i32_0 = arith.constant 0 : i32
    %c0_i32_1 = arith.constant 0 : i32
    return %c0_i32, %c0_i32_0 : i32, i32
  }
  func.func @transform_2(%arg0: i32) -> (i32, i32) {
    %c0_i32 = arith.constant 0 : i32
    %c0_i32_0 = arith.constant 0 : i32
    %c0_i32_1 = arith.constant 0 : i32
    return %c0_i32, %c0_i32_0 : i32, i32
  }
  func.func @transform_3(%arg0: i32) -> (i32, i32) {
    %c0_i32 = arith.constant 0 : i32
    %c0_i32_0 = arith.constant 0 : i32
    %c0_i32_1 = arith.constant 0 : i32
    return %c0_i32, %c0_i32_0 : i32, i32
  }
  func.func @transform_4(%arg0: i32) -> (i32, i32, i32) {
    %c0_i32 = arith.constant 0 : i32
    %c0_i32_0 = arith.constant 0 : i32
    %c0_i32_1 = arith.constant 0 : i32
    %c0_i32_2 = arith.constant 0 : i32
    return %c0_i32, %c0_i32_0, %c0_i32_1 : i32, i32, i32
  }
  func.func @transform_5(%arg0: i32) -> (i32, i32) {
    %c0_i32 = arith.constant 0 : i32
    %c0_i32_0 = arith.constant 0 : i32
    %c0_i32_1 = arith.constant 0 : i32
    return %c0_i32, %c0_i32_0 : i32, i32
  }
  func.func @transform_6(%arg0: i32) -> (i32, i32, i32) {
    %c0_i32 = arith.constant 0 : i32
    %c0_i32_0 = arith.constant 0 : i32
    %c0_i32_1 = arith.constant 0 : i32
    %c0_i32_2 = arith.constant 0 : i32
    return %c0_i32, %c0_i32_0, %c0_i32_1 : i32, i32, i32
  }
  func.func @transform_7(%arg0: i32) -> (i32, i32) {
    %c0_i32 = arith.constant 0 : i32
    %c0_i32_0 = arith.constant 0 : i32
    %c0_i32_1 = arith.constant 0 : i32
    return %c0_i32, %c0_i32_0 : i32, i32
  }
  func.func @transform_8(%arg0: i32) -> (i32, i32, i32) {
    %c0_i32 = arith.constant 0 : i32
    %c0_i32_0 = arith.constant 0 : i32
    %c0_i32_1 = arith.constant 0 : i32
    %c0_i32_2 = arith.constant 0 : i32
    return %c0_i32, %c0_i32_0, %c0_i32_1 : i32, i32, i32
  }
  func.func @transform_9(%arg0: i32) -> (i32, i32) {
    %c0_i32 = arith.constant 0 : i32
    %c0_i32_0 = arith.constant 0 : i32
    %c0_i32_1 = arith.constant 0 : i32
    return %c0_i32, %c0_i32_0 : i32, i32
  }
  func.func @transform_10(%arg0: i32) -> (i32, i32) {
    %c0_i32 = arith.constant 0 : i32
    %c0_i32_0 = arith.constant 0 : i32
    %c0_i32_1 = arith.constant 0 : i32
    return %c0_i32, %c0_i32_0 : i32, i32
  }
  func.func @transform_11(%arg0: i32) -> (i32, i32) {
    %c0_i32 = arith.constant 0 : i32
    %c0_i32_0 = arith.constant 0 : i32
    %c0_i32_1 = arith.constant 0 : i32
    return %c0_i32, %c0_i32_0 : i32, i32
  }
  func.func @transform_12(%arg0: i32) -> (i32, i32) {
    %c0_i32 = arith.constant 0 : i32
    %c0_i32_0 = arith.constant 0 : i32
    %c0_i32_1 = arith.constant 0 : i32
    return %c0_i32, %c0_i32_0 : i32, i32
  }
  func.func @transform_13(%arg0: i32) -> (i32, i32) {
    %c0_i32 = arith.constant 0 : i32
    %c0_i32_0 = arith.constant 0 : i32
    %c0_i32_1 = arith.constant 0 : i32
    return %c0_i32, %c0_i32_0 : i32, i32
  }
  func.func @transform_14(%arg0: i32) -> (i32, i32) {
    %c0_i32 = arith.constant 0 : i32
    %c0_i32_0 = arith.constant 0 : i32
    %c0_i32_1 = arith.constant 0 : i32
    return %c0_i32, %c0_i32_0 : i32, i32
  }
  func.func @transform_15(%arg0: i32) -> (i32, i32, i32) {
    %c0_i32 = arith.constant 0 : i32
    %c0_i32_0 = arith.constant 0 : i32
    %c0_i32_1 = arith.constant 0 : i32
    return %arg0, %c0_i32, %c0_i32_0 : i32, i32, i32
  }
}

</mosaic_0001>

<llo_original>
// kernel: normalized_unet_forward.1
$region0: #{normalized_unet_forward.1}
  #allocation0 [shape = 'u32[]', space=smem, size = 0x4, offset = 0x4, fixed_abs, tag = 'smem constant byte address 0x4 - core index']
  #allocation1 [shape = 'u32[144,128]{1,0:T(1,128)}', space=vmem, size = 0x12000, scoped, tag = 'internal scratch']
  %s0 = inlined_call_operand.vmem [shape: f32[2,3,256], index: 0, kind: input, shape index: {}]
  %s1 = inlined_call_operand.vmem [shape: f32[3,1], index: 1, kind: input, shape index: {}]
  %s2 = inlined_call_operand.vmem [shape: f32[3,1], index: 2, kind: input, shape index: {}]
  %s3 = inlined_call_operand.vmem [shape: f32[3,1], index: 3, kind: input, shape index: {}]
  %s4 = inlined_call_operand.vmem [shape: f32[9,8,3], index: 4, kind: input, shape index: {}]
  %s5 = inlined_call_operand.vmem [shape: f32[8,1], index: 5, kind: input, shape index: {}]
  %s6 = inlined_call_operand.vmem [shape: f32[9,16,8], index: 6, kind: input, shape index: {}]
  %s7 = inlined_call_operand.vmem [shape: f32[16,1], index: 7, kind: input, shape index: {}]
  %s8 = inlined_call_operand.vmem [shape: f32[9,8,24], index: 8, kind: input, shape index: {}]
  %s9 = inlined_call_operand.vmem [shape: f32[8,1], index: 9, kind: input, shape index: {}]
  %s10 = inlined_call_operand.vmem [shape: f32[3,8], index: 10, kind: input, shape index: {}]
  %s11 = inlined_call_operand.vmem [shape: f32[3,1], index: 11, kind: input, shape index: {}]
  %s12 = inlined_call_operand.vmem [shape: f32[9,256], index: 12, kind: input, shape index: {}]
  %s13 = inlined_call_operand.vmem [shape: f32[9,256], index: 13, kind: input, shape index: {}]
  %s14 = inlined_call_operand.vmem [shape: f32[4,256], index: 14, kind: input, shape index: {}]
  %s15 = inlined_call_operand.vmem [shape: f32[2,3,256], index: 15, kind: output, shape index: {}]
  %s16 = sld [smem:[#allocation0]]
  $region93: #{normalized_unet_forward.1} parent=0
    _
  %s18 = ssub.s32 1, %s16
  %s19 = scalar_select 0, %s18, %s16
  loop: start=0, step=1, limit=4
  $region2: #{normalized_unet_forward.1} parent=0 // loop_pre_header
    _
  $region3: #{normalized_unet_forward.1} parent=0 // loop_header
    %s21 = sphi 0, %s25
    %p22 = scmp.ge.s32.totalorder %s21, 4
    %s31 = sphi 0, %s33
    %s34 = sphi 0, %s31
    %s35 = sphi 0, %s34
    %s51 = sphi 0, %s35
    %s55 = sphi 0, %s55
    %s57 = sphi 0, %s55
    %s58 = sphi 0, %s57
    %s72 = sphi 0, %s58
    %s76 = sphi 0, %s76
    %s78 = sphi 0, %s76
    %s79 = sphi 0, %s78
    %s93 = sphi 0, %s79
    %s97 = sphi 0, %s97
    %s99 = sphi 0, %s97
    %s100 = sphi 0, %s99
    %s114 = sphi 0, %s100
    %s118 = sphi 0, %s118
    %s120 = sphi 0, %s118
    %s121 = sphi 0, %s120
    %s135 = sphi 0, %s121
    %s139 = sphi 0, %s139
    %s141 = sphi 0, %s139
    %s142 = sphi 0, %s141
    %s156 = sphi 0, %s142
    %s160 = sphi 0, %s160
    %s162 = sphi 0, %s160
    %s163 = sphi 0, %s162
    %s177 = sphi 0, %s163
    %s181 = sphi 0, %s181
    %s183 = sphi 0, %s181
    %s184 = sphi 0, %s183
    %s198 = sphi 0, %s184
    %s202 = sphi 0, %s202
    %s204 = sphi 0, %s202
    %s205 = sphi 0, %s204
    %s219 = sphi 0, %s205
    %s223 = sphi 0, %s223
    %s225 = sphi 0, %s223
    %s226 = sphi 0, %s225
    %s240 = sphi 0, %s226
    %s244 = sphi 0, %s244
    %s246 = sphi 0, %s244
    %s247 = sphi 0, %s246
    %s261 = sphi 0, %s247
    %s265 = sphi 0, %s265
    %s267 = sphi 0, %s265
    %s268 = sphi 0, %s267
    %s282 = sphi 0, %s268
    %s286 = sphi 0, %s286
    %s288 = sphi 0, %s286
    %s289 = sphi 0, %s288
    %s303 = sphi 0, %s289
    %s307 = sphi 0, %s307
    %s309 = sphi 0, %s307
    %s310 = sphi 0, %s309
    %s324 = sphi 0, %s310
    %s328 = sphi 0, %s328
    %s330 = sphi 0, %s328
    %s331 = sphi 0, %s330
    %s345 = sphi 0, %s331
    %s351 = sphi 0, %s353
    %s354 = sphi 0, %s351
    %s355 = sphi 0, %s354
    %s371 = sphi 0, %s355
  $region4: #{normalized_unet_forward.1} parent=0 // loop_header_branch
    %24 = sbr.rel (%p22) target = $region8
  $region5: #{normalized_unet_forward.1} parent=0 // loop_body
    %s26 = ssub.s32 %s21, 1
    %s27 = ssub.s32 %s21, 2
    %s28 = sadd.s32 %s21, 1
    %s29 = ssub.s32 %s21, %s28
    %p30 = scmp.eq.s32.totalorder %s29, 0
    %s32 = sadd.s32 %s31, 1
    %s33 = scalar_select %p30, %s31, %s32
    %p36 = pneg %p30
    %p37 = scmp.eq.s32.totalorder %s21, 1
    %p38 = por %p36, %p37
    %p39 = scmp.ne.s32.totalorder %s31, %s34
    %p40 = scmp.eq.s32.totalorder %s21, 0
    %p41 = por %p39, %p40
    %p42 = scmp.ne.s32.totalorder %s31, %s34
    %p43 = scmp.eq.s32.totalorder %s26, 1
    %p44 = por %p42, %p43
    %p45 = scmp.ne.s32.totalorder %s34, %s35
    %p46 = scmp.eq.s32.totalorder %s26, 0
    %p47 = por %p45, %p46
    %p48 = scmp.ne.s32.totalorder %s34, %s35
    %p49 = scmp.eq.s32.totalorder %s27, 1
    %p50 = por %p48, %p49
    %p52 = scmp.ne.s32.totalorder %s35, %s51
    %p53 = scmp.eq.s32.totalorder %s27, 0
    %p54 = por %p52, %p53
    %s56 = sadd.s32 %s55, 1
    %p59 = scmp.eq.s32.totalorder %s21, 1
    %p60 = scmp.ne.s32.totalorder %s55, %s57
    %p61 = scmp.eq.s32.totalorder %s21, 0
    %p62 = por %p60, %p61
    %p63 = scmp.ne.s32.totalorder %s55, %s57
    %p64 = scmp.eq.s32.totalorder %s26, 1
    %p65 = por %p63, %p64
    %p66 = scmp.ne.s32.totalorder %s57, %s58
    %p67 = scmp.eq.s32.totalorder %s26, 0
    %p68 = por %p66, %p67
    %p69 = scmp.ne.s32.totalorder %s57, %s58
    %p70 = scmp.eq.s32.totalorder %s27, 1
    %p71 = por %p69, %p70
    %p73 = scmp.ne.s32.totalorder %s58, %s72
    %p74 = scmp.eq.s32.totalorder %s27, 0
    %p75 = por %p73, %p74
    %s77 = sadd.s32 %s76, 1
    %p80 = scmp.eq.s32.totalorder %s21, 1
    %p81 = scmp.ne.s32.totalorder %s76, %s78
    %p82 = scmp.eq.s32.totalorder %s21, 0
    %p83 = por %p81, %p82
    %p84 = scmp.ne.s32.totalorder %s76, %s78
    %p85 = scmp.eq.s32.totalorder %s26, 1
    %p86 = por %p84, %p85
    %p87 = scmp.ne.s32.totalorder %s78, %s79
    %p88 = scmp.eq.s32.totalorder %s26, 0
    %p89 = por %p87, %p88
    %p90 = scmp.ne.s32.totalorder %s78, %s79
    %p91 = scmp.eq.s32.totalorder %s27, 1
    %p92 = por %p90, %p91
    %p94 = scmp.ne.s32.totalorder %s79, %s93
    %p95 = scmp.eq.s32.totalorder %s27, 0
    %p96 = por %p94, %p95
    %s98 = sadd.s32 %s97, 1
    %p101 = scmp.eq.s32.totalorder %s21, 1
    %p102 = scmp.ne.s32.totalorder %s97, %s99
    %p103 = scmp.eq.s32.totalorder %s21, 0
    %p104 = por %p102, %p103
    %p105 = scmp.ne.s32.totalorder %s97, %s99
    %p106 = scmp.eq.s32.totalorder %s26, 1
    %p107 = por %p105, %p106
    %p108 = scmp.ne.s32.totalorder %s99, %s100
    %p109 = scmp.eq.s32.totalorder %s26, 0
    %p110 = por %p108, %p109
    %p111 = scmp.ne.s32.totalorder %s99, %s100
    %p112 = scmp.eq.s32.totalorder %s27, 1
    %p113 = por %p111, %p112
    %p115 = scmp.ne.s32.totalorder %s100, %s114
    %p116 = scmp.eq.s32.totalorder %s27, 0
    %p117 = por %p115, %p116
    %s119 = sadd.s32 %s118, 1
    %p122 = scmp.eq.s32.totalorder %s21, 1
    %p123 = scmp.ne.s32.totalorder %s118, %s120
    %p124 = scmp.eq.s32.totalorder %s21, 0
    %p125 = por %p123, %p124
    %p126 = scmp.ne.s32.totalorder %s118, %s120
    %p127 = scmp.eq.s32.totalorder %s26, 1
    %p128 = por %p126, %p127
    %p129 = scmp.ne.s32.totalorder %s120, %s121
    %p130 = scmp.eq.s32.totalorder %s26, 0
    %p131 = por %p129, %p130
    %p132 = scmp.ne.s32.totalorder %s120, %s121
    %p133 = scmp.eq.s32.totalorder %s27, 1
    %p134 = por %p132, %p133
    %p136 = scmp.ne.s32.totalorder %s121, %s135
    %p137 = scmp.eq.s32.totalorder %s27, 0
    %p138 = por %p136, %p137
    %s140 = sadd.s32 %s139, 1
    %p143 = scmp.eq.s32.totalorder %s21, 1
    %p144 = scmp.ne.s32.totalorder %s139, %s141
    %p145 = scmp.eq.s32.totalorder %s21, 0
    %p146 = por %p144, %p145
    %p147 = scmp.ne.s32.totalorder %s139, %s141
    %p148 = scmp.eq.s32.totalorder %s26, 1
    %p149 = por %p147, %p148
    %p150 = scmp.ne.s32.totalorder %s141, %s142
    %p151 = scmp.eq.s32.totalorder %s26, 0
    %p152 = por %p150, %p151
    %p153 = scmp.ne.s32.totalorder %s141, %s142
    %p154 = scmp.eq.s32.totalorder %s27, 1
    %p155 = por %p153, %p154
    %p157 = scmp.ne.s32.totalorder %s142, %s156
    %p158 = scmp.eq.s32.totalorder %s27, 0
    %p159 = por %p157, %p158
    %s161 = sadd.s32 %s160, 1
    %p164 = scmp.eq.s32.totalorder %s21, 1
    %p165 = scmp.ne.s32.totalorder %s160, %s162
    %p166 = scmp.eq.s32.totalorder %s21, 0
    %p167 = por %p165, %p166
    %p168 = scmp.ne.s32.totalorder %s160, %s162
    %p169 = scmp.eq.s32.totalorder %s26, 1
    %p170 = por %p168, %p169
    %p171 = scmp.ne.s32.totalorder %s162, %s163
    %p172 = scmp.eq.s32.totalorder %s26, 0
    %p173 = por %p171, %p172
    %p174 = scmp.ne.s32.totalorder %s162, %s163
    %p175 = scmp.eq.s32.totalorder %s27, 1
    %p176 = por %p174, %p175
    %p178 = scmp.ne.s32.totalorder %s163, %s177
    %p179 = scmp.eq.s32.totalorder %s27, 0
    %p180 = por %p178, %p179
    %s182 = sadd.s32 %s181, 1
    %p185 = scmp.eq.s32.totalorder %s21, 1
    %p186 = scmp.ne.s32.totalorder %s181, %s183
    %p187 = scmp.eq.s32.totalorder %s21, 0
    %p188 = por %p186, %p187
    %p189 = scmp.ne.s32.totalorder %s181, %s183
    %p190 = scmp.eq.s32.totalorder %s26, 1
    %p191 = por %p189, %p190
    %p192 = scmp.ne.s32.totalorder %s183, %s184
    %p193 = scmp.eq.s32.totalorder %s26, 0
    %p194 = por %p192, %p193
    %p195 = scmp.ne.s32.totalorder %s183, %s184
    %p196 = scmp.eq.s32.totalorder %s27, 1
    %p197 = por %p195, %p196
    %p199 = scmp.ne.s32.totalorder %s184, %s198
    %p200 = scmp.eq.s32.totalorder %s27, 0
    %p201 = por %p199, %p200
    %s203 = sadd.s32 %s202, 1
    %p206 = scmp.eq.s32.totalorder %s21, 1
    %p207 = scmp.ne.s32.totalorder %s202, %s204
    %p208 = scmp.eq.s32.totalorder %s21, 0
    %p209 = por %p207, %p208
    %p210 = scmp.ne.s32.totalorder %s202, %s204
    %p211 = scmp.eq.s32.totalorder %s26, 1
    %p212 = por %p210, %p211
    %p213 = scmp.ne.s32.totalorder %s204, %s205
    %p214 = scmp.eq.s32.totalorder %s26, 0
    %p215 = por %p213, %p214
    %p216 = scmp.ne.s32.totalorder %s204, %s205
    %p217 = scmp.eq.s32.totalorder %s27, 1
    %p218 = por %p216, %p217
    %p220 = scmp.ne.s32.totalorder %s205, %s219
    %p221 = scmp.eq.s32.totalorder %s27, 0
    %p222 = por %p220, %p221
    %s224 = sadd.s32 %s223, 1
    %p227 = scmp.eq.s32.totalorder %s21, 1
    %p228 = scmp.ne.s32.totalorder %s223, %s225
    %p229 = scmp.eq.s32.totalorder %s21, 0
    %p230 = por %p228, %p229
    %p231 = scmp.ne.s32.totalorder %s223, %s225
    %p232 = scmp.eq.s32.totalorder %s26, 1
    %p233 = por %p231, %p232
    %p234 = scmp.ne.s32.totalorder %s225, %s226
    %p235 = scmp.eq.s32.totalorder %s26, 0
    %p236 = por %p234, %p235
    %p237 = scmp.ne.s32.totalorder %s225, %s226
    %p238 = scmp.eq.s32.totalorder %s27, 1
    %p239 = por %p237, %p238
    %p241 = scmp.ne.s32.totalorder %s226, %s240
    %p242 = scmp.eq.s32.totalorder %s27, 0
    %p243 = por %p241, %p242
    %s245 = sadd.s32 %s244, 1
    %p248 = scmp.eq.s32.totalorder %s21, 1
    %p249 = scmp.ne.s32.totalorder %s244, %s246
    %p250 = scmp.eq.s32.totalorder %s21, 0
    %p251 = por %p249, %p250
    %p252 = scmp.ne.s32.totalorder %s244, %s246
    %p253 = scmp.eq.s32.totalorder %s26, 1
    %p254 = por %p252, %p253
    %p255 = scmp.ne.s32.totalorder %s246, %s247
    %p256 = scmp.eq.s32.totalorder %s26, 0
    %p257 = por %p255, %p256
    %p258 = scmp.ne.s32.totalorder %s246, %s247
    %p259 = scmp.eq.s32.totalorder %s27, 1
    %p260 = por %p258, %p259
    %p262 = scmp.ne.s32.totalorder %s247, %s261
    %p263 = scmp.eq.s32.totalorder %s27, 0
    %p264 = por %p262, %p263
    %s266 = sadd.s32 %s265, 1
    %p269 = scmp.eq.s32.totalorder %s21, 1
    %p270 = scmp.ne.s32.totalorder %s265, %s267
    %p271 = scmp.eq.s32.totalorder %s21, 0
    %p272 = por %p270, %p271
    %p273 = scmp.ne.s32.totalorder %s265, %s267
    %p274 = scmp.eq.s32.totalorder %s26, 1
    %p275 = por %p273, %p274
    %p276 = scmp.ne.s32.totalorder %s267, %s268
    %p277 = scmp.eq.s32.totalorder %s26, 0
    %p278 = por %p276, %p277
    %p279 = scmp.ne.s32.totalorder %s267, %s268
    %p280 = scmp.eq.s32.totalorder %s27, 1
    %p281 = por %p279, %p280
    %p283 = scmp.ne.s32.totalorder %s268, %s282
    %p284 = scmp.eq.s32.totalorder %s27, 0
    %p285 = por %p283, %p284
    %s287 = sadd.s32 %s286, 1
    %p290 = scmp.eq.s32.totalorder %s21, 1
    %p291 = scmp.ne.s32.totalorder %s286, %s288
    %p292 = scmp.eq.s32.totalorder %s21, 0
    %p293 = por %p291, %p292
    %p294 = scmp.ne.s32.totalorder %s286, %s288
    %p295 = scmp.eq.s32.totalorder %s26, 1
    %p296 = por %p294, %p295
    %p297 = scmp.ne.s32.totalorder %s288, %s289
    %p298 = scmp.eq.s32.totalorder %s26, 0
    %p299 = por %p297, %p298
    %p300 = scmp.ne.s32.totalorder %s288, %s289
    %p301 = scmp.eq.s32.totalorder %s27, 1
    %p302 = por %p300, %p301
    %p304 = scmp.ne.s32.totalorder %s289, %s303
    %p305 = scmp.eq.s32.totalorder %s27, 0
    %p306 = por %p304, %p305
    %s308 = sadd.s32 %s307, 1
    %p311 = scmp.eq.s32.totalorder %s21, 1
    %p312 = scmp.ne.s32.totalorder %s307, %s309
    %p313 = scmp.eq.s32.totalorder %s21, 0
    %p314 = por %p312, %p313
    %p315 = scmp.ne.s32.totalorder %s307, %s309
    %p316 = scmp.eq.s32.totalorder %s26, 1
    %p317 = por %p315, %p316
    %p318 = scmp.ne.s32.totalorder %s309, %s310
    %p319 = scmp.eq.s32.totalorder %s26, 0
    %p320 = por %p318, %p319
    %p321 = scmp.ne.s32.totalorder %s309, %s310
    %p322 = scmp.eq.s32.totalorder %s27, 1
    %p323 = por %p321, %p322
    %p325 = scmp.ne.s32.totalorder %s310, %s324
    %p326 = scmp.eq.s32.totalorder %s27, 0
    %p327 = por %p325, %p326
    %s329 = sadd.s32 %s328, 1
    %p332 = scmp.eq.s32.totalorder %s21, 1
    %p333 = scmp.ne.s32.totalorder %s328, %s330
    %p334 = scmp.eq.s32.totalorder %s21, 0
    %p335 = por %p333, %p334
    %p336 = scmp.ne.s32.totalorder %s328, %s330
    %p337 = scmp.eq.s32.totalorder %s26, 1
    %p338 = por %p336, %p337
    %p339 = scmp.ne.s32.totalorder %s330, %s331
    %p340 = scmp.eq.s32.totalorder %s26, 0
    %p341 = por %p339, %p340
    %p342 = scmp.ne.s32.totalorder %s330, %s331
    %p343 = scmp.eq.s32.totalorder %s27, 1
    %p344 = por %p342, %p343
    %p346 = scmp.ne.s32.totalorder %s331, %s345
    %p347 = scmp.eq.s32.totalorder %s27, 0
    %p348 = por %p346, %p347
    %s349 = ssub.s32 %s21, %s28
    %p350 = scmp.eq.s32.totalorder %s349, 0
    %s352 = sadd.s32 %s351, 1
    %s353 = scalar_select %p350, %s351, %s352
    %p356 = pneg %p350
    %p357 = scmp.eq.s32.totalorder %s21, 1
    %p358 = por %p356, %p357
    %p359 = scmp.ne.s32.totalorder %s351, %s354
    %p360 = scmp.eq.s32.totalorder %s21, 0
    %p361 = por %p359, %p360
    %p362 = scmp.ne.s32.totalorder %s351, %s354
    %p363 = scmp.eq.s32.totalorder %s26, 1
    %p364 = por %p362, %p363
    %p365 = scmp.ne.s32.totalorder %s354, %s355
    %p366 = scmp.eq.s32.totalorder %s26, 0
    %p367 = por %p365, %p366
    %p368 = scmp.ne.s32.totalorder %s354, %s355
    %p369 = scmp.eq.s32.totalorder %s27, 1
    %p370 = por %p368, %p369
    %p372 = scmp.ne.s32.totalorder %s355, %s371
    %p373 = scmp.eq.s32.totalorder %s27, 0
    %p374 = por %p372, %p373
    %p375 = scmp.le.s32.totalorder 1, %s21
    %p376 = scmp.lt.s32.totalorder %s21, 3
    %p377 = pnand %p375, %p376
    %p378 = pneg %p377
    // Predicated region
    $region9: #{normalized_unet_forward.1} parent=5 // pred_check
      _
    $region10: #{normalized_unet_forward.1} parent=5 // pred_check_branch
      %380 = sbr.rel (%p377) target = $region12
    $region11: #{normalized_unet_forward.1} parent=5 // pred_region
      %s381 = ssub.s32 %s21, 1
      // Predicated region
      $region13: #{normalized_unet_forward.1} parent=11 // pred_check
        %p382 = pneg %p68
      $region14: #{normalized_unet_forward.1} parent=11 // pred_check_branch
        %384 = sbr.rel (%p382) target = $region16
      $region15: #{normalized_unet_forward.1} parent=11 // pred_region
        _
      $region16: #{normalized_unet_forward.1} parent=11 // pred_fallthru
        _
      // Predicated region
      $region17: #{normalized_unet_forward.1} parent=11 // pred_check
        %p385 = pneg %p89
      $region18: #{normalized_unet_forward.1} parent=11 // pred_check_branch
        %387 = sbr.rel (%p385) target = $region20
      $region19: #{normalized_unet_forward.1} parent=11 // pred_region
        _
      $region20: #{normalized_unet_forward.1} parent=11 // pred_fallthru
        _
      // Predicated region
      $region21: #{normalized_unet_forward.1} parent=11 // pred_check
        %p388 = pneg %p110
      $region22: #{normalized_unet_forward.1} parent=11 // pred_check_branch
        %390 = sbr.rel (%p388) target = $region24
      $region23: #{normalized_unet_forward.1} parent=11 // pred_region
        _
      $region24: #{normalized_unet_forward.1} parent=11 // pred_fallthru
        _
      // Predicated region
      $region25: #{normalized_unet_forward.1} parent=11 // pred_check
        %p391 = pneg %p131
      $region26: #{normalized_unet_forward.1} parent=11 // pred_check_branch
        %393 = sbr.rel (%p391) target = $region28
      $region27: #{normalized_unet_forward.1} parent=11 // pred_region
        _
      $region28: #{normalized_unet_forward.1} parent=11 // pred_fallthru
        _
      // Predicated region
      $region29: #{normalized_unet_forward.1} parent=11 // pred_check
        %p394 = pneg %p152
      $region30: #{normalized_unet_forward.1} parent=11 // pred_check_branch
        %396 = sbr.rel (%p394) target = $region32
      $region31: #{normalized_unet_forward.1} parent=11 // pred_region
        _
      $region32: #{normalized_unet_forward.1} parent=11 // pred_fallthru
        _
      // Predicated region
      $region33: #{normalized_unet_forward.1} parent=11 // pred_check
        %p397 = pneg %p173
      $region34: #{normalized_unet_forward.1} parent=11 // pred_check_branch
        %399 = sbr.rel (%p397) target = $region36
      $region35: #{normalized_unet_forward.1} parent=11 // pred_region
        _
      $region36: #{normalized_unet_forward.1} parent=11 // pred_fallthru
        _
      // Predicated region
      $region37: #{normalized_unet_forward.1} parent=11 // pred_check
        %p400 = pneg %p194
      $region38: #{normalized_unet_forward.1} parent=11 // pred_check_branch
        %402 = sbr.rel (%p400) target = $region40
      $region39: #{normalized_unet_forward.1} parent=11 // pred_region
        _
      $region40: #{normalized_unet_forward.1} parent=11 // pred_fallthru
        _
      // Predicated region
      $region41: #{normalized_unet_forward.1} parent=11 // pred_check
        %p403 = pneg %p215
      $region42: #{normalized_unet_forward.1} parent=11 // pred_check_branch
        %405 = sbr.rel (%p403) target = $region44
      $region43: #{normalized_unet_forward.1} parent=11 // pred_region
        _
      $region44: #{normalized_unet_forward.1} parent=11 // pred_fallthru
        _
      // Predicated region
      $region45: #{normalized_unet_forward.1} parent=11 // pred_check
        %p406 = pneg %p236
      $region46: #{normalized_unet_forward.1} parent=11 // pred_check_branch
        %408 = sbr.rel (%p406) target = $region48
      $region47: #{normalized_unet_forward.1} parent=11 // pred_region
        _
      $region48: #{normalized_unet_forward.1} parent=11 // pred_fallthru
        _
      // Predicated region
      $region49: #{normalized_unet_forward.1} parent=11 // pred_check
        %p409 = pneg %p257
      $region50: #{normalized_unet_forward.1} parent=11 // pred_check_branch
        %411 = sbr.rel (%p409) target = $region52
      $region51: #{normalized_unet_forward.1} parent=11 // pred_region
        _
      $region52: #{normalized_unet_forward.1} parent=11 // pred_fallthru
        _
      // Predicated region
      $region53: #{normalized_unet_forward.1} parent=11 // pred_check
        %p412 = pneg %p278
      $region54: #{normalized_unet_forward.1} parent=11 // pred_check_branch
        %414 = sbr.rel (%p412) target = $region56
      $region55: #{normalized_unet_forward.1} parent=11 // pred_region
        _
      $region56: #{normalized_unet_forward.1} parent=11 // pred_fallthru
        _
      // Predicated region
      $region57: #{normalized_unet_forward.1} parent=11 // pred_check
        %p415 = pneg %p299
      $region58: #{normalized_unet_forward.1} parent=11 // pred_check_branch
        %417 = sbr.rel (%p415) target = $region60
      $region59: #{normalized_unet_forward.1} parent=11 // pred_region
        _
      $region60: #{normalized_unet_forward.1} parent=11 // pred_fallthru
        _
      // Predicated region
      $region61: #{normalized_unet_forward.1} parent=11 // pred_check
        %p418 = pneg %p320
      $region62: #{normalized_unet_forward.1} parent=11 // pred_check_branch
        %420 = sbr.rel (%p418) target = $region64
      $region63: #{normalized_unet_forward.1} parent=11 // pred_region
        _
      $region64: #{normalized_unet_forward.1} parent=11 // pred_fallthru
        _
      // Predicated region
      $region65: #{normalized_unet_forward.1} parent=11 // pred_check
        %p421 = pneg %p341
      $region66: #{normalized_unet_forward.1} parent=11 // pred_check_branch
        %423 = sbr.rel (%p421) target = $region68
      $region67: #{normalized_unet_forward.1} parent=11 // pred_region
        _
      $region68: #{normalized_unet_forward.1} parent=11 // pred_fallthru
        _
    $region12: #{normalized_unet_forward.1} parent=5 // pred_fallthru
      _
    %p424 = scmp.lt.s32.totalorder %s21, 2
    // Predicated region
    $region69: #{normalized_unet_forward.1} parent=5 // pred_check
      %p425 = pneg %p424
    $region70: #{normalized_unet_forward.1} parent=5 // pred_check_branch
      %427 = sbr.rel (%p425) target = $region72
    $region71: #{normalized_unet_forward.1} parent=5 // pred_region
      // Predicated region
      $region73: #{normalized_unet_forward.1} parent=71 // pred_check
        %p428 = pneg %p41
      $region74: #{normalized_unet_forward.1} parent=71 // pred_check_branch
        %430 = sbr.rel (%p428) target = $region76
      $region75: #{normalized_unet_forward.1} parent=71 // pred_region
        %p431 = scmp.lt.s32.totalorder %s21, 1
        %s432 = scalar_select %p431, %s21, 1
        %s433 = smul.addr %s432, 2
        %s434 = smul.addr %s433, 4
        %s435 = scalar_lea.vmem %s0, %s434
      $region76: #{normalized_unet_forward.1} parent=71 // pred_fallthru
        _
    $region72: #{normalized_unet_forward.1} parent=5 // pred_fallthru
      _
    %p436 = scmp.le.s32.totalorder 1, %s21
    %p437 = scmp.lt.s32.totalorder %s21, 3
    %p438 = pnand %p436, %p437
    %p439 = pneg %p438
    // Predicated region
    $region77: #{normalized_unet_forward.1} parent=5 // pred_check
      _
    $region78: #{normalized_unet_forward.1} parent=5 // pred_check_branch
      %441 = sbr.rel (%p438) target = $region80
    $region79: #{normalized_unet_forward.1} parent=5 // pred_region
      %s442 = ssub.s32 %s21, 1
      %p443 = scmp.lt.s32.totalorder %s26, 1
      %s444 = scalar_select %p443, %s26, 1
      %s445 = smul.addr %s444, 2
      %s446 = smul.addr %s445, 4
      %s447 = scalar_lea.vmem %s0, %s446
      %p448 = pneg %p47
      %p449 = pneg %p44
      %p450 = pneg %p68
      %p451 = pneg %p65
      %p452 = pneg %p89
      %p453 = pneg %p86
      %p454 = pneg %p110
      %p455 = pneg %p107
      %p456 = pneg %p131
      %p457 = pneg %p128
      %p458 = pneg %p152
      %p459 = pneg %p149
      %p460 = pneg %p173
      %p461 = pneg %p170
      %p462 = pneg %p194
      %p463 = pneg %p191
      %p464 = pneg %p215
      %p465 = pneg %p212
      %p466 = pneg %p236
      %p467 = pneg %p233
      %p468 = pneg %p257
      %p469 = pneg %p254
      %p470 = pneg %p278
      %p471 = pneg %p275
      %p472 = pneg %p299
      %p473 = pneg %p296
      %p474 = pneg %p320
      %p475 = pneg %p317
      %p476 = pneg %p341
      %p477 = pneg %p338
      %p478 = pneg %p367
      %p479 = pneg %p364
      %p480 = scmp.lt.s32.totalorder %s26, 1
      %s481 = scalar_select %p480, %s26, 1
      %s482 = smul.addr %s481, 2
      %s483 = smul.addr %s482, 4
      %s484 = scalar_lea.vmem %s15, %s483
      %p485 = scmp.lt.s32.totalorder %s26, 1
      %s486 = scalar_select %p485, %s26, 1
      %s487 = smul.addr %s486, 2
      %s488 = smul.addr %s487, 4
      %s489 = scalar_lea.vmem %s0, %s488
      %p490 = scmp.lt.s32.totalorder %s26, 1
      %s491 = scalar_select %p490, %s26, 1
      %s492 = smul.addr %s491, 2
      %s493 = smul.addr %s492, 4
      %s494 = scalar_lea.vmem %s15, %s493
      %v495 = vld [vmem:[%s489] sm:$0x77]
      %v496 = vld [vmem:[%s1] sm:$0x7]
      %498 = vset.pattern.permute.xlu0 0
      %499 = vperm.xlu0 %498, %v496
      %v500 = vpop.permute.xlu0 %499
      %v503 = vunpack.c.l.s4 839922192
      %v504 = vunpack.c.0.s8 %v503
      %v505 = vlaneseq
      %v506 = vshrl.u32 %v505, 7
      %v507 = vsub.s32 %v504, %v506
      %v508 = vrot.slane %v500, %v507
      %v510 = vsub.f32 %v495, %v508
      %v511 = vld [vmem:[%s3] sm:$0x7]
      %513 = vset.pattern.permute.xlu0 0
      %514 = vperm.xlu0 %513, %v511
      %v515 = vpop.permute.xlu0 %514
      %v517 = vunpack.c.l.s4 839922192
      %v518 = vunpack.c.0.s8 %v517
      %v519 = vlaneseq
      %v520 = vshrl.u32 %v519, 7
      %v521 = vsub.s32 %v518, %v520
      %v522 = vrot.slane %v515, %v521
      %v524 = vmul.f32 %v510, %v522
      %v526 = vcombine.high %v524, %v524
      %527 = vrot.lane.b32.xlu0 %v524, 17
      %v528 = vpop.permute.xlu0 %527
      %529 = vrot.lane.b32.xlu0 %v526, 17
      %v530 = vpop.permute.xlu0 %529
      %vm531 = vcmask 138240
      %v532 = vsel %vm531, %v528, %v530
      %v535 = vsel %vm531, 0.0, %v528
      %v536 = vld [vmem:[%s12] ss:$8 sm:$0x3]
      %v538 = vlaneseq
      %v539 = vshrl.u32 %v538, 7
      %v540 = vsub.s32 0, %v539
      %v541 = vrot.slane %v536, %v540
      %v542 = vlaneseq
      %v543 = vshrl.u32 %v542, 7
      %v544 = vsub.s32 1, %v543
      %v545 = vrot.slane %v536, %v544
      %v548 = vmul.f32 %v535, %v541
      %v549 = vmul.f32 %v532, %v545
      %v550 = vld [vmem:[%s4] sm:$0xff]
      %551 = vrot.lane.b32.xlu0 %v524, 16
      %v552 = vpop.permute.xlu0 %551
      %553 = vrot.lane.b32.xlu0 %v526, 16
      %v554 = vpop.permute.xlu0 %553
      %vm555 = vcmask 130048
      %v556 = vsel %vm555, %v552, %v554
      %v559 = vsel %vm555, 0.0, %v552
      %s560 = scalar_lea.vmem %s12, 1
      %v561 = vld [vmem:[%s560] ss:$8 sm:$0x3]
      %v563 = vlaneseq
      %v564 = vshrl.u32 %v563, 7
      %v565 = vsub.s32 0, %v564
      %v566 = vrot.slane %v561, %v565
      %v567 = vlaneseq
      %v568 = vshrl.u32 %v567, 7
      %v569 = vsub.s32 1, %v568
      %v570 = vrot.slane %v561, %v569
      %v573 = vmul.f32 %v559, %v566
      %v574 = vmul.f32 %v556, %v570
      %s575 = scalar_lea.vmem %s4, 8
      %v576 = vld [vmem:[%s575] sm:$0xff]
      %vm577 = vcmask 23552
      %v579 = vsel %vm577, %v576, 0
      %vm581 = vcmask 1042432
      %v583 = vsel %vm581, %v573, 0
      %v586 = vsel %vm581, %v574, 0
      %588 = vmatprep.subr.mxu0 %v586
      %589 = vmatpush1.msra.mxu0 %v583
      %590 = vmatprep.subr.mxu0 0.0
      %591 = vmatpush1.msra.mxu0 0.0
      %592 = vmatprep.subr.mxu0 0.0
      %593 = vmatpush1.msra.mxu0 0.0
      %594 = vmatprep.subr.mxu0 0.0
      %595 = vmatpush1.msra.mxu0 0.0
      %596 = vmatprep.subr.mxu0 0.0
      %597 = vmatpush1.msra.mxu0 0.0
      %598 = vmatprep.subr.mxu0 0.0
      %599 = vmatpush1.msra.mxu0 0.0
      %600 = vmatprep.subr.mxu0 0.0
      %601 = vmatpush1.msra.mxu0 0.0
      %602 = vmatprep.subr.mxu0 0.0
      %603 = vmatpush1.msra.mxu0 0.0
      %604 = vmatprep.subr.mxu0 0.0
      %605 = vmatpush1.msra.mxu0 0.0
      %606 = vmatprep.subr.mxu0 0.0
      %607 = vmatpush1.msra.mxu0 0.0
      %608 = vmatprep.subr.mxu0 0.0
      %609 = vmatpush1.msra.mxu0 0.0
      %610 = vmatprep.subr.mxu0 0.0
      %611 = vmatpush1.msra.mxu0 0.0
      %612 = vmatprep.subr.mxu0 0.0
      %613 = vmatpush1.msra.mxu0 0.0
      %614 = vmatprep.subr.mxu0 0.0
      %615 = vmatpush1.msra.mxu0 0.0
      %616 = vmatprep.subr.mxu0 0.0
      %617 = vmatpush1.msra.mxu0 0.0
      %618 = vmatprep.subr.mxu0 0.0
      %619 = vmatpush1.msra.mxu0 0.0
      %620 = vmatprep.subr.mxu0 0.0
      %621 = vmatpush1.msra.mxu0 0.0
      %622 = vmatprep.subr.mxu0 0.0
      %623 = vmatpush1.msra.mxu0 0.0
      %624 = vmatprep.subr.mxu0 0.0
      %625 = vmatpush1.msra.mxu0 0.0
      %626 = vmatprep.subr.mxu0 0.0
      %627 = vmatpush1.msra.mxu0 0.0
      %628 = vmatprep.subr.mxu0 0.0
      %629 = vmatpush1.msra.mxu0 0.0
      %630 = vmatprep.subr.mxu0 0.0
      %631 = vmatpush1.msra.mxu0 0.0
      %632 = vmatprep.subr.mxu0 0.0
      %633 = vmatpush1.msra.mxu0 0.0
      %634 = vmatprep.subr.mxu0 0.0
      %635 = vmatpush1.msra.mxu0 0.0
      %636 = vmatprep.subr.mxu0 0.0
      %637 = vmatpush1.msra.mxu0 0.0
      %638 = vmatprep.subr.mxu0 0.0
      %639 = vmatpush1.msra.mxu0 0.0
      %640 = vmatprep.subr.mxu0 0.0
      %641 = vmatpush1.msra.mxu0 0.0
      %642 = vmatprep.subr.mxu0 0.0
      %643 = vmatpush1.msra.mxu0 0.0
      %644 = vmatprep.subr.mxu0 0.0
      %645 = vmatpush1.msra.mxu0 0.0
      %646 = vmatprep.subr.mxu0 0.0
      %647 = vmatpush1.msra.mxu0 0.0
      %648 = vmatprep.subr.mxu0 0.0
      %649 = vmatpush1.msra.mxu0 0.0
      %650 = vmatprep.subr.mxu0 0.0
      %651 = vmatpush1.msra.mxu0 0.0
      %652 = vmatprep.mubr.f32.mxu0 0.0
      %653 = vmatmul.mubr.f32.gmra.mrb[0].mxu0 %v579
      %v654 = vpop.f32.mrb[0].mxu0
      %v655 = vadd.f32 0.0, %v654
      %v656 = vpop.f32.mrb[0].mxu0
      %v657 = vadd.f32 0.0, %v656
      %658 = vdwg.mxu0
      %v660 = vsel %vm577, %v550, 0
      %v663 = vsel %vm581, %v548, 0
      %v666 = vsel %vm581, %v549, 0
      %668 = vmatprep.subr.mxu0 %v666
      %669 = vmatpush1.msra.mxu0 %v663
      %670 = vmatprep.subr.mxu0 0.0
      %671 = vmatpush1.msra.mxu0 0.0
      %672 = vmatprep.subr.mxu0 0.0
      %673 = vmatpush1.msra.mxu0 0.0
      %674 = vmatprep.subr.mxu0 0.0
      %675 = vmatpush1.msra.mxu0 0.0
      %676 = vmatprep.subr.mxu0 0.0
      %677 = vmatpush1.msra.mxu0 0.0
      %678 = vmatprep.subr.mxu0 0.0
      %679 = vmatpush1.msra.mxu0 0.0
      %680 = vmatprep.subr.mxu0 0.0
      %681 = vmatpush1.msra.mxu0 0.0
      %682 = vmatprep.subr.mxu0 0.0
      %683 = vmatpush1.msra.mxu0 0.0
      %684 = vmatprep.subr.mxu0 0.0
      %685 = vmatpush1.msra.mxu0 0.0
      %686 = vmatprep.subr.mxu0 0.0
      %687 = vmatpush1.msra.mxu0 0.0
      %688 = vmatprep.subr.mxu0 0.0
      %689 = vmatpush1.msra.mxu0 0.0
      %690 = vmatprep.subr.mxu0 0.0
      %691 = vmatpush1.msra.mxu0 0.0
      %692 = vmatprep.subr.mxu0 0.0
      %693 = vmatpush1.msra.mxu0 0.0
      %694 = vmatprep.subr.mxu0 0.0
      %695 = vmatpush1.msra.mxu0 0.0
      %696 = vmatprep.subr.mxu0 0.0
      %697 = vmatpush1.msra.mxu0 0.0
      %698 = vmatprep.subr.mxu0 0.0
      %699 = vmatpush1.msra.mxu0 0.0
      %700 = vmatprep.subr.mxu0 0.0
      %701 = vmatpush1.msra.mxu0 0.0
      %702 = vmatprep.subr.mxu0 0.0
      %703 = vmatpush1.msra.mxu0 0.0
      %704 = vmatprep.subr.mxu0 0.0
      %705 = vmatpush1.msra.mxu0 0.0
      %706 = vmatprep.subr.mxu0 0.0
      %707 = vmatpush1.msra.mxu0 0.0
      %708 = vmatprep.subr.mxu0 0.0
      %709 = vmatpush1.msra.mxu0 0.0
      %710 = vmatprep.subr.mxu0 0.0
      %711 = vmatpush1.msra.mxu0 0.0
      %712 = vmatprep.subr.mxu0 0.0
      %713 = vmatpush1.msra.mxu0 0.0
      %714 = vmatprep.subr.mxu0 0.0
      %715 = vmatpush1.msra.mxu0 0.0
      %716 = vmatprep.subr.mxu0 0.0
      %717 = vmatpush1.msra.mxu0 0.0
      %718 = vmatprep.subr.mxu0 0.0
      %719 = vmatpush1.msra.mxu0 0.0
      %720 = vmatprep.subr.mxu0 0.0
      %721 = vmatpush1.msra.mxu0 0.0
      %722 = vmatprep.subr.mxu0 0.0
      %723 = vmatpush1.msra.mxu0 0.0
      %724 = vmatprep.subr.mxu0 0.0
      %725 = vmatpush1.msra.mxu0 0.0
      %726 = vmatprep.subr.mxu0 0.0
      %727 = vmatpush1.msra.mxu0 0.0
      %728 = vmatprep.subr.mxu0 0.0
      %729 = vmatpush1.msra.mxu0 0.0
      %730 = vmatprep.subr.mxu0 0.0
      %731 = vmatpush1.msra.mxu0 0.0
      %732 = vmatprep.mubr.f32.mxu0 0.0
      %733 = vmatmul.mubr.f32.gmra.mrb[0].mxu0 %v660
      %v734 = vpop.f32.mrb[0].mxu0
      %v735 = vadd.f32 %v655, %v734
      %v736 = vpop.f32.mrb[0].mxu0
      %v737 = vadd.f32 %v657, %v736
      %738 = vdwg.mxu0
      %739 = vrot.lane.b32.xlu0 %v524, 15
      %v740 = vpop.permute.xlu0 %739
      %741 = vrot.lane.b32.xlu0 %v526, 15
      %v742 = vpop.permute.xlu0 %741
      %vm743 = vcmask 121856
      %v744 = vsel %vm743, %v740, %v742
      %v747 = vsel %vm743, 0.0, %v740
      %s748 = scalar_lea.vmem %s12, 2
      %v749 = vld [vmem:[%s748] ss:$8 sm:$0x3]
      %v751 = vlaneseq
      %v752 = vshrl.u32 %v751, 7
      %v753 = vsub.s32 0, %v752
      %v754 = vrot.slane %v749, %v753
      %v755 = vlaneseq
      %v756 = vshrl.u32 %v755, 7
      %v757 = vsub.s32 1, %v756
      %v758 = vrot.slane %v749, %v757
      %v761 = vmul.f32 %v747, %v754
      %v762 = vmul.f32 %v744, %v758
      %s763 = scalar_lea.vmem %s4, 16
      %v764 = vld [vmem:[%s763] sm:$0xff]
      %v766 = vsel %vm577, %v764, 0
      %v769 = vsel %vm581, %v761, 0
      %v772 = vsel %vm581, %v762, 0
      %774 = vmatprep.subr.mxu0 %v772
      %775 = vmatpush1.msra.mxu0 %v769
      %776 = vmatprep.subr.mxu0 0.0
      %777 = vmatpush1.msra.mxu0 0.0
      %778 = vmatprep.subr.mxu0 0.0
      %779 = vmatpush1.msra.mxu0 0.0
      %780 = vmatprep.subr.mxu0 0.0
      %781 = vmatpush1.msra.mxu0 0.0
      %782 = vmatprep.subr.mxu0 0.0
      %783 = vmatpush1.msra.mxu0 0.0
      %784 = vmatprep.subr.mxu0 0.0
      %785 = vmatpush1.msra.mxu0 0.0
      %786 = vmatprep.subr.mxu0 0.0
      %787 = vmatpush1.msra.mxu0 0.0
      %788 = vmatprep.subr.mxu0 0.0
      %789 = vmatpush1.msra.mxu0 0.0
      %790 = vmatprep.subr.mxu0 0.0
      %791 = vmatpush1.msra.mxu0 0.0
      %792 = vmatprep.subr.mxu0 0.0
      %793 = vmatpush1.msra.mxu0 0.0
      %794 = vmatprep.subr.mxu0 0.0
      %795 = vmatpush1.msra.mxu0 0.0
      %796 = vmatprep.subr.mxu0 0.0
      %797 = vmatpush1.msra.mxu0 0.0
      %798 = vmatprep.subr.mxu0 0.0
      %799 = vmatpush1.msra.mxu0 0.0
      %800 = vmatprep.subr.mxu0 0.0
      %801 = vmatpush1.msra.mxu0 0.0
      %802 = vmatprep.subr.mxu0 0.0
      %803 = vmatpush1.msra.mxu0 0.0
      %804 = vmatprep.subr.mxu0 0.0
      %805 = vmatpush1.msra.mxu0 0.0
      %806 = vmatprep.subr.mxu0 0.0
      %807 = vmatpush1.msra.mxu0 0.0
      %808 = vmatprep.subr.mxu0 0.0
      %809 = vmatpush1.msra.mxu0 0.0
      %810 = vmatprep.subr.mxu0 0.0
      %811 = vmatpush1.msra.mxu0 0.0
      %812 = vmatprep.subr.mxu0 0.0
      %813 = vmatpush1.msra.mxu0 0.0
      %814 = vmatprep.subr.mxu0 0.0
      %815 = vmatpush1.msra.mxu0 0.0
      %816 = vmatprep.subr.mxu0 0.0
      %817 = vmatpush1.msra.mxu0 0.0
      %818 = vmatprep.subr.mxu0 0.0
      %819 = vmatpush1.msra.mxu0 0.0
      %820 = vmatprep.subr.mxu0 0.0
      %821 = vmatpush1.msra.mxu0 0.0
      %822 = vmatprep.subr.mxu0 0.0
      %823 = vmatpush1.msra.mxu0 0.0
      %824 = vmatprep.subr.mxu0 0.0
      %825 = vmatpush1.msra.mxu0 0.0
      %826 = vmatprep.subr.mxu0 0.0
      %827 = vmatpush1.msra.mxu0 0.0
      %828 = vmatprep.subr.mxu0 0.0
      %829 = vmatpush1.msra.mxu0 0.0
      %830 = vmatprep.subr.mxu0 0.0
      %831 = vmatpush1.msra.mxu0 0.0
      %832 = vmatprep.subr.mxu0 0.0
      %833 = vmatpush1.msra.mxu0 0.0
      %834 = vmatprep.subr.mxu0 0.0
      %835 = vmatpush1.msra.mxu0 0.0
      %836 = vmatprep.subr.mxu0 0.0
      %837 = vmatpush1.msra.mxu0 0.0
      %838 = vmatprep.mubr.f32.mxu0 0.0
      %839 = vmatmul.mubr.f32.gmra.mrb[0].mxu0 %v766
      %v840 = vpop.f32.mrb[0].mxu0
      %v841 = vadd.f32 0.0, %v840
      %v842 = vpop.f32.mrb[0].mxu0
      %v843 = vadd.f32 0.0, %v842
      %844 = vdwg.mxu0
      %v845 = vadd.f32 %v735, %v841
      %v846 = vadd.f32 %v737, %v843
      %847 = vrot.lane.b32.xlu0 %v524, 1
      %v848 = vpop.permute.xlu0 %847
      %849 = vrot.lane.b32.xlu0 %v526, 1
      %v850 = vpop.permute.xlu0 %849
      %vm851 = vcmask 7168
      %v852 = vsel %vm851, %v848, %v850
      %v855 = vsel %vm851, 0.0, %v848
      %s856 = scalar_lea.vmem %s12, 3
      %v857 = vld [vmem:[%s856] ss:$8 sm:$0x3]
      %v859 = vlaneseq
      %v860 = vshrl.u32 %v859, 7
      %v861 = vsub.s32 0, %v860
      %v862 = vrot.slane %v857, %v861
      %v863 = vlaneseq
      %v864 = vshrl.u32 %v863, 7
      %v865 = vsub.s32 1, %v864
      %v866 = vrot.slane %v857, %v865
      %v869 = vmul.f32 %v855, %v862
      %v870 = vmul.f32 %v852, %v866
      %s871 = scalar_lea.vmem %s4, 24
      %v872 = vld [vmem:[%s871] sm:$0xff]
      %v874 = vsel %vm577, %v872, 0
      %v877 = vsel %vm581, %v869, 0
      %v880 = vsel %vm581, %v870, 0
      %882 = vmatprep.subr.mxu0 %v880
      %883 = vmatpush1.msra.mxu0 %v877
      %884 = vmatprep.subr.mxu0 0.0
      %885 = vmatpush1.msra.mxu0 0.0
      %886 = vmatprep.subr.mxu0 0.0
      %887 = vmatpush1.msra.mxu0 0.0
      %888 = vmatprep.subr.mxu0 0.0
      %889 = vmatpush1.msra.mxu0 0.0
      %890 = vmatprep.subr.mxu0 0.0
      %891 = vmatpush1.msra.mxu0 0.0
      %892 = vmatprep.subr.mxu0 0.0
      %893 = vmatpush1.msra.mxu0 0.0
      %894 = vmatprep.subr.mxu0 0.0
      %895 = vmatpush1.msra.mxu0 0.0
      %896 = vmatprep.subr.mxu0 0.0
      %897 = vmatpush1.msra.mxu0 0.0
      %898 = vmatprep.subr.mxu0 0.0
      %899 = vmatpush1.msra.mxu0 0.0
      %900 = vmatprep.subr.mxu0 0.0
      %901 = vmatpush1.msra.mxu0 0.0
      %902 = vmatprep.subr.mxu0 0.0
      %903 = vmatpush1.msra.mxu0 0.0
      %904 = vmatprep.subr.mxu0 0.0
      %905 = vmatpush1.msra.mxu0 0.0
      %906 = vmatprep.subr.mxu0 0.0
      %907 = vmatpush1.msra.mxu0 0.0
      %908 = vmatprep.subr.mxu0 0.0
      %909 = vmatpush1.msra.mxu0 0.0
      %910 = vmatprep.subr.mxu0 0.0
      %911 = vmatpush1.msra.mxu0 0.0
      %912 = vmatprep.subr.mxu0 0.0
      %913 = vmatpush1.msra.mxu0 0.0
      %914 = vmatprep.subr.mxu0 0.0
      %915 = vmatpush1.msra.mxu0 0.0
      %916 = vmatprep.subr.mxu0 0.0
      %917 = vmatpush1.msra.mxu0 0.0
      %918 = vmatprep.subr.mxu0 0.0
      %919 = vmatpush1.msra.mxu0 0.0
      %920 = vmatprep.subr.mxu0 0.0
      %921 = vmatpush1.msra.mxu0 0.0
      %922 = vmatprep.subr.mxu0 0.0
      %923 = vmatpush1.msra.mxu0 0.0
      %924 = vmatprep.subr.mxu0 0.0
      %925 = vmatpush1.msra.mxu0 0.0
      %926 = vmatprep.subr.mxu0 0.0
      %927 = vmatpush1.msra.mxu0 0.0
      %928 = vmatprep.subr.mxu0 0.0
      %929 = vmatpush1.msra.mxu0 0.0
      %930 = vmatprep.subr.mxu0 0.0
      %931 = vmatpush1.msra.mxu0 0.0
      %932 = vmatprep.subr.mxu0 0.0
      %933 = vmatpush1.msra.mxu0 0.0
      %934 = vmatprep.subr.mxu0 0.0
      %935 = vmatpush1.msra.mxu0 0.0
      %936 = vmatprep.subr.mxu0 0.0
      %937 = vmatpush1.msra.mxu0 0.0
      %938 = vmatprep.subr.mxu0 0.0
      %939 = vmatpush1.msra.mxu0 0.0
      %940 = vmatprep.subr.mxu0 0.0
      %941 = vmatpush1.msra.mxu0 0.0
      %942 = vmatprep.subr.mxu0 0.0
      %943 = vmatpush1.msra.mxu0 0.0
      %944 = vmatprep.subr.mxu0 0.0
      %945 = vmatpush1.msra.mxu0 0.0
      %946 = vmatprep.mubr.f32.mxu0 0.0
      %947 = vmatmul.mubr.f32.gmra.mrb[0].mxu0 %v874
      %v948 = vpop.f32.mrb[0].mxu0
      %v949 = vadd.f32 0.0, %v948
      %v950 = vpop.f32.mrb[0].mxu0
      %v951 = vadd.f32 0.0, %v950
      %952 = vdwg.mxu0
      %v953 = vadd.f32 %v845, %v949
      %v954 = vadd.f32 %v846, %v951
      %s955 = scalar_lea.vmem %s4, 32
      %v956 = vld [vmem:[%s955] sm:$0xff]
      %v958 = vsel %vm577, %v956, 0
      %v960 = vsel %vm581, %v524, 0
      %v962 = vsel %vm581, %v526, 0
      %964 = vmatprep.subr.mxu0 %v962
      %965 = vmatpush1.msra.mxu0 %v960
      %966 = vmatprep.subr.mxu0 0.0
      %967 = vmatpush1.msra.mxu0 0.0
      %968 = vmatprep.subr.mxu0 0.0
      %969 = vmatpush1.msra.mxu0 0.0
      %970 = vmatprep.subr.mxu0 0.0
      %971 = vmatpush1.msra.mxu0 0.0
      %972 = vmatprep.subr.mxu0 0.0
      %973 = vmatpush1.msra.mxu0 0.0
      %974 = vmatprep.subr.mxu0 0.0
      %975 = vmatpush1.msra.mxu0 0.0
      %976 = vmatprep.subr.mxu0 0.0
      %977 = vmatpush1.msra.mxu0 0.0
      %978 = vmatprep.subr.mxu0 0.0
      %979 = vmatpush1.msra.mxu0 0.0
      %980 = vmatprep.subr.mxu0 0.0
      %981 = vmatpush1.msra.mxu0 0.0
      %982 = vmatprep.subr.mxu0 0.0
      %983 = vmatpush1.msra.mxu0 0.0
      %984 = vmatprep.subr.mxu0 0.0
      %985 = vmatpush1.msra.mxu0 0.0
      %986 = vmatprep.subr.mxu0 0.0
      %987 = vmatpush1.msra.mxu0 0.0
      %988 = vmatprep.subr.mxu0 0.0
      %989 = vmatpush1.msra.mxu0 0.0
      %990 = vmatprep.subr.mxu0 0.0
      %991 = vmatpush1.msra.mxu0 0.0
      %992 = vmatprep.subr.mxu0 0.0
      %993 = vmatpush1.msra.mxu0 0.0
      %994 = vmatprep.subr.mxu0 0.0
      %995 = vmatpush1.msra.mxu0 0.0
      %996 = vmatprep.subr.mxu0 0.0
      %997 = vmatpush1.msra.mxu0 0.0
      %998 = vmatprep.subr.mxu0 0.0
      %999 = vmatpush1.msra.mxu0 0.0
      %1000 = vmatprep.subr.mxu0 0.0
      %1001 = vmatpush1.msra.mxu0 0.0
      %1002 = vmatprep.subr.mxu0 0.0
      %1003 = vmatpush1.msra.mxu0 0.0
      %1004 = vmatprep.subr.mxu0 0.0
      %1005 = vmatpush1.msra.mxu0 0.0
      %1006 = vmatprep.subr.mxu0 0.0
      %1007 = vmatpush1.msra.mxu0 0.0
      %1008 = vmatprep.subr.mxu0 0.0
      %1009 = vmatpush1.msra.mxu0 0.0
      %1010 = vmatprep.subr.mxu0 0.0
      %1011 = vmatpush1.msra.mxu0 0.0
      %1012 = vmatprep.subr.mxu0 0.0
      %1013 = vmatpush1.msra.mxu0 0.0
      %1014 = vmatprep.subr.mxu0 0.0
      %1015 = vmatpush1.msra.mxu0 0.0
      %1016 = vmatprep.subr.mxu0 0.0
      %1017 = vmatpush1.msra.mxu0 0.0
      %1018 = vmatprep.subr.mxu0 0.0
      %1019 = vmatpush1.msra.mxu0 0.0
      %1020 = vmatprep.subr.mxu0 0.0
      %1021 = vmatpush1.msra.mxu0 0.0
      %1022 = vmatprep.subr.mxu0 0.0
      %1023 = vmatpush1.msra.mxu0 0.0
      %1024 = vmatprep.subr.mxu0 0.0
      %1025 = vmatpush1.msra.mxu0 0.0
      %1026 = vmatprep.subr.mxu0 0.0
      %1027 = vmatpush1.msra.mxu0 0.0
      %1028 = vmatprep.mubr.f32.mxu0 0.0
      %1029 = vmatmul.mubr.f32.gmra.mrb[0].mxu0 %v958
      %v1030 = vpop.f32.mrb[0].mxu0
      %v1031 = vadd.f32 0.0, %v1030
      %v1032 = vpop.f32.mrb[0].mxu0
      %v1033 = vadd.f32 0.0, %v1032
      %1034 = vdwg.mxu0
      %v1035 = vadd.f32 %v953, %v1031
      %v1036 = vadd.f32 %v954, %v1033
      %1037 = vrot.lane.b32.xlu0 %v524, 127
      %v1038 = vpop.permute.xlu0 %1037
      %1039 = vrot.lane.b32.xlu0 %v526, 127
      %v1040 = vpop.permute.xlu0 %1039
      %vm1041 = vcmask 1039360
      %v1042 = vsel %vm1041, %v1038, %v1040
      %v1045 = vsel %vm1041, %v1040, 0.0
      %s1046 = scalar_lea.vmem %s12, 5
      %v1047 = vld [vmem:[%s1046] ss:$8 sm:$0x3]
      %v1049 = vlaneseq
      %v1050 = vshrl.u32 %v1049, 7
      %v1051 = vsub.s32 0, %v1050
      %v1052 = vrot.slane %v1047, %v1051
      %v1053 = vlaneseq
      %v1054 = vshrl.u32 %v1053, 7
      %v1055 = vsub.s32 1, %v1054
      %v1056 = vrot.slane %v1047, %v1055
      %v1059 = vmul.f32 %v1042, %v1052
      %v1060 = vmul.f32 %v1045, %v1056
      %s1061 = scalar_lea.vmem %s4, 40
      %v1062 = vld [vmem:[%s1061] sm:$0xff]
      %v1064 = vsel %vm577, %v1062, 0
      %v1067 = vsel %vm581, %v1059, 0
      %v1070 = vsel %vm581, %v1060, 0
      %1072 = vmatprep.subr.mxu0 %v1070
      %1073 = vmatpush1.msra.mxu0 %v1067
      %1074 = vmatprep.subr.mxu0 0.0
      %1075 = vmatpush1.msra.mxu0 0.0
      %1076 = vmatprep.subr.mxu0 0.0
      %1077 = vmatpush1.msra.mxu0 0.0
      %1078 = vmatprep.subr.mxu0 0.0
      %1079 = vmatpush1.msra.mxu0 0.0
      %1080 = vmatprep.subr.mxu0 0.0
      %1081 = vmatpush1.msra.mxu0 0.0
      %1082 = vmatprep.subr.mxu0 0.0
      %1083 = vmatpush1.msra.mxu0 0.0
      %1084 = vmatprep.subr.mxu0 0.0
      %1085 = vmatpush1.msra.mxu0 0.0
      %1086 = vmatprep.subr.mxu0 0.0
      %1087 = vmatpush1.msra.mxu0 0.0
      %1088 = vmatprep.subr.mxu0 0.0
      %1089 = vmatpush1.msra.mxu0 0.0
      %1090 = vmatprep.subr.mxu0 0.0
      %1091 = vmatpush1.msra.mxu0 0.0
      %1092 = vmatprep.subr.mxu0 0.0
      %1093 = vmatpush1.msra.mxu0 0.0
      %1094 = vmatprep.subr.mxu0 0.0
      %1095 = vmatpush1.msra.mxu0 0.0
      %1096 = vmatprep.subr.mxu0 0.0
      %1097 = vmatpush1.msra.mxu0 0.0
      %1098 = vmatprep.subr.mxu0 0.0
      %1099 = vmatpush1.msra.mxu0 0.0
      %1100 = vmatprep.subr.mxu0 0.0
      %1101 = vmatpush1.msra.mxu0 0.0
      %1102 = vmatprep.subr.mxu0 0.0
      %1103 = vmatpush1.msra.mxu0 0.0
      %1104 = vmatprep.subr.mxu0 0.0
      %1105 = vmatpush1.msra.mxu0 0.0
      %1106 = vmatprep.subr.mxu0 0.0
      %1107 = vmatpush1.msra.mxu0 0.0
      %1108 = vmatprep.subr.mxu0 0.0
      %1109 = vmatpush1.msra.mxu0 0.0
      %1110 = vmatprep.subr.mxu0 0.0
      %1111 = vmatpush1.msra.mxu0 0.0
      %1112 = vmatprep.subr.mxu0 0.0
      %1113 = vmatpush1.msra.mxu0 0.0
      %1114 = vmatprep.subr.mxu0 0.0
      %1115 = vmatpush1.msra.mxu0 0.0
      %1116 = vmatprep.subr.mxu0 0.0
      %1117 = vmatpush1.msra.mxu0 0.0
      %1118 = vmatprep.subr.mxu0 0.0
      %1119 = vmatpush1.msra.mxu0 0.0
      %1120 = vmatprep.subr.mxu0 0.0
      %1121 = vmatpush1.msra.mxu0 0.0
      %1122 = vmatprep.subr.mxu0 0.0
      %1123 = vmatpush1.msra.mxu0 0.0
      %1124 = vmatprep.subr.mxu0 0.0
      %1125 = vmatpush1.msra.mxu0 0.0
      %1126 = vmatprep.subr.mxu0 0.0
      %1127 = vmatpush1.msra.mxu0 0.0
      %1128 = vmatprep.subr.mxu0 0.0
      %1129 = vmatpush1.msra.mxu0 0.0
      %1130 = vmatprep.subr.mxu0 0.0
      %1131 = vmatpush1.msra.mxu0 0.0
      %1132 = vmatprep.subr.mxu0 0.0
      %1133 = vmatpush1.msra.mxu0 0.0
      %1134 = vmatprep.subr.mxu0 0.0
      %1135 = vmatpush1.msra.mxu0 0.0
      %1136 = vmatprep.mubr.f32.mxu0 0.0
      %1137 = vmatmul.mubr.f32.gmra.mrb[0].mxu0 %v1064
      %v1138 = vpop.f32.mrb[0].mxu0
      %v1139 = vadd.f32 0.0, %v1138
      %v1140 = vpop.f32.mrb[0].mxu0
      %v1141 = vadd.f32 0.0, %v1140
      %1142 = vdwg.mxu0
      %v1143 = vadd.f32 %v1035, %v1139
      %v1144 = vadd.f32 %v1036, %v1141
      %1145 = vrot.lane.b32.xlu0 %v524, 113
      %v1146 = vpop.permute.xlu0 %1145
      %1147 = vrot.lane.b32.xlu0 %v526, 113
      %v1148 = vpop.permute.xlu0 %1147
      %vm1149 = vcmask 924672
      %v1150 = vsel %vm1149, %v1146, %v1148
      %v1153 = vsel %vm1149, %v1148, 0.0
      %s1154 = scalar_lea.vmem %s12, 6
      %v1155 = vld [vmem:[%s1154] ss:$8 sm:$0x3]
      %v1157 = vlaneseq
      %v1158 = vshrl.u32 %v1157, 7
      %v1159 = vsub.s32 0, %v1158
      %v1160 = vrot.slane %v1155, %v1159
      %v1161 = vlaneseq
      %v1162 = vshrl.u32 %v1161, 7
      %v1163 = vsub.s32 1, %v1162
      %v1164 = vrot.slane %v1155, %v1163
      %v1167 = vmul.f32 %v1150, %v1160
      %v1168 = vmul.f32 %v1153, %v1164
      %s1169 = scalar_lea.vmem %s4, 48
      %v1170 = vld [vmem:[%s1169] sm:$0xff]
      %v1172 = vsel %vm577, %v1170, 0
      %v1175 = vsel %vm581, %v1167, 0
      %v1178 = vsel %vm581, %v1168, 0
      %1180 = vmatprep.subr.mxu0 %v1178
      %1181 = vmatpush1.msra.mxu0 %v1175
      %1182 = vmatprep.subr.mxu0 0.0
      %1183 = vmatpush1.msra.mxu0 0.0
      %1184 = vmatprep.subr.mxu0 0.0
      %1185 = vmatpush1.msra.mxu0 0.0
      %1186 = vmatprep.subr.mxu0 0.0
      %1187 = vmatpush1.msra.mxu0 0.0
      %1188 = vmatprep.subr.mxu0 0.0
      %1189 = vmatpush1.msra.mxu0 0.0
      %1190 = vmatprep.subr.mxu0 0.0
      %1191 = vmatpush1.msra.mxu0 0.0
      %1192 = vmatprep.subr.mxu0 0.0
      %1193 = vmatpush1.msra.mxu0 0.0
      %1194 = vmatprep.subr.mxu0 0.0
      %1195 = vmatpush1.msra.mxu0 0.0
      %1196 = vmatprep.subr.mxu0 0.0
      %1197 = vmatpush1.msra.mxu0 0.0
      %1198 = vmatprep.subr.mxu0 0.0
      %1199 = vmatpush1.msra.mxu0 0.0
      %1200 = vmatprep.subr.mxu0 0.0
      %1201 = vmatpush1.msra.mxu0 0.0
      %1202 = vmatprep.subr.mxu0 0.0
      %1203 = vmatpush1.msra.mxu0 0.0
      %1204 = vmatprep.subr.mxu0 0.0
      %1205 = vmatpush1.msra.mxu0 0.0
      %1206 = vmatprep.subr.mxu0 0.0
      %1207 = vmatpush1.msra.mxu0 0.0
      %1208 = vmatprep.subr.mxu0 0.0
      %1209 = vmatpush1.msra.mxu0 0.0
      %1210 = vmatprep.subr.mxu0 0.0
      %1211 = vmatpush1.msra.mxu0 0.0
      %1212 = vmatprep.subr.mxu0 0.0
      %1213 = vmatpush1.msra.mxu0 0.0
      %1214 = vmatprep.subr.mxu0 0.0
      %1215 = vmatpush1.msra.mxu0 0.0
      %1216 = vmatprep.subr.mxu0 0.0
      %1217 = vmatpush1.msra.mxu0 0.0
      %1218 = vmatprep.subr.mxu0 0.0
      %1219 = vmatpush1.msra.mxu0 0.0
      %1220 = vmatprep.subr.mxu0 0.0
      %1221 = vmatpush1.msra.mxu0 0.0
      %1222 = vmatprep.subr.mxu0 0.0
      %1223 = vmatpush1.msra.mxu0 0.0
      %1224 = vmatprep.subr.mxu0 0.0
      %1225 = vmatpush1.msra.mxu0 0.0
      %1226 = vmatprep.subr.mxu0 0.0
      %1227 = vmatpush1.msra.mxu0 0.0
      %1228 = vmatprep.subr.mxu0 0.0
      %1229 = vmatpush1.msra.mxu0 0.0
      %1230 = vmatprep.subr.mxu0 0.0
      %1231 = vmatpush1.msra.mxu0 0.0
      %1232 = vmatprep.subr.mxu0 0.0
      %1233 = vmatpush1.msra.mxu0 0.0
      %1234 = vmatprep.subr.mxu0 0.0
      %1235 = vmatpush1.msra.mxu0 0.0
      %1236 = vmatprep.subr.mxu0 0.0
      %1237 = vmatpush1.msra.mxu0 0.0
      %1238 = vmatprep.subr.mxu0 0.0
      %1239 = vmatpush1.msra.mxu0 0.0
      %1240 = vmatprep.subr.mxu0 0.0
      %1241 = vmatpush1.msra.mxu0 0.0
      %1242 = vmatprep.subr.mxu0 0.0
      %1243 = vmatpush1.msra.mxu0 0.0
      %1244 = vmatprep.mubr.f32.mxu0 0.0
      %1245 = vmatmul.mubr.f32.gmra.mrb[0].mxu0 %v1172
      %v1246 = vpop.f32.mrb[0].mxu0
      %v1247 = vadd.f32 0.0, %v1246
      %v1248 = vpop.f32.mrb[0].mxu0
      %v1249 = vadd.f32 0.0, %v1248
      %1250 = vdwg.mxu0
      %v1251 = vadd.f32 %v1143, %v1247
      %v1252 = vadd.f32 %v1144, %v1249
      %1253 = vrot.lane.b32.xlu0 %v524, 112
      %v1254 = vpop.permute.xlu0 %1253
      %1255 = vrot.lane.b32.xlu0 %v526, 112
      %v1256 = vpop.permute.xlu0 %1255
      %vm1257 = vcmask 916480
      %v1258 = vsel %vm1257, %v1254, %v1256
      %v1261 = vsel %vm1257, %v1256, 0.0
      %s1262 = scalar_lea.vmem %s12, 7
      %v1263 = vld [vmem:[%s1262] ss:$8 sm:$0x3]
      %v1265 = vlaneseq
      %v1266 = vshrl.u32 %v1265, 7
      %v1267 = vsub.s32 0, %v1266
      %v1268 = vrot.slane %v1263, %v1267
      %v1269 = vlaneseq
      %v1270 = vshrl.u32 %v1269, 7
      %v1271 = vsub.s32 1, %v1270
      %v1272 = vrot.slane %v1263, %v1271
      %v1275 = vmul.f32 %v1258, %v1268
      %v1276 = vmul.f32 %v1261, %v1272
      %s1277 = scalar_lea.vmem %s4, 56
      %v1278 = vld [vmem:[%s1277] sm:$0xff]
      %v1280 = vsel %vm577, %v1278, 0
      %v1283 = vsel %vm581, %v1275, 0
      %v1286 = vsel %vm581, %v1276, 0
      %1288 = vmatprep.subr.mxu0 %v1286
      %1289 = vmatpush1.msra.mxu0 %v1283
      %1290 = vmatprep.subr.mxu0 0.0
      %1291 = vmatpush1.msra.mxu0 0.0
      %1292 = vmatprep.subr.mxu0 0.0
      %1293 = vmatpush1.msra.mxu0 0.0
      %1294 = vmatprep.subr.mxu0 0.0
      %1295 = vmatpush1.msra.mxu0 0.0
      %1296 = vmatprep.subr.mxu0 0.0
      %1297 = vmatpush1.msra.mxu0 0.0
      %1298 = vmatprep.subr.mxu0 0.0
      %1299 = vmatpush1.msra.mxu0 0.0
      %1300 = vmatprep.subr.mxu0 0.0
      %1301 = vmatpush1.msra.mxu0 0.0
      %1302 = vmatprep.subr.mxu0 0.0
      %1303 = vmatpush1.msra.mxu0 0.0
      %1304 = vmatprep.subr.mxu0 0.0
      %1305 = vmatpush1.msra.mxu0 0.0
      %1306 = vmatprep.subr.mxu0 0.0
      %1307 = vmatpush1.msra.mxu0 0.0
      %1308 = vmatprep.subr.mxu0 0.0
      %1309 = vmatpush1.msra.mxu0 0.0
      %1310 = vmatprep.subr.mxu0 0.0
      %1311 = vmatpush1.msra.mxu0 0.0
      %1312 = vmatprep.subr.mxu0 0.0
      %1313 = vmatpush1.msra.mxu0 0.0
      %1314 = vmatprep.subr.mxu0 0.0
      %1315 = vmatpush1.msra.mxu0 0.0
      %1316 = vmatprep.subr.mxu0 0.0
      %1317 = vmatpush1.msra.mxu0 0.0
      %1318 = vmatprep.subr.mxu0 0.0
      %1319 = vmatpush1.msra.mxu0 0.0
      %1320 = vmatprep.subr.mxu0 0.0
      %1321 = vmatpush1.msra.mxu0 0.0
      %1322 = vmatprep.subr.mxu0 0.0
      %1323 = vmatpush1.msra.mxu0 0.0
      %1324 = vmatprep.subr.mxu0 0.0
      %1325 = vmatpush1.msra.mxu0 0.0
      %1326 = vmatprep.subr.mxu0 0.0
      %1327 = vmatpush1.msra.mxu0 0.0
      %1328 = vmatprep.subr.mxu0 0.0
      %1329 = vmatpush1.msra.mxu0 0.0
      %1330 = vmatprep.subr.mxu0 0.0
      %1331 = vmatpush1.msra.mxu0 0.0
      %1332 = vmatprep.subr.mxu0 0.0
      %1333 = vmatpush1.msra.mxu0 0.0
      %1334 = vmatprep.subr.mxu0 0.0
      %1335 = vmatpush1.msra.mxu0 0.0
      %1336 = vmatprep.subr.mxu0 0.0
      %1337 = vmatpush1.msra.mxu0 0.0
      %1338 = vmatprep.subr.mxu0 0.0
      %1339 = vmatpush1.msra.mxu0 0.0
      %1340 = vmatprep.subr.mxu0 0.0
      %1341 = vmatpush1.msra.mxu0 0.0
      %1342 = vmatprep.subr.mxu0 0.0
      %1343 = vmatpush1.msra.mxu0 0.0
      %1344 = vmatprep.subr.mxu0 0.0
      %1345 = vmatpush1.msra.mxu0 0.0
      %1346 = vmatprep.subr.mxu0 0.0
      %1347 = vmatpush1.msra.mxu0 0.0
      %1348 = vmatprep.subr.mxu0 0.0
      %1349 = vmatpush1.msra.mxu0 0.0
      %1350 = vmatprep.subr.mxu0 0.0
      %1351 = vmatpush1.msra.mxu0 0.0
      %1352 = vmatprep.mubr.f32.mxu0 0.0
      %1353 = vmatmul.mubr.f32.gmra.mrb[0].mxu0 %v1280
      %v1354 = vpop.f32.mrb[0].mxu0
      %v1355 = vadd.f32 0.0, %v1354
      %v1356 = vpop.f32.mrb[0].mxu0
      %v1357 = vadd.f32 0.0, %v1356
      %1358 = vdwg.mxu0
      %v1359 = vadd.f32 %v1251, %v1355
      %v1360 = vadd.f32 %v1252, %v1357
      %1361 = vrot.lane.b32.xlu0 %v524, 111
      %v1362 = vpop.permute.xlu0 %1361
      %1363 = vrot.lane.b32.xlu0 %v526, 111
      %v1364 = vpop.permute.xlu0 %1363
      %vm1365 = vcmask 908288
      %v1366 = vsel %vm1365, %v1362, %v1364
      %v1369 = vsel %vm1365, %v1364, 0.0
      %s1370 = scalar_lea.vmem %s12, 16
      %v1371 = vld [vmem:[%s1370] ss:$8 sm:$0x3]
      %v1373 = vlaneseq
      %v1374 = vshrl.u32 %v1373, 7
      %v1375 = vsub.s32 0, %v1374
      %v1376 = vrot.slane %v1371, %v1375
      %v1377 = vlaneseq
      %v1378 = vshrl.u32 %v1377, 7
      %v1379 = vsub.s32 1, %v1378
      %v1380 = vrot.slane %v1371, %v1379
      %v1383 = vmul.f32 %v1366, %v1376
      %v1384 = vmul.f32 %v1369, %v1380
      %s1385 = scalar_lea.vmem %s4, 64
      %v1386 = vld [vmem:[%s1385] sm:$0xff]
      %v1388 = vsel %vm577, %v1386, 0
      %v1391 = vsel %vm581, %v1383, 0
      %v1394 = vsel %vm581, %v1384, 0
      %1396 = vmatprep.subr.mxu0 %v1394
      %1397 = vmatpush1.msra.mxu0 %v1391
      %1398 = vmatprep.subr.mxu0 0.0
      %1399 = vmatpush1.msra.mxu0 0.0
      %1400 = vmatprep.subr.mxu0 0.0
      %1401 = vmatpush1.msra.mxu0 0.0
      %1402 = vmatprep.subr.mxu0 0.0
      %1403 = vmatpush1.msra.mxu0 0.0
      %1404 = vmatprep.subr.mxu0 0.0
      %1405 = vmatpush1.msra.mxu0 0.0
      %1406 = vmatprep.subr.mxu0 0.0
      %1407 = vmatpush1.msra.mxu0 0.0
      %1408 = vmatprep.subr.mxu0 0.0
      %1409 = vmatpush1.msra.mxu0 0.0
      %1410 = vmatprep.subr.mxu0 0.0
      %1411 = vmatpush1.msra.mxu0 0.0
      %1412 = vmatprep.subr.mxu0 0.0
      %1413 = vmatpush1.msra.mxu0 0.0
      %1414 = vmatprep.subr.mxu0 0.0
      %1415 = vmatpush1.msra.mxu0 0.0
      %1416 = vmatprep.subr.mxu0 0.0
      %1417 = vmatpush1.msra.mxu0 0.0
      %1418 = vmatprep.subr.mxu0 0.0
      %1419 = vmatpush1.msra.mxu0 0.0
      %1420 = vmatprep.subr.mxu0 0.0
      %1421 = vmatpush1.msra.mxu0 0.0
      %1422 = vmatprep.subr.mxu0 0.0
      %1423 = vmatpush1.msra.mxu0 0.0
      %1424 = vmatprep.subr.mxu0 0.0
      %1425 = vmatpush1.msra.mxu0 0.0
      %1426 = vmatprep.subr.mxu0 0.0
      %1427 = vmatpush1.msra.mxu0 0.0
      %1428 = vmatprep.subr.mxu0 0.0
      %1429 = vmatpush1.msra.mxu0 0.0
      %1430 = vmatprep.subr.mxu0 0.0
      %1431 = vmatpush1.msra.mxu0 0.0
      %1432 = vmatprep.subr.mxu0 0.0
      %1433 = vmatpush1.msra.mxu0 0.0
      %1434 = vmatprep.subr.mxu0 0.0
      %1435 = vmatpush1.msra.mxu0 0.0
      %1436 = vmatprep.subr.mxu0 0.0
      %1437 = vmatpush1.msra.mxu0 0.0
      %1438 = vmatprep.subr.mxu0 0.0
      %1439 = vmatpush1.msra.mxu0 0.0
      %1440 = vmatprep.subr.mxu0 0.0
      %1441 = vmatpush1.msra.mxu0 0.0
      %1442 = vmatprep.subr.mxu0 0.0
      %1443 = vmatpush1.msra.mxu0 0.0
      %1444 = vmatprep.subr.mxu0 0.0
      %1445 = vmatpush1.msra.mxu0 0.0
      %1446 = vmatprep.subr.mxu0 0.0
      %1447 = vmatpush1.msra.mxu0 0.0
      %1448 = vmatprep.subr.mxu0 0.0
      %1449 = vmatpush1.msra.mxu0 0.0
      %1450 = vmatprep.subr.mxu0 0.0
      %1451 = vmatpush1.msra.mxu0 0.0
      %1452 = vmatprep.subr.mxu0 0.0
      %1453 = vmatpush1.msra.mxu0 0.0
      %1454 = vmatprep.subr.mxu0 0.0
      %1455 = vmatpush1.msra.mxu0 0.0
      %1456 = vmatprep.subr.mxu0 0.0
      %1457 = vmatpush1.msra.mxu0 0.0
      %1458 = vmatprep.subr.mxu0 0.0
      %1459 = vmatpush1.msra.mxu0 0.0
      %1460 = vmatprep.mubr.f32.mxu0 0.0
      %1461 = vmatmul.mubr.f32.gmra.mrb[0].mxu0 %v1388
      %v1462 = vpop.f32.mrb[0].mxu0
      %v1463 = vadd.f32 0.0, %v1462
      %v1464 = vpop.f32.mrb[0].mxu0
      %v1465 = vadd.f32 0.0, %v1464
      %1466 = vdwg.mxu0
      %v1467 = vadd.f32 %v1359, %v1463
      %v1468 = vadd.f32 %v1360, %v1465
      %v1469 = vld [vmem:[%s5] sm:$0xff]
      %1471 = vset.pattern.permute.xlu0 0
      %1472 = vperm.xlu0 %1471, %v1469
      %v1473 = vpop.permute.xlu0 %1472
      %v1475 = vadd.f32 %v1467, %v1473
      %v1476 = vadd.f32 %v1468, %v1473
      %v1477 = vmax.f32 %v1475, 0.0
      %v1478 = vmax.f32 %v1476, 0.0
      %1481 = vrot.lane.b32.xlu0 %v1477, 127
      %v1482 = vpop.permute.xlu0 %1481
      %1483 = vrot.lane.b32.xlu0 %v1478, 127
      %v1484 = vpop.permute.xlu0 %1483
      %v1485 = vsel %vm1041, %v1482, %v1484
      %v1488 = vsel %vm1041, %v1484, 0.0
      %v1489 = vmax.f32 %v1477, %v1485
      %v1490 = vmax.f32 %v1478, %v1488
      %1491 = vrot.lane.b32.xlu0 %v1477, 112
      %v1492 = vpop.permute.xlu0 %1491
      %1493 = vrot.lane.b32.xlu0 %v1478, 112
      %v1494 = vpop.permute.xlu0 %1493
      %v1495 = vsel %vm1257, %v1492, %v1494
      %v1498 = vsel %vm1257, %v1494, 0.0
      %1499 = vrot.lane.b32.xlu0 %v1477, 111
      %v1500 = vpop.permute.xlu0 %1499
      %1501 = vrot.lane.b32.xlu0 %v1478, 111
      %v1502 = vpop.permute.xlu0 %1501
      %v1503 = vsel %vm1365, %v1500, %v1502
      %v1506 = vsel %vm1365, %v1502, 0.0
      %v1507 = vmax.f32 %v1495, %v1503
      %v1508 = vmax.f32 %v1498, %v1506
      %v1509 = vmax.f32 %v1489, %v1507
      %v1510 = vmax.f32 %v1490, %v1508
      %1513 = vrot.lane.b32.xlu0 %v1509, 34
      %v1514 = vpop.permute.xlu0 %1513
      %1515 = vrot.lane.b32.xlu0 %v1510, 34
      %v1516 = vpop.permute.xlu0 %1515
      %vm1517 = vcmask 277504
      %v1518 = vsel %vm1517, %v1514, %v1516
      %v1521 = vsel %vm1517, 0.0, %v1514
      %v1522 = vld [vmem:[%s13] ss:$8 sm:$0x3]
      %v1524 = vlaneseq
      %v1525 = vshrl.u32 %v1524, 7
      %v1526 = vsub.s32 0, %v1525
      %v1527 = vrot.slane %v1522, %v1526
      %v1528 = vlaneseq
      %v1529 = vshrl.u32 %v1528, 7
      %v1530 = vsub.s32 1, %v1529
      %v1531 = vrot.slane %v1522, %v1530
      %v1534 = vmul.f32 %v1521, %v1527
      %v1535 = vmul.f32 %v1518, %v1531
      %v1536 = vld [vmem:[%s6] sm:$0xff]
      %v1537 = vld [vmem:[%s6 + $0x8] sm:$0xff]
      %1538 = vrot.lane.b32.xlu0 %v1509, 32
      %v1539 = vpop.permute.xlu0 %1538
      %1540 = vrot.lane.b32.xlu0 %v1510, 32
      %v1541 = vpop.permute.xlu0 %1540
      %vm1542 = vcmask 261120
      %v1543 = vsel %vm1542, %v1539, %v1541
      %v1546 = vsel %vm1542, 0.0, %v1539
      %s1547 = scalar_lea.vmem %s13, 1
      %v1548 = vld [vmem:[%s1547] ss:$8 sm:$0x3]
      %v1550 = vlaneseq
      %v1551 = vshrl.u32 %v1550, 7
      %v1552 = vsub.s32 0, %v1551
      %v1553 = vrot.slane %v1548, %v1552
      %v1554 = vlaneseq
      %v1555 = vshrl.u32 %v1554, 7
      %v1556 = vsub.s32 1, %v1555
      %v1557 = vrot.slane %v1548, %v1556
      %v1560 = vmul.f32 %v1546, %v1553
      %v1561 = vmul.f32 %v1543, %v1557
      %s1562 = scalar_lea.vmem %s6, 16
      %v1563 = vld [vmem:[%s1562] sm:$0xff]
      %v1564 = vld [vmem:[%s1562 + $0x8] sm:$0xff]
      %vm1565 = vcmask 64512
      %v1567 = vsel %vm1565, %v1563, 0
      %v1570 = vsel %vm1565, %v1564, 0
      %1572 = vmatprep.subr.mxu0 %v1561
      %1573 = vmatpush1.msra.mxu0 %v1560
      %1574 = vmatprep.subr.mxu0 0.0
      %1575 = vmatpush1.msra.mxu0 0.0
      %1576 = vmatprep.subr.mxu0 0.0
      %1577 = vmatpush1.msra.mxu0 0.0
      %1578 = vmatprep.subr.mxu0 0.0
      %1579 = vmatpush1.msra.mxu0 0.0
      %1580 = vmatprep.subr.mxu0 0.0
      %1581 = vmatpush1.msra.mxu0 0.0
      %1582 = vmatprep.subr.mxu0 0.0
      %1583 = vmatpush1.msra.mxu0 0.0
      %1584 = vmatprep.subr.mxu0 0.0
      %1585 = vmatpush1.msra.mxu0 0.0
      %1586 = vmatprep.subr.mxu0 0.0
      %1587 = vmatpush1.msra.mxu0 0.0
      %1588 = vmatprep.subr.mxu0 0.0
      %1589 = vmatpush1.msra.mxu0 0.0
      %1590 = vmatprep.subr.mxu0 0.0
      %1591 = vmatpush1.msra.mxu0 0.0
      %1592 = vmatprep.subr.mxu0 0.0
      %1593 = vmatpush1.msra.mxu0 0.0
      %1594 = vmatprep.subr.mxu0 0.0
      %1595 = vmatpush1.msra.mxu0 0.0
      %1596 = vmatprep.subr.mxu0 0.0
      %1597 = vmatpush1.msra.mxu0 0.0
      %1598 = vmatprep.subr.mxu0 0.0
      %1599 = vmatpush1.msra.mxu0 0.0
      %1600 = vmatprep.subr.mxu0 0.0
      %1601 = vmatpush1.msra.mxu0 0.0
      %1602 = vmatprep.subr.mxu0 0.0
      %1603 = vmatpush1.msra.mxu0 0.0
      %1604 = vmatprep.subr.mxu0 0.0
      %1605 = vmatpush1.msra.mxu0 0.0
      %1606 = vmatprep.subr.mxu0 0.0
      %1607 = vmatpush1.msra.mxu0 0.0
      %1608 = vmatprep.subr.mxu0 0.0
      %1609 = vmatpush1.msra.mxu0 0.0
      %1610 = vmatprep.subr.mxu0 0.0
      %1611 = vmatpush1.msra.mxu0 0.0
      %1612 = vmatprep.subr.mxu0 0.0
      %1613 = vmatpush1.msra.mxu0 0.0
      %1614 = vmatprep.subr.mxu0 0.0
      %1615 = vmatpush1.msra.mxu0 0.0
      %1616 = vmatprep.subr.mxu0 0.0
      %1617 = vmatpush1.msra.mxu0 0.0
      %1618 = vmatprep.subr.mxu0 0.0
      %1619 = vmatpush1.msra.mxu0 0.0
      %1620 = vmatprep.subr.mxu0 0.0
      %1621 = vmatpush1.msra.mxu0 0.0
      %1622 = vmatprep.subr.mxu0 0.0
      %1623 = vmatpush1.msra.mxu0 0.0
      %1624 = vmatprep.subr.mxu0 0.0
      %1625 = vmatpush1.msra.mxu0 0.0
      %1626 = vmatprep.subr.mxu0 0.0
      %1627 = vmatpush1.msra.mxu0 0.0
      %1628 = vmatprep.subr.mxu0 0.0
      %1629 = vmatpush1.msra.mxu0 0.0
      %1630 = vmatprep.subr.mxu0 0.0
      %1631 = vmatpush1.msra.mxu0 0.0
      %1632 = vmatprep.subr.mxu0 0.0
      %1633 = vmatpush1.msra.mxu0 0.0
      %1634 = vmatprep.subr.mxu0 0.0
      %1635 = vmatpush1.msra.mxu0 0.0
      %1636 = vmatprep.mubr.f32.mxu0 0.0
      %1637 = vmatmul.mubr.f32.gmra.mrb[0].mxu0 %v1567
      %v1638 = vpop.f32.mrb[0].mxu0
      %v1639 = vadd.f32 0.0, %v1638
      %v1640 = vpop.f32.mrb[0].mxu0
      %v1641 = vadd.f32 0.0, %v1640
      %1642 = vmatprep.mubr.f32.mxu0 0.0
      %1643 = vmatmul.mubr.f32.gmra.mrb[0].mxu0 %v1570
      %v1644 = vpop.f32.mrb[0].mxu0
      %v1645 = vadd.f32 0.0, %v1644
      %v1646 = vpop.f32.mrb[0].mxu0
      %v1647 = vadd.f32 0.0, %v1646
      %1648 = vdwg.mxu0
      %v1650 = vsel %vm1565, %v1536, 0
      %v1653 = vsel %vm1565, %v1537, 0
      %1655 = vmatprep.subr.mxu0 %v1535
      %1656 = vmatpush1.msra.mxu0 %v1534
      %1657 = vmatprep.subr.mxu0 0.0
      %1658 = vmatpush1.msra.mxu0 0.0
      %1659 = vmatprep.subr.mxu0 0.0
      %1660 = vmatpush1.msra.mxu0 0.0
      %1661 = vmatprep.subr.mxu0 0.0
      %1662 = vmatpush1.msra.mxu0 0.0
      %1663 = vmatprep.subr.mxu0 0.0
      %1664 = vmatpush1.msra.mxu0 0.0
      %1665 = vmatprep.subr.mxu0 0.0
      %1666 = vmatpush1.msra.mxu0 0.0
      %1667 = vmatprep.subr.mxu0 0.0
      %1668 = vmatpush1.msra.mxu0 0.0
      %1669 = vmatprep.subr.mxu0 0.0
      %1670 = vmatpush1.msra.mxu0 0.0
      %1671 = vmatprep.subr.mxu0 0.0
      %1672 = vmatpush1.msra.mxu0 0.0
      %1673 = vmatprep.subr.mxu0 0.0
      %1674 = vmatpush1.msra.mxu0 0.0
      %1675 = vmatprep.subr.mxu0 0.0
      %1676 = vmatpush1.msra.mxu0 0.0
      %1677 = vmatprep.subr.mxu0 0.0
      %1678 = vmatpush1.msra.mxu0 0.0
      %1679 = vmatprep.subr.mxu0 0.0
      %1680 = vmatpush1.msra.mxu0 0.0
      %1681 = vmatprep.subr.mxu0 0.0
      %1682 = vmatpush1.msra.mxu0 0.0
      %1683 = vmatprep.subr.mxu0 0.0
      %1684 = vmatpush1.msra.mxu0 0.0
      %1685 = vmatprep.subr.mxu0 0.0
      %1686 = vmatpush1.msra.mxu0 0.0
      %1687 = vmatprep.subr.mxu0 0.0
      %1688 = vmatpush1.msra.mxu0 0.0
      %1689 = vmatprep.subr.mxu0 0.0
      %1690 = vmatpush1.msra.mxu0 0.0
      %1691 = vmatprep.subr.mxu0 0.0
      %1692 = vmatpush1.msra.mxu0 0.0
      %1693 = vmatprep.subr.mxu0 0.0
      %1694 = vmatpush1.msra.mxu0 0.0
      %1695 = vmatprep.subr.mxu0 0.0
      %1696 = vmatpush1.msra.mxu0 0.0
      %1697 = vmatprep.subr.mxu0 0.0
      %1698 = vmatpush1.msra.mxu0 0.0
      %1699 = vmatprep.subr.mxu0 0.0
      %1700 = vmatpush1.msra.mxu0 0.0
      %1701 = vmatprep.subr.mxu0 0.0
      %1702 = vmatpush1.msra.mxu0 0.0
      %1703 = vmatprep.subr.mxu0 0.0
      %1704 = vmatpush1.msra.mxu0 0.0
      %1705 = vmatprep.subr.mxu0 0.0
      %1706 = vmatpush1.msra.mxu0 0.0
      %1707 = vmatprep.subr.mxu0 0.0
      %1708 = vmatpush1.msra.mxu0 0.0
      %1709 = vmatprep.subr.mxu0 0.0
      %1710 = vmatpush1.msra.mxu0 0.0
      %1711 = vmatprep.subr.mxu0 0.0
      %1712 = vmatpush1.msra.mxu0 0.0
      %1713 = vmatprep.subr.mxu0 0.0
      %1714 = vmatpush1.msra.mxu0 0.0
      %1715 = vmatprep.subr.mxu0 0.0
      %1716 = vmatpush1.msra.mxu0 0.0
      %1717 = vmatprep.subr.mxu0 0.0
      %1718 = vmatpush1.msra.mxu0 0.0
      %1719 = vmatprep.mubr.f32.mxu0 0.0
      %1720 = vmatmul.mubr.f32.gmra.mrb[0].mxu0 %v1650
      %v1721 = vpop.f32.mrb[0].mxu0
      %v1722 = vadd.f32 %v1639, %v1721
      %v1723 = vpop.f32.mrb[0].mxu0
      %v1724 = vadd.f32 %v1641, %v1723
      %1725 = vmatprep.mubr.f32.mxu0 0.0
      %1726 = vmatmul.mubr.f32.gmra.mrb[0].mxu0 %v1653
      %v1727 = vpop.f32.mrb[0].mxu0
      %v1728 = vadd.f32 %v1645, %v1727
      %v1729 = vpop.f32.mrb[0].mxu0
      %v1730 = vadd.f32 %v1647, %v1729
      %1731 = vdwg.mxu0
      %1732 = vrot.lane.b32.xlu0 %v1509, 30
      %v1733 = vpop.permute.xlu0 %1732
      %1734 = vrot.lane.b32.xlu0 %v1510, 30
      %v1735 = vpop.permute.xlu0 %1734
      %vm1736 = vcmask 244736
      %v1737 = vsel %vm1736, %v1733, %v1735
      %v1740 = vsel %vm1736, 0.0, %v1733
      %s1741 = scalar_lea.vmem %s13, 2
      %v1742 = vld [vmem:[%s1741] ss:$8 sm:$0x3]
      %v1744 = vlaneseq
      %v1745 = vshrl.u32 %v1744, 7
      %v1746 = vsub.s32 0, %v1745
      %v1747 = vrot.slane %v1742, %v1746
      %v1748 = vlaneseq
      %v1749 = vshrl.u32 %v1748, 7
      %v1750 = vsub.s32 1, %v1749
      %v1751 = vrot.slane %v1742, %v1750
      %v1754 = vmul.f32 %v1740, %v1747
      %v1755 = vmul.f32 %v1737, %v1751
      %s1756 = scalar_lea.vmem %s6, 32
      %v1757 = vld [vmem:[%s1756] sm:$0xff]
      %v1758 = vld [vmem:[%s1756 + $0x8] sm:$0xff]
      %v1760 = vsel %vm1565, %v1757, 0
      %v1763 = vsel %vm1565, %v1758, 0
      %1765 = vmatprep.subr.mxu0 %v1755
      %1766 = vmatpush1.msra.mxu0 %v1754
      %1767 = vmatprep.subr.mxu0 0.0
      %1768 = vmatpush1.msra.mxu0 0.0
      %1769 = vmatprep.subr.mxu0 0.0
      %1770 = vmatpush1.msra.mxu0 0.0
      %1771 = vmatprep.subr.mxu0 0.0
      %1772 = vmatpush1.msra.mxu0 0.0
      %1773 = vmatprep.subr.mxu0 0.0
      %1774 = vmatpush1.msra.mxu0 0.0
      %1775 = vmatprep.subr.mxu0 0.0
      %1776 = vmatpush1.msra.mxu0 0.0
      %1777 = vmatprep.subr.mxu0 0.0
      %1778 = vmatpush1.msra.mxu0 0.0
      %1779 = vmatprep.subr.mxu0 0.0
      %1780 = vmatpush1.msra.mxu0 0.0
      %1781 = vmatprep.subr.mxu0 0.0
      %1782 = vmatpush1.msra.mxu0 0.0
      %1783 = vmatprep.subr.mxu0 0.0
      %1784 = vmatpush1.msra.mxu0 0.0
      %1785 = vmatprep.subr.mxu0 0.0
      %1786 = vmatpush1.msra.mxu0 0.0
      %1787 = vmatprep.subr.mxu0 0.0
      %1788 = vmatpush1.msra.mxu0 0.0
      %1789 = vmatprep.subr.mxu0 0.0
      %1790 = vmatpush1.msra.mxu0 0.0
      %1791 = vmatprep.subr.mxu0 0.0
      %1792 = vmatpush1.msra.mxu0 0.0
      %1793 = vmatprep.subr.mxu0 0.0
      %1794 = vmatpush1.msra.mxu0 0.0
      %1795 = vmatprep.subr.mxu0 0.0
      %1796 = vmatpush1.msra.mxu0 0.0
      %1797 = vmatprep.subr.mxu0 0.0
      %1798 = vmatpush1.msra.mxu0 0.0
      %1799 = vmatprep.subr.mxu0 0.0
      %1800 = vmatpush1.msra.mxu0 0.0
      %1801 = vmatprep.subr.mxu0 0.0
      %1802 = vmatpush1.msra.mxu0 0.0
      %1803 = vmatprep.subr.mxu0 0.0
      %1804 = vmatpush1.msra.mxu0 0.0
      %1805 = vmatprep.subr.mxu0 0.0
      %1806 = vmatpush1.msra.mxu0 0.0
      %1807 = vmatprep.subr.mxu0 0.0
      %1808 = vmatpush1.msra.mxu0 0.0
      %1809 = vmatprep.subr.mxu0 0.0
      %1810 = vmatpush1.msra.mxu0 0.0
      %1811 = vmatprep.subr.mxu0 0.0
      %1812 = vmatpush1.msra.mxu0 0.0
      %1813 = vmatprep.subr.mxu0 0.0
      %1814 = vmatpush1.msra.mxu0 0.0
      %1815 = vmatprep.subr.mxu0 0.0
      %1816 = vmatpush1.msra.mxu0 0.0
      %1817 = vmatprep.subr.mxu0 0.0
      %1818 = vmatpush1.msra.mxu0 0.0
      %1819 = vmatprep.subr.mxu0 0.0
      %1820 = vmatpush1.msra.mxu0 0.0
      %1821 = vmatprep.subr.mxu0 0.0
      %1822 = vmatpush1.msra.mxu0 0.0
      %1823 = vmatprep.subr.mxu0 0.0
      %1824 = vmatpush1.msra.mxu0 0.0
      %1825 = vmatprep.subr.mxu0 0.0
      %1826 = vmatpush1.msra.mxu0 0.0
      %1827 = vmatprep.subr.mxu0 0.0
      %1828 = vmatpush1.msra.mxu0 0.0
      %1829 = vmatprep.mubr.f32.mxu0 0.0
      %1830 = vmatmul.mubr.f32.gmra.mrb[0].mxu0 %v1760
      %v1831 = vpop.f32.mrb[0].mxu0
      %v1832 = vadd.f32 0.0, %v1831
      %v1833 = vpop.f32.mrb[0].mxu0
      %v1834 = vadd.f32 0.0, %v1833
      %1835 = vmatprep.mubr.f32.mxu0 0.0
      %1836 = vmatmul.mubr.f32.gmra.mrb[0].mxu0 %v1763
      %v1837 = vpop.f32.mrb[0].mxu0
      %v1838 = vadd.f32 0.0, %v1837
      %v1839 = vpop.f32.mrb[0].mxu0
      %v1840 = vadd.f32 0.0, %v1839
      %1841 = vdwg.mxu0
      %v1842 = vadd.f32 %v1722, %v1832
      %v1843 = vadd.f32 %v1724, %v1834
      %v1844 = vadd.f32 %v1728, %v1838
      %v1845 = vadd.f32 %v1730, %v1840
      %1846 = vrot.lane.b32.xlu0 %v1509, 2
      %v1847 = vpop.permute.xlu0 %1846
      %1848 = vrot.lane.b32.xlu0 %v1510, 2
      %v1849 = vpop.permute.xlu0 %1848
      %vm1850 = vcmask 15360
      %v1851 = vsel %vm1850, %v1847, %v1849
      %v1854 = vsel %vm1850, 0.0, %v1847
      %s1855 = scalar_lea.vmem %s13, 3
      %v1856 = vld [vmem:[%s1855] ss:$8 sm:$0x3]
      %v1858 = vlaneseq
      %v1859 = vshrl.u32 %v1858, 7
      %v1860 = vsub.s32 0, %v1859
      %v1861 = vrot.slane %v1856, %v1860
      %v1862 = vlaneseq
      %v1863 = vshrl.u32 %v1862, 7
      %v1864 = vsub.s32 1, %v1863
      %v1865 = vrot.slane %v1856, %v1864
      %v1868 = vmul.f32 %v1854, %v1861
      %v1869 = vmul.f32 %v1851, %v1865
      %s1870 = scalar_lea.vmem %s6, 48
      %v1871 = vld [vmem:[%s1870] sm:$0xff]
      %v1872 = vld [vmem:[%s1870 + $0x8] sm:$0xff]
      %v1874 = vsel %vm1565, %v1871, 0
      %v1877 = vsel %vm1565, %v1872, 0
      %1879 = vmatprep.subr.mxu0 %v1869
      %1880 = vmatpush1.msra.mxu0 %v1868
      %1881 = vmatprep.subr.mxu0 0.0
      %1882 = vmatpush1.msra.mxu0 0.0
      %1883 = vmatprep.subr.mxu0 0.0
      %1884 = vmatpush1.msra.mxu0 0.0
      %1885 = vmatprep.subr.mxu0 0.0
      %1886 = vmatpush1.msra.mxu0 0.0
      %1887 = vmatprep.subr.mxu0 0.0
      %1888 = vmatpush1.msra.mxu0 0.0
      %1889 = vmatprep.subr.mxu0 0.0
      %1890 = vmatpush1.msra.mxu0 0.0
      %1891 = vmatprep.subr.mxu0 0.0
      %1892 = vmatpush1.msra.mxu0 0.0
      %1893 = vmatprep.subr.mxu0 0.0
      %1894 = vmatpush1.msra.mxu0 0.0
      %1895 = vmatprep.subr.mxu0 0.0
      %1896 = vmatpush1.msra.mxu0 0.0
      %1897 = vmatprep.subr.mxu0 0.0
      %1898 = vmatpush1.msra.mxu0 0.0
      %1899 = vmatprep.subr.mxu0 0.0
      %1900 = vmatpush1.msra.mxu0 0.0
      %1901 = vmatprep.subr.mxu0 0.0
      %1902 = vmatpush1.msra.mxu0 0.0
      %1903 = vmatprep.subr.mxu0 0.0
      %1904 = vmatpush1.msra.mxu0 0.0
      %1905 = vmatprep.subr.mxu0 0.0
      %1906 = vmatpush1.msra.mxu0 0.0
      %1907 = vmatprep.subr.mxu0 0.0
      %1908 = vmatpush1.msra.mxu0 0.0
      %1909 = vmatprep.subr.mxu0 0.0
      %1910 = vmatpush1.msra.mxu0 0.0
      %1911 = vmatprep.subr.mxu0 0.0
      %1912 = vmatpush1.msra.mxu0 0.0
      %1913 = vmatprep.subr.mxu0 0.0
      %1914 = vmatpush1.msra.mxu0 0.0
      %1915 = vmatprep.subr.mxu0 0.0
      %1916 = vmatpush1.msra.mxu0 0.0
      %1917 = vmatprep.subr.mxu0 0.0
      %1918 = vmatpush1.msra.mxu0 0.0
      %1919 = vmatprep.subr.mxu0 0.0
      %1920 = vmatpush1.msra.mxu0 0.0
      %1921 = vmatprep.subr.mxu0 0.0
      %1922 = vmatpush1.msra.mxu0 0.0
      %1923 = vmatprep.subr.mxu0 0.0
      %1924 = vmatpush1.msra.mxu0 0.0
      %1925 = vmatprep.subr.mxu0 0.0
      %1926 = vmatpush1.msra.mxu0 0.0
      %1927 = vmatprep.subr.mxu0 0.0
      %1928 = vmatpush1.msra.mxu0 0.0
      %1929 = vmatprep.subr.mxu0 0.0
      %1930 = vmatpush1.msra.mxu0 0.0
      %1931 = vmatprep.subr.mxu0 0.0
      %1932 = vmatpush1.msra.mxu0 0.0
      %1933 = vmatprep.subr.mxu0 0.0
      %1934 = vmatpush1.msra.mxu0 0.0
      %1935 = vmatprep.subr.mxu0 0.0
      %1936 = vmatpush1.msra.mxu0 0.0
      %1937 = vmatprep.subr.mxu0 0.0
      %1938 = vmatpush1.msra.mxu0 0.0
      %1939 = vmatprep.subr.mxu0 0.0
      %1940 = vmatpush1.msra.mxu0 0.0
      %1941 = vmatprep.subr.mxu0 0.0
      %1942 = vmatpush1.msra.mxu0 0.0
      %1943 = vmatprep.mubr.f32.mxu0 0.0
      %1944 = vmatmul.mubr.f32.gmra.mrb[0].mxu0 %v1874
      %v1945 = vpop.f32.mrb[0].mxu0
      %v1946 = vadd.f32 0.0, %v1945
      %v1947 = vpop.f32.mrb[0].mxu0
      %v1948 = vadd.f32 0.0, %v1947
      %1949 = vmatprep.mubr.f32.mxu0 0.0
      %1950 = vmatmul.mubr.f32.gmra.mrb[0].mxu0 %v1877
      %v1951 = vpop.f32.mrb[0].mxu0
      %v1952 = vadd.f32 0.0, %v1951
      %v1953 = vpop.f32.mrb[0].mxu0
      %v1954 = vadd.f32 0.0, %v1953
      %1955 = vdwg.mxu0
      %v1956 = vadd.f32 %v1842, %v1946
      %v1957 = vadd.f32 %v1843, %v1948
      %v1958 = vadd.f32 %v1844, %v1952
      %v1959 = vadd.f32 %v1845, %v1954
      %s1960 = scalar_lea.vmem %s6, 64
      %v1961 = vld [vmem:[%s1960] sm:$0xff]
      %v1962 = vld [vmem:[%s1960 + $0x8] sm:$0xff]
      %v1964 = vsel %vm1565, %v1961, 0
      %v1967 = vsel %vm1565, %v1962, 0
      %1969 = vmatprep.subr.mxu0 %v1510
      %1970 = vmatpush1.msra.mxu0 %v1509
      %1971 = vmatprep.subr.mxu0 0.0
      %1972 = vmatpush1.msra.mxu0 0.0
      %1973 = vmatprep.subr.mxu0 0.0
      %1974 = vmatpush1.msra.mxu0 0.0
      %1975 = vmatprep.subr.mxu0 0.0
      %1976 = vmatpush1.msra.mxu0 0.0
      %1977 = vmatprep.subr.mxu0 0.0
      %1978 = vmatpush1.msra.mxu0 0.0
      %1979 = vmatprep.subr.mxu0 0.0
      %1980 = vmatpush1.msra.mxu0 0.0
      %1981 = vmatprep.subr.mxu0 0.0
      %1982 = vmatpush1.msra.mxu0 0.0
      %1983 = vmatprep.subr.mxu0 0.0
      %1984 = vmatpush1.msra.mxu0 0.0
      %1985 = vmatprep.subr.mxu0 0.0
      %1986 = vmatpush1.msra.mxu0 0.0
      %1987 = vmatprep.subr.mxu0 0.0
      %1988 = vmatpush1.msra.mxu0 0.0
      %1989 = vmatprep.subr.mxu0 0.0
      %1990 = vmatpush1.msra.mxu0 0.0
      %1991 = vmatprep.subr.mxu0 0.0
      %1992 = vmatpush1.msra.mxu0 0.0
      %1993 = vmatprep.subr.mxu0 0.0
      %1994 = vmatpush1.msra.mxu0 0.0
      %1995 = vmatprep.subr.mxu0 0.0
      %1996 = vmatpush1.msra.mxu0 0.0
      %1997 = vmatprep.subr.mxu0 0.0
      %1998 = vmatpush1.msra.mxu0 0.0
      %1999 = vmatprep.subr.mxu0 0.0
      %2000 = vmatpush1.msra.mxu0 0.0
      %2001 = vmatprep.subr.mxu0 0.0
      %2002 = vmatpush1.msra.mxu0 0.0
      %2003 = vmatprep.subr.mxu0 0.0
      %2004 = vmatpush1.msra.mxu0 0.0
      %2005 = vmatprep.subr.mxu0 0.0
      %2006 = vmatpush1.msra.mxu0 0.0
      %2007 = vmatprep.subr.mxu0 0.0
      %2008 = vmatpush1.msra.mxu0 0.0
      %2009 = vmatprep.subr.mxu0 0.0
      %2010 = vmatpush1.msra.mxu0 0.0
      %2011 = vmatprep.subr.mxu0 0.0
      %2012 = vmatpush1.msra.mxu0 0.0
      %2013 = vmatprep.subr.mxu0 0.0
      %2014 = vmatpush1.msra.mxu0 0.0
      %2015 = vmatprep.subr.mxu0 0.0
      %2016 = vmatpush1.msra.mxu0 0.0
      %2017 = vmatprep.subr.mxu0 0.0
      %2018 = vmatpush1.msra.mxu0 0.0
      %2019 = vmatprep.subr.mxu0 0.0
      %2020 = vmatpush1.msra.mxu0 0.0
      %2021 = vmatprep.subr.mxu0 0.0
      %2022 = vmatpush1.msra.mxu0 0.0
      %2023 = vmatprep.subr.mxu0 0.0
      %2024 = vmatpush1.msra.mxu0 0.0
      %2025 = vmatprep.subr.mxu0 0.0
      %2026 = vmatpush1.msra.mxu0 0.0
      %2027 = vmatprep.subr.mxu0 0.0
      %2028 = vmatpush1.msra.mxu0 0.0
      %2029 = vmatprep.subr.mxu0 0.0
      %2030 = vmatpush1.msra.mxu0 0.0
      %2031 = vmatprep.subr.mxu0 0.0
      %2032 = vmatpush1.msra.mxu0 0.0
      %2033 = vmatprep.mubr.f32.mxu0 0.0
      %2034 = vmatmul.mubr.f32.gmra.mrb[0].mxu0 %v1964
      %v2035 = vpop.f32.mrb[0].mxu0
      %v2036 = vadd.f32 0.0, %v2035
      %v2037 = vpop.f32.mrb[0].mxu0
      %v2038 = vadd.f32 0.0, %v2037
      %2039 = vmatprep.mubr.f32.mxu0 0.0
      %2040 = vmatmul.mubr.f32.gmra.mrb[0].mxu0 %v1967
      %v2041 = vpop.f32.mrb[0].mxu0
      %v2042 = vadd.f32 0.0, %v2041
      %v2043 = vpop.f32.mrb[0].mxu0
      %v2044 = vadd.f32 0.0, %v2043
      %2045 = vdwg.mxu0
      %v2046 = vadd.f32 %v1956, %v2036
      %v2047 = vadd.f32 %v1957, %v2038
      %v2048 = vadd.f32 %v1958, %v2042
      %v2049 = vadd.f32 %v1959, %v2044
      %2050 = vrot.lane.b32.xlu0 %v1509, 126
      %v2051 = vpop.permute.xlu0 %2050
      %2052 = vrot.lane.b32.xlu0 %v1510, 126
      %v2053 = vpop.permute.xlu0 %2052
      %vm2054 = vcmask 1031168
      %v2055 = vsel %vm2054, %v2051, %v2053
      %v2058 = vsel %vm2054, %v2053, 0.0
      %s2059 = scalar_lea.vmem %s13, 5
      %v2060 = vld [vmem:[%s2059] ss:$8 sm:$0x3]
      %v2062 = vlaneseq
      %v2063 = vshrl.u32 %v2062, 7
      %v2064 = vsub.s32 0, %v2063
      %v2065 = vrot.slane %v2060, %v2064
      %v2066 = vlaneseq
      %v2067 = vshrl.u32 %v2066, 7
      %v2068 = vsub.s32 1, %v2067
      %v2069 = vrot.slane %v2060, %v2068
      %v2072 = vmul.f32 %v2055, %v2065
      %v2073 = vmul.f32 %v2058, %v2069
      %s2074 = scalar_lea.vmem %s6, 80
      %v2075 = vld [vmem:[%s2074] sm:$0xff]
      %v2076 = vld [vmem:[%s2074 + $0x8] sm:$0xff]
      %v2078 = vsel %vm1565, %v2075, 0
      %v2081 = vsel %vm1565, %v2076, 0
      %2083 = vmatprep.subr.mxu0 %v2073
      %2084 = vmatpush1.msra.mxu0 %v2072
      %2085 = vmatprep.subr.mxu0 0.0
      %2086 = vmatpush1.msra.mxu0 0.0
      %2087 = vmatprep.subr.mxu0 0.0
      %2088 = vmatpush1.msra.mxu0 0.0
      %2089 = vmatprep.subr.mxu0 0.0
      %2090 = vmatpush1.msra.mxu0 0.0
      %2091 = vmatprep.subr.mxu0 0.0
      %2092 = vmatpush1.msra.mxu0 0.0
      %2093 = vmatprep.subr.mxu0 0.0
      %2094 = vmatpush1.msra.mxu0 0.0
      %2095 = vmatprep.subr.mxu0 0.0
      %2096 = vmatpush1.msra.mxu0 0.0
      %2097 = vmatprep.subr.mxu0 0.0
      %2098 = vmatpush1.msra.mxu0 0.0
      %2099 = vmatprep.subr.mxu0 0.0
      %2100 = vmatpush1.msra.mxu0 0.0
      %2101 = vmatprep.subr.mxu0 0.0
      %2102 = vmatpush1.msra.mxu0 0.0
      %2103 = vmatprep.subr.mxu0 0.0
      %2104 = vmatpush1.msra.mxu0 0.0
      %2105 = vmatprep.subr.mxu0 0.0
      %2106 = vmatpush1.msra.mxu0 0.0
      %2107 = vmatprep.subr.mxu0 0.0
      %2108 = vmatpush1.msra.mxu0 0.0
      %2109 = vmatprep.subr.mxu0 0.0
      %2110 = vmatpush1.msra.mxu0 0.0
      %2111 = vmatprep.subr.mxu0 0.0
      %2112 = vmatpush1.msra.mxu0 0.0
      %2113 = vmatprep.subr.mxu0 0.0
      %2114 = vmatpush1.msra.mxu0 0.0
      %2115 = vmatprep.subr.mxu0 0.0
      %2116 = vmatpush1.msra.mxu0 0.0
      %2117 = vmatprep.subr.mxu0 0.0
      %2118 = vmatpush1.msra.mxu0 0.0
      %2119 = vmatprep.subr.mxu0 0.0
      %2120 = vmatpush1.msra.mxu0 0.0
      %2121 = vmatprep.subr.mxu0 0.0
      %2122 = vmatpush1.msra.mxu0 0.0
      %2123 = vmatprep.subr.mxu0 0.0
      %2124 = vmatpush1.msra.mxu0 0.0
      %2125 = vmatprep.subr.mxu0 0.0
      %2126 = vmatpush1.msra.mxu0 0.0
      %2127 = vmatprep.subr.mxu0 0.0
      %2128 = vmatpush1.msra.mxu0 0.0
      %2129 = vmatprep.subr.mxu0 0.0
      %2130 = vmatpush1.msra.mxu0 0.0
      %2131 = vmatprep.subr.mxu0 0.0
      %2132 = vmatpush1.msra.mxu0 0.0
      %2133 = vmatprep.subr.mxu0 0.0
      %2134 = vmatpush1.msra.mxu0 0.0
      %2135 = vmatprep.subr.mxu0 0.0
      %2136 = vmatpush1.msra.mxu0 0.0
      %2137 = vmatprep.subr.mxu0 0.0
      %2138 = vmatpush1.msra.mxu0 0.0
      %2139 = vmatprep.subr.mxu0 0.0
      %2140 = vmatpush1.msra.mxu0 0.0
      %2141 = vmatprep.subr.mxu0 0.0
      %2142 = vmatpush1.msra.mxu0 0.0
      %2143 = vmatprep.subr.mxu0 0.0
      %2144 = vmatpush1.msra.mxu0 0.0
      %2145 = vmatprep.subr.mxu0 0.0
      %2146 = vmatpush1.msra.mxu0 0.0
      %2147 = vmatprep.mubr.f32.mxu0 0.0
      %2148 = vmatmul.mubr.f32.gmra.mrb[0].mxu0 %v2078
      %v2149 = vpop.f32.mrb[0].mxu0
      %v2150 = vadd.f32 0.0, %v2149
      %v2151 = vpop.f32.mrb[0].mxu0
      %v2152 = vadd.f32 0.0, %v2151
      %2153 = vmatprep.mubr.f32.mxu0 0.0
      %2154 = vmatmul.mubr.f32.gmra.mrb[0].mxu0 %v2081
      %v2155 = vpop.f32.mrb[0].mxu0
      %v2156 = vadd.f32 0.0, %v2155
      %v2157 = vpop.f32.mrb[0].mxu0
      %v2158 = vadd.f32 0.0, %v2157
      %2159 = vdwg.mxu0
      %v2160 = vadd.f32 %v2046, %v2150
      %v2161 = vadd.f32 %v2047, %v2152
      %v2162 = vadd.f32 %v2048, %v2156
      %v2163 = vadd.f32 %v2049, %v2158
      %2164 = vrot.lane.b32.xlu0 %v1509, 98
      %v2165 = vpop.permute.xlu0 %2164
      %2166 = vrot.lane.b32.xlu0 %v1510, 98
      %v2167 = vpop.permute.xlu0 %2166
      %vm2168 = vcmask 801792
      %v2169 = vsel %vm2168, %v2165, %v2167
      %v2172 = vsel %vm2168, %v2167, 0.0
      %s2173 = scalar_lea.vmem %s13, 6
      %v2174 = vld [vmem:[%s2173] ss:$8 sm:$0x3]
      %v2176 = vlaneseq
      %v2177 = vshrl.u32 %v2176, 7
      %v2178 = vsub.s32 0, %v2177
      %v2179 = vrot.slane %v2174, %v2178
      %v2180 = vlaneseq
      %v2181 = vshrl.u32 %v2180, 7
      %v2182 = vsub.s32 1, %v2181
      %v2183 = vrot.slane %v2174, %v2182
      %v2186 = vmul.f32 %v2169, %v2179
      %v2187 = vmul.f32 %v2172, %v2183
      %s2188 = scalar_lea.vmem %s6, 96
      %v2189 = vld [vmem:[%s2188] sm:$0xff]
      %v2190 = vld [vmem:[%s2188 + $0x8] sm:$0xff]
      %v2192 = vsel %vm1565, %v2189, 0
      %v2195 = vsel %vm1565, %v2190, 0
      %2197 = vmatprep.subr.mxu0 %v2187
      %2198 = vmatpush1.msra.mxu0 %v2186
      %2199 = vmatprep.subr.mxu0 0.0
      %2200 = vmatpush1.msra.mxu0 0.0
      %2201 = vmatprep.subr.mxu0 0.0
      %2202 = vmatpush1.msra.mxu0 0.0
      %2203 = vmatprep.subr.mxu0 0.0
      %2204 = vmatpush1.msra.mxu0 0.0
      %2205 = vmatprep.subr.mxu0 0.0
      %2206 = vmatpush1.msra.mxu0 0.0
      %2207 = vmatprep.subr.mxu0 0.0
      %2208 = vmatpush1.msra.mxu0 0.0
      %2209 = vmatprep.subr.mxu0 0.0
      %2210 = vmatpush1.msra.mxu0 0.0
      %2211 = vmatprep.subr.mxu0 0.0
      %2212 = vmatpush1.msra.mxu0 0.0
      %2213 = vmatprep.subr.mxu0 0.0
      %2214 = vmatpush1.msra.mxu0 0.0
      %2215 = vmatprep.subr.mxu0 0.0
      %2216 = vmatpush1.msra.mxu0 0.0
      %2217 = vmatprep.subr.mxu0 0.0
      %2218 = vmatpush1.msra.mxu0 0.0
      %2219 = vmatprep.subr.mxu0 0.0
      %2220 = vmatpush1.msra.mxu0 0.0
      %2221 = vmatprep.subr.mxu0 0.0
      %2222 = vmatpush1.msra.mxu0 0.0
      %2223 = vmatprep.subr.mxu0 0.0
      %2224 = vmatpush1.msra.mxu0 0.0
      %2225 = vmatprep.subr.mxu0 0.0
      %2226 = vmatpush1.msra.mxu0 0.0
      %2227 = vmatprep.subr.mxu0 0.0
      %2228 = vmatpush1.msra.mxu0 0.0
      %2229 = vmatprep.subr.mxu0 0.0
      %2230 = vmatpush1.msra.mxu0 0.0
      %2231 = vmatprep.subr.mxu0 0.0
      %2232 = vmatpush1.msra.mxu0 0.0
      %2233 = vmatprep.subr.mxu0 0.0
      %2234 = vmatpush1.msra.mxu0 0.0
      %2235 = vmatprep.subr.mxu0 0.0
      %2236 = vmatpush1.msra.mxu0 0.0
      %2237 = vmatprep.subr.mxu0 0.0
      %2238 = vmatpush1.msra.mxu0 0.0
      %2239 = vmatprep.subr.mxu0 0.0
      %2240 = vmatpush1.msra.mxu0 0.0
      %2241 = vmatprep.subr.mxu0 0.0
      %2242 = vmatpush1.msra.mxu0 0.0
      %2243 = vmatprep.subr.mxu0 0.0
      %2244 = vmatpush1.msra.mxu0 0.0
      %2245 = vmatprep.subr.mxu0 0.0
      %2246 = vmatpush1.msra.mxu0 0.0
      %2247 = vmatprep.subr.mxu0 0.0
      %2248 = vmatpush1.msra.mxu0 0.0
      %2249 = vmatprep.subr.mxu0 0.0
      %2250 = vmatpush1.msra.mxu0 0.0
      %2251 = vmatprep.subr.mxu0 0.0
      %2252 = vmatpush1.msra.mxu0 0.0
      %2253 = vmatprep.subr.mxu0 0.0
      %2254 = vmatpush1.msra.mxu0 0.0
      %2255 = vmatprep.subr.mxu0 0.0
      %2256 = vmatpush1.msra.mxu0 0.0
      %2257 = vmatprep.subr.mxu0 0.0
      %2258 = vmatpush1.msra.mxu0 0.0
      %2259 = vmatprep.subr.mxu0 0.0
      %2260 = vmatpush1.msra.mxu0 0.0
      %2261 = vmatprep.mubr.f32.mxu0 0.0
      %2262 = vmatmul.mubr.f32.gmra.mrb[0].mxu0 %v2192
      %v2263 = vpop.f32.mrb[0].mxu0
      %v2264 = vadd.f32 0.0, %v2263
      %v2265 = vpop.f32.mrb[0].mxu0
      %v2266 = vadd.f32 0.0, %v2265
      %2267 = vmatprep.mubr.f32.mxu0 0.0
      %2268 = vmatmul.mubr.f32.gmra.mrb[0].mxu0 %v2195
      %v2269 = vpop.f32.mrb[0].mxu0
      %v2270 = vadd.f32 0.0, %v2269
      %v2271 = vpop.f32.mrb[0].mxu0
      %v2272 = vadd.f32 0.0, %v2271
      %2273 = vdwg.mxu0
      %v2274 = vadd.f32 %v2160, %v2264
      %v2275 = vadd.f32 %v2161, %v2266
      %v2276 = vadd.f32 %v2162, %v2270
      %v2277 = vadd.f32 %v2163, %v2272
      %2278 = vrot.lane.b32.xlu0 %v1509, 96
      %v2279 = vpop.permute.xlu0 %2278
      %2280 = vrot.lane.b32.xlu0 %v1510, 96
      %v2281 = vpop.permute.xlu0 %2280
      %vm2282 = vcmask 785408
      %v2283 = vsel %vm2282, %v2279, %v2281
      %v2286 = vsel %vm2282, %v2281, 0.0
      %s2287 = scalar_lea.vmem %s13, 7
      %v2288 = vld [vmem:[%s2287] ss:$8 sm:$0x3]
      %v2290 = vlaneseq
      %v2291 = vshrl.u32 %v2290, 7
      %v2292 = vsub.s32 0, %v2291
      %v2293 = vrot.slane %v2288, %v2292
      %v2294 = vlaneseq
      %v2295 = vshrl.u32 %v2294, 7
      %v2296 = vsub.s32 1, %v2295
      %v2297 = vrot.slane %v2288, %v2296
      %v2300 = vmul.f32 %v2283, %v2293
      %v2301 = vmul.f32 %v2286, %v2297
      %s2302 = scalar_lea.vmem %s6, 112
      %v2303 = vld [vmem:[%s2302] sm:$0xff]
      %v2304 = vld [vmem:[%s2302 + $0x8] sm:$0xff]
      %v2306 = vsel %vm1565, %v2303, 0
      %v2309 = vsel %vm1565, %v2304, 0
      %2311 = vmatprep.subr.mxu0 %v2301
      %2312 = vmatpush1.msra.mxu0 %v2300
      %2313 = vmatprep.subr.mxu0 0.0
      %2314 = vmatpush1.msra.mxu0 0.0
      %2315 = vmatprep.subr.mxu0 0.0
      %2316 = vmatpush1.msra.mxu0 0.0
      %2317 = vmatprep.subr.mxu0 0.0
      %2318 = vmatpush1.msra.mxu0 0.0
      %2319 = vmatprep.subr.mxu0 0.0
      %2320 = vmatpush1.msra.mxu0 0.0
      %2321 = vmatprep.subr.mxu0 0.0
      %2322 = vmatpush1.msra.mxu0 0.0
      %2323 = vmatprep.subr.mxu0 0.0
      %2324 = vmatpush1.msra.mxu0 0.0
      %2325 = vmatprep.subr.mxu0 0.0
      %2326 = vmatpush1.msra.mxu0 0.0
      %2327 = vmatprep.subr.mxu0 0.0
      %2328 = vmatpush1.msra.mxu0 0.0
      %2329 = vmatprep.subr.mxu0 0.0
      %2330 = vmatpush1.msra.mxu0 0.0
      %2331 = vmatprep.subr.mxu0 0.0
      %2332 = vmatpush1.msra.mxu0 0.0
      %2333 = vmatprep.subr.mxu0 0.0
      %2334 = vmatpush1.msra.mxu0 0.0
      %2335 = vmatprep.subr.mxu0 0.0
      %2336 = vmatpush1.msra.mxu0 0.0
      %2337 = vmatprep.subr.mxu0 0.0
      %2338 = vmatpush1.msra.mxu0 0.0
      %2339 = vmatprep.subr.mxu0 0.0
      %2340 = vmatpush1.msra.mxu0 0.0
      %2341 = vmatprep.subr.mxu0 0.0
      %2342 = vmatpush1.msra.mxu0 0.0
      %2343 = vmatprep.subr.mxu0 0.0
      %2344 = vmatpush1.msra.mxu0 0.0
      %2345 = vmatprep.subr.mxu0 0.0
      %2346 = vmatpush1.msra.mxu0 0.0
      %2347 = vmatprep.subr.mxu0 0.0
      %2348 = vmatpush1.msra.mxu0 0.0
      %2349 = vmatprep.subr.mxu0 0.0
      %2350 = vmatpush1.msra.mxu0 0.0
      %2351 = vmatprep.subr.mxu0 0.0
      %2352 = vmatpush1.msra.mxu0 0.0
      %2353 = vmatprep.subr.mxu0 0.0
      %2354 = vmatpush1.msra.mxu0 0.0
      %2355 = vmatprep.subr.mxu0 0.0
      %2356 = vmatpush1.msra.mxu0 0.0
      %2357 = vmatprep.subr.mxu0 0.0
      %2358 = vmatpush1.msra.mxu0 0.0
      %2359 = vmatprep.subr.mxu0 0.0
      %2360 = vmatpush1.msra.mxu0 0.0
      %2361 = vmatprep.subr.mxu0 0.0
      %2362 = vmatpush1.msra.mxu0 0.0
      %2363 = vmatprep.subr.mxu0 0.0
      %2364 = vmatpush1.msra.mxu0 0.0
      %2365 = vmatprep.subr.mxu0 0.0
      %2366 = vmatpush1.msra.mxu0 0.0
      %2367 = vmatprep.subr.mxu0 0.0
      %2368 = vmatpush1.msra.mxu0 0.0
      %2369 = vmatprep.subr.mxu0 0.0
      %2370 = vmatpush1.msra.mxu0 0.0
      %2371 = vmatprep.subr.mxu0 0.0
      %2372 = vmatpush1.msra.mxu0 0.0
      %2373 = vmatprep.subr.mxu0 0.0
      %2374 = vmatpush1.msra.mxu0 0.0
      %2375 = vmatprep.mubr.f32.mxu0 0.0
      %2376 = vmatmul.mubr.f32.gmra.mrb[0].mxu0 %v2306
      %v2377 = vpop.f32.mrb[0].mxu0
      %v2378 = vadd.f32 0.0, %v2377
      %v2379 = vpop.f32.mrb[0].mxu0
      %v2380 = vadd.f32 0.0, %v2379
      %2381 = vmatprep.mubr.f32.mxu0 0.0
      %2382 = vmatmul.mubr.f32.gmra.mrb[0].mxu0 %v2309
      %v2383 = vpop.f32.mrb[0].mxu0
      %v2384 = vadd.f32 0.0, %v2383
      %v2385 = vpop.f32.mrb[0].mxu0
      %v2386 = vadd.f32 0.0, %v2385
      %2387 = vdwg.mxu0
      %v2388 = vadd.f32 %v2274, %v2378
      %v2389 = vadd.f32 %v2275, %v2380
      %v2390 = vadd.f32 %v2276, %v2384
      %v2391 = vadd.f32 %v2277, %v2386
      %2392 = vrot.lane.b32.xlu0 %v1509, 94
      %v2393 = vpop.permute.xlu0 %2392
      %2394 = vrot.lane.b32.xlu0 %v1510, 94
      %v2395 = vpop.permute.xlu0 %2394
      %vm2396 = vcmask 769024
      %v2397 = vsel %vm2396, %v2393, %v2395
      %v2400 = vsel %vm2396, %v2395, 0.0
      %s2401 = scalar_lea.vmem %s13, 16
      %v2402 = vld [vmem:[%s2401] ss:$8 sm:$0x3]
      %v2404 = vlaneseq
      %v2405 = vshrl.u32 %v2404, 7
      %v2406 = vsub.s32 0, %v2405
      %v2407 = vrot.slane %v2402, %v2406
      %v2408 = vlaneseq
      %v2409 = vshrl.u32 %v2408, 7
      %v2410 = vsub.s32 1, %v2409
      %v2411 = vrot.slane %v2402, %v2410
      %v2414 = vmul.f32 %v2397, %v2407
      %v2415 = vmul.f32 %v2400, %v2411
      %s2416 = scalar_lea.vmem %s6, 128
      %v2417 = vld [vmem:[%s2416] sm:$0xff]
      %v2418 = vld [vmem:[%s2416 + $0x8] sm:$0xff]
      %v2420 = vsel %vm1565, %v2417, 0
      %v2423 = vsel %vm1565, %v2418, 0
      %2425 = vmatprep.subr.mxu0 %v2415
      %2426 = vmatpush1.msra.mxu0 %v2414
      %2427 = vmatprep.subr.mxu0 0.0
      %2428 = vmatpush1.msra.mxu0 0.0
      %2429 = vmatprep.subr.mxu0 0.0
      %2430 = vmatpush1.msra.mxu0 0.0
      %2431 = vmatprep.subr.mxu0 0.0
      %2432 = vmatpush1.msra.mxu0 0.0
      %2433 = vmatprep.subr.mxu0 0.0
      %2434 = vmatpush1.msra.mxu0 0.0
      %2435 = vmatprep.subr.mxu0 0.0
      %2436 = vmatpush1.msra.mxu0 0.0
      %2437 = vmatprep.subr.mxu0 0.0
      %2438 = vmatpush1.msra.mxu0 0.0
      %2439 = vmatprep.subr.mxu0 0.0
      %2440 = vmatpush1.msra.mxu0 0.0
      %2441 = vmatprep.subr.mxu0 0.0
      %2442 = vmatpush1.msra.mxu0 0.0
      %2443 = vmatprep.subr.mxu0 0.0
      %2444 = vmatpush1.msra.mxu0 0.0
      %2445 = vmatprep.subr.mxu0 0.0
      %2446 = vmatpush1.msra.mxu0 0.0
      %2447 = vmatprep.subr.mxu0 0.0
      %2448 = vmatpush1.msra.mxu0 0.0
      %2449 = vmatprep.subr.mxu0 0.0
      %2450 = vmatpush1.msra.mxu0 0.0
      %2451 = vmatprep.subr.mxu0 0.0
      %2452 = vmatpush1.msra.mxu0 0.0
      %2453 = vmatprep.subr.mxu0 0.0
      %2454 = vmatpush1.msra.mxu0 0.0
      %2455 = vmatprep.subr.mxu0 0.0
      %2456 = vmatpush1.msra.mxu0 0.0
      %2457 = vmatprep.subr.mxu0 0.0
      %2458 = vmatpush1.msra.mxu0 0.0
      %2459 = vmatprep.subr.mxu0 0.0
      %2460 = vmatpush1.msra.mxu0 0.0
      %2461 = vmatprep.subr.mxu0 0.0
      %2462 = vmatpush1.msra.mxu0 0.0
      %2463 = vmatprep.subr.mxu0 0.0
      %2464 = vmatpush1.msra.mxu0 0.0
      %2465 = vmatprep.subr.mxu0 0.0
      %2466 = vmatpush1.msra.mxu0 0.0
      %2467 = vmatprep.subr.mxu0 0.0
      %2468 = vmatpush1.msra.mxu0 0.0
      %2469 = vmatprep.subr.mxu0 0.0
      %2470 = vmatpush1.msra.mxu0 0.0
      %2471 = vmatprep.subr.mxu0 0.0
      %2472 = vmatpush1.msra.mxu0 0.0
      %2473 = vmatprep.subr.mxu0 0.0
      %2474 = vmatpush1.msra.mxu0 0.0
      %2475 = vmatprep.subr.mxu0 0.0
      %2476 = vmatpush1.msra.mxu0 0.0
      %2477 = vmatprep.subr.mxu0 0.0
      %2478 = vmatpush1.msra.mxu0 0.0
      %2479 = vmatprep.subr.mxu0 0.0
      %2480 = vmatpush1.msra.mxu0 0.0
      %2481 = vmatprep.subr.mxu0 0.0
      %2482 = vmatpush1.msra.mxu0 0.0
      %2483 = vmatprep.subr.mxu0 0.0
      %2484 = vmatpush1.msra.mxu0 0.0
      %2485 = vmatprep.subr.mxu0 0.0
      %2486 = vmatpush1.msra.mxu0 0.0
      %2487 = vmatprep.subr.mxu0 0.0
      %2488 = vmatpush1.msra.mxu0 0.0
      %2489 = vmatprep.mubr.f32.mxu0 0.0
      %2490 = vmatmul.mubr.f32.gmra.mrb[0].mxu0 %v2420
      %v2491 = vpop.f32.mrb[0].mxu0
      %v2492 = vadd.f32 0.0, %v2491
      %v2493 = vpop.f32.mrb[0].mxu0
      %v2494 = vadd.f32 0.0, %v2493
      %2495 = vmatprep.mubr.f32.mxu0 0.0
      %2496 = vmatmul.mubr.f32.gmra.mrb[0].mxu0 %v2423
      %v2497 = vpop.f32.mrb[0].mxu0
      %v2498 = vadd.f32 0.0, %v2497
      %v2499 = vpop.f32.mrb[0].mxu0
      %v2500 = vadd.f32 0.0, %v2499
      %2501 = vdwg.mxu0
      %v2502 = vadd.f32 %v2388, %v2492
      %v2503 = vadd.f32 %v2389, %v2494
      %v2504 = vadd.f32 %v2390, %v2498
      %v2505 = vadd.f32 %v2391, %v2500
      %v2506 = vld [vmem:[%s7] sm:$0xff]
      %v2507 = vld [vmem:[%s7 + $0x8] sm:$0xff]
      %2509 = vset.pattern.permute.xlu0 0
      %2510 = vperm.xlu0 %2509, %v2506
      %v2511 = vpop.permute.xlu0 %2510
      %2514 = vset.pattern.permute.xlu0 0
      %2515 = vperm.xlu0 %2514, %v2507
      %v2516 = vpop.permute.xlu0 %2515
      %v2518 = vadd.f32 %v2502, %v2511
      %v2519 = vadd.f32 %v2503, %v2511
      %v2520 = vadd.f32 %v2504, %v2516
      %v2521 = vadd.f32 %v2505, %v2516
      %v2522 = vmax.f32 %v2518, 0.0
      %v2523 = vmax.f32 %v2519, 0.0
      %v2524 = vmax.f32 %v2520, 0.0
      %v2525 = vmax.f32 %v2521, 0.0
      %v2526 = vld [vmem:[%s14] ss:$4 sm:$0x3]
      %v2528 = vlaneseq
      %v2529 = vshrl.u32 %v2528, 7
      %v2530 = vsub.s32 0, %v2529
      %v2531 = vrot.slane %v2526, %v2530
      %v2532 = vlaneseq
      %v2533 = vshrl.u32 %v2532, 7
      %v2534 = vsub.s32 1, %v2533
      %v2535 = vrot.slane %v2526, %v2534
      %v2538 = vmul.f32 %v2522, %v2531
      %v2539 = vmul.f32 %v2523, %v2535
      %v2540 = vmul.f32 %v2524, %v2531
      %v2541 = vmul.f32 %v2525, %v2535
      %2546 = vrot.lane.b32.xlu0 %v2522, 1
      %v2547 = vpop.permute.xlu0 %2546
      %2548 = vrot.lane.b32.xlu0 %v2523, 1
      %v2549 = vpop.permute.xlu0 %2548
      %2550 = vrot.lane.b32.xlu0 %v2524, 1
      %v2551 = vpop.permute.xlu0 %2550
      %2552 = vrot.lane.b32.xlu0 %v2525, 1
      %v2553 = vpop.permute.xlu0 %2552
      %v2554 = vsel %vm851, %v2547, %v2549
      %v2555 = vsel %vm851, %v2551, %v2553
      %v2560 = vsel %vm851, 0.0, %v2547
      %v2561 = vsel %vm851, 0.0, %v2551
      %s2562 = scalar_lea.vmem %s14, 1
      %v2563 = vld [vmem:[%s2562] ss:$4 sm:$0x3]
      %v2565 = vlaneseq
      %v2566 = vshrl.u32 %v2565, 7
      %v2567 = vsub.s32 0, %v2566
      %v2568 = vrot.slane %v2563, %v2567
      %v2569 = vlaneseq
      %v2570 = vshrl.u32 %v2569, 7
      %v2571 = vsub.s32 1, %v2570
      %v2572 = vrot.slane %v2563, %v2571
      %v2575 = vmul.f32 %v2560, %v2568
      %v2576 = vmul.f32 %v2554, %v2572
      %v2577 = vmul.f32 %v2561, %v2568
      %v2578 = vmul.f32 %v2555, %v2572
      %v2579 = vadd.f32 %v2538, %v2575
      %v2580 = vadd.f32 %v2539, %v2576
      %v2581 = vadd.f32 %v2540, %v2577
      %v2582 = vadd.f32 %v2541, %v2578
      %2583 = vrot.lane.b32.xlu0 %v2522, 16
      %v2584 = vpop.permute.xlu0 %2583
      %2585 = vrot.lane.b32.xlu0 %v2523, 16
      %v2586 = vpop.permute.xlu0 %2585
      %2587 = vrot.lane.b32.xlu0 %v2524, 16
      %v2588 = vpop.permute.xlu0 %2587
      %2589 = vrot.lane.b32.xlu0 %v2525, 16
      %v2590 = vpop.permute.xlu0 %2589
      %v2591 = vsel %vm555, %v2584, %v2586
      %v2592 = vsel %vm555, %v2588, %v2590
      %v2597 = vsel %vm555, 0.0, %v2584
      %v2598 = vsel %vm555, 0.0, %v2588
      %s2599 = scalar_lea.vmem %s14, 2
      %v2600 = vld [vmem:[%s2599] ss:$4 sm:$0x3]
      %v2602 = vlaneseq
      %v2603 = vshrl.u32 %v2602, 7
      %v2604 = vsub.s32 0, %v2603
      %v2605 = vrot.slane %v2600, %v2604
      %v2606 = vlaneseq
      %v2607 = vshrl.u32 %v2606, 7
      %v2608 = vsub.s32 1, %v2607
      %v2609 = vrot.slane %v2600, %v2608
      %v2612 = vmul.f32 %v2597, %v2605
      %v2613 = vmul.f32 %v2591, %v2609
      %v2614 = vmul.f32 %v2598, %v2605
      %v2615 = vmul.f32 %v2592, %v2609
      %v2616 = vadd.f32 %v2579, %v2612
      %v2617 = vadd.f32 %v2580, %v2613
      %v2618 = vadd.f32 %v2581, %v2614
      %v2619 = vadd.f32 %v2582, %v2615
      %2620 = vrot.lane.b32.xlu0 %v2522, 17
      %v2621 = vpop.permute.xlu0 %2620
      %2622 = vrot.lane.b32.xlu0 %v2523, 17
      %v2623 = vpop.permute.xlu0 %2622
      %2624 = vrot.lane.b32.xlu0 %v2524, 17
      %v2625 = vpop.permute.xlu0 %2624
      %2626 = vrot.lane.b32.xlu0 %v2525, 17
      %v2627 = vpop.permute.xlu0 %2626
      %v2628 = vsel %vm531, %v2621, %v2623
      %v2629 = vsel %vm531, %v2625, %v2627
      %v2634 = vsel %vm531, 0.0, %v2621
      %v2635 = vsel %vm531, 0.0, %v2625
      %s2636 = scalar_lea.vmem %s14, 3
      %v2637 = vld [vmem:[%s2636] ss:$4 sm:$0x3]
      %v2639 = vlaneseq
      %v2640 = vshrl.u32 %v2639, 7
      %v2641 = vsub.s32 0, %v2640
      %v2642 = vrot.slane %v2637, %v2641
      %v2643 = vlaneseq
      %v2644 = vshrl.u32 %v2643, 7
      %v2645 = vsub.s32 1, %v2644
      %v2646 = vrot.slane %v2637, %v2645
      %v2649 = vmul.f32 %v2634, %v2642
      %v2650 = vmul.f32 %v2628, %v2646
      %v2651 = vmul.f32 %v2635, %v2642
      %v2652 = vmul.f32 %v2629, %v2646
      %v2653 = vadd.f32 %v2616, %v2649
      %v2654 = vadd.f32 %v2617, %v2650
      %v2655 = vadd.f32 %v2618, %v2651
      %v2656 = vadd.f32 %v2619, %v2652
      %2661 = vrot.lane.b32.xlu0 %v2653, 17
      %v2662 = vpop.permute.xlu0 %2661
      %2663 = vrot.lane.b32.xlu0 %v2654, 17
      %v2664 = vpop.permute.xlu0 %2663
      %2665 = vrot.lane.b32.xlu0 %v2655, 17
      %v2666 = vpop.permute.xlu0 %2665
      %2667 = vrot.lane.b32.xlu0 %v2656, 17
      %v2668 = vpop.permute.xlu0 %2667
      %2669 = vrot.lane.b32.xlu0 %v1477, 17
      %v2670 = vpop.permute.xlu0 %2669
      %2671 = vrot.lane.b32.xlu0 %v1478, 17
      %v2672 = vpop.permute.xlu0 %2671
      %v2673 = vsel %vm531, %v2662, %v2664
      %v2674 = vsel %vm531, %v2666, %v2668
      %v2675 = vsel %vm531, %v2670, %v2672
      %v2682 = vsel %vm531, 0.0, %v2662
      %v2683 = vsel %vm531, 0.0, %v2666
      %v2684 = vsel %vm531, 0.0, %v2670
      %v2685 = vmul.f32 %v2682, %v541
      %v2686 = vmul.f32 %v2673, %v545
      %v2687 = vmul.f32 %v2683, %v541
      %v2688 = vmul.f32 %v2674, %v545
      %v2689 = vmul.f32 %v2684, %v541
      %v2690 = vmul.f32 %v2675, %v545
      %v2691 = vld [vmem:[%s8] sm:$0xff]
      %2692 = vrot.lane.b32.xlu0 %v2653, 16
      %v2693 = vpop.permute.xlu0 %2692
      %2694 = vrot.lane.b32.xlu0 %v2654, 16
      %v2695 = vpop.permute.xlu0 %2694
      %2696 = vrot.lane.b32.xlu0 %v2655, 16
      %v2697 = vpop.permute.xlu0 %2696
      %2698 = vrot.lane.b32.xlu0 %v2656, 16
      %v2699 = vpop.permute.xlu0 %2698
      %2700 = vrot.lane.b32.xlu0 %v1477, 16
      %v2701 = vpop.permute.xlu0 %2700
      %2702 = vrot.lane.b32.xlu0 %v1478, 16
      %v2703 = vpop.permute.xlu0 %2702
      %v2704 = vsel %vm555, %v2693, %v2695
      %v2705 = vsel %vm555, %v2697, %v2699
      %v2706 = vsel %vm555, %v2701, %v2703
      %v2713 = vsel %vm555, 0.0, %v2693
      %v2714 = vsel %vm555, 0.0, %v2697
      %v2715 = vsel %vm555, 0.0, %v2701
      %v2716 = vmul.f32 %v2713, %v566
      %v2717 = vmul.f32 %v2704, %v570
      %v2718 = vmul.f32 %v2714, %v566
      %v2719 = vmul.f32 %v2705, %v570
      %v2720 = vmul.f32 %v2715, %v566
      %v2721 = vmul.f32 %v2706, %v570
      %s2722 = scalar_lea.vmem %s8, 8
      %v2723 = vld [vmem:[%s2722] sm:$0xff]
      %vm2724 = vcmask 195584
      %v2726 = vsel %vm2724, %v2723, 0
      %2728 = vmatprep.subr.mxu0 %v2717
      %2729 = vmatpush1.msra.mxu0 %v2716
      %2730 = vmatprep.subr.mxu0 %v2719
      %2731 = vmatpush1.msra.mxu0 %v2718
      %2732 = vmatprep.subr.mxu0 %v2721
      %2733 = vmatpush1.msra.mxu0 %v2720
      %2734 = vmatprep.subr.mxu0 0.0
      %2735 = vmatpush1.msra.mxu0 0.0
      %2736 = vmatprep.subr.mxu0 0.0
      %2737 = vmatpush1.msra.mxu0 0.0
      %2738 = vmatprep.subr.mxu0 0.0
      %2739 = vmatpush1.msra.mxu0 0.0
      %2740 = vmatprep.subr.mxu0 0.0
      %2741 = vmatpush1.msra.mxu0 0.0
      %2742 = vmatprep.subr.mxu0 0.0
      %2743 = vmatpush1.msra.mxu0 0.0
      %2744 = vmatprep.subr.mxu0 0.0
      %2745 = vmatpush1.msra.mxu0 0.0
      %2746 = vmatprep.subr.mxu0 0.0
      %2747 = vmatpush1.msra.mxu0 0.0
      %2748 = vmatprep.subr.mxu0 0.0
      %2749 = vmatpush1.msra.mxu0 0.0
      %2750 = vmatprep.subr.mxu0 0.0
      %2751 = vmatpush1.msra.mxu0 0.0
      %2752 = vmatprep.subr.mxu0 0.0
      %2753 = vmatpush1.msra.mxu0 0.0
      %2754 = vmatprep.subr.mxu0 0.0
      %2755 = vmatpush1.msra.mxu0 0.0
      %2756 = vmatprep.subr.mxu0 0.0
      %2757 = vmatpush1.msra.mxu0 0.0
      %2758 = vmatprep.subr.mxu0 0.0
      %2759 = vmatpush1.msra.mxu0 0.0
      %2760 = vmatprep.subr.mxu0 0.0
      %2761 = vmatpush1.msra.mxu0 0.0
      %2762 = vmatprep.subr.mxu0 0.0
      %2763 = vmatpush1.msra.mxu0 0.0
      %2764 = vmatprep.subr.mxu0 0.0
      %2765 = vmatpush1.msra.mxu0 0.0
      %2766 = vmatprep.subr.mxu0 0.0
      %2767 = vmatpush1.msra.mxu0 0.0
      %2768 = vmatprep.subr.mxu0 0.0
      %2769 = vmatpush1.msra.mxu0 0.0
      %2770 = vmatprep.subr.mxu0 0.0
      %2771 = vmatpush1.msra.mxu0 0.0
      %2772 = vmatprep.subr.mxu0 0.0
      %2773 = vmatpush1.msra.mxu0 0.0
      %2774 = vmatprep.subr.mxu0 0.0
      %2775 = vmatpush1.msra.mxu0 0.0
      %2776 = vmatprep.subr.mxu0 0.0
      %2777 = vmatpush1.msra.mxu0 0.0
      %2778 = vmatprep.subr.mxu0 0.0
      %2779 = vmatpush1.msra.mxu0 0.0
      %2780 = vmatprep.subr.mxu0 0.0
      %2781 = vmatpush1.msra.mxu0 0.0
      %2782 = vmatprep.subr.mxu0 0.0
      %2783 = vmatpush1.msra.mxu0 0.0
      %2784 = vmatprep.subr.mxu0 0.0
      %2785 = vmatpush1.msra.mxu0 0.0
      %2786 = vmatprep.subr.mxu0 0.0
      %2787 = vmatpush1.msra.mxu0 0.0
      %2788 = vmatprep.subr.mxu0 0.0
      %2789 = vmatpush1.msra.mxu0 0.0
      %2790 = vmatprep.subr.mxu0 0.0
      %2791 = vmatpush1.msra.mxu0 0.0
      %2792 = vmatprep.mubr.f32.mxu0 0.0
      %2793 = vmatmul.mubr.f32.gmra.mrb[0].mxu0 %v2726
      %v2794 = vpop.f32.mrb[0].mxu0
      %v2795 = vadd.f32 0.0, %v2794
      %v2796 = vpop.f32.mrb[0].mxu0
      %v2797 = vadd.f32 0.0, %v2796
      %2798 = vdwg.mxu0
      %v2800 = vsel %vm2724, %v2691, 0
      %2802 = vmatprep.subr.mxu0 %v2686
      %2803 = vmatpush1.msra.mxu0 %v2685
      %2804 = vmatprep.subr.mxu0 %v2688
      %2805 = vmatpush1.msra.mxu0 %v2687
      %2806 = vmatprep.subr.mxu0 %v2690
      %2807 = vmatpush1.msra.mxu0 %v2689
      %2808 = vmatprep.subr.mxu0 0.0
      %2809 = vmatpush1.msra.mxu0 0.0
      %2810 = vmatprep.subr.mxu0 0.0
      %2811 = vmatpush1.msra.mxu0 0.0
      %2812 = vmatprep.subr.mxu0 0.0
      %2813 = vmatpush1.msra.mxu0 0.0
      %2814 = vmatprep.subr.mxu0 0.0
      %2815 = vmatpush1.msra.mxu0 0.0
      %2816 = vmatprep.subr.mxu0 0.0
      %2817 = vmatpush1.msra.mxu0 0.0
      %2818 = vmatprep.subr.mxu0 0.0
      %2819 = vmatpush1.msra.mxu0 0.0
      %2820 = vmatprep.subr.mxu0 0.0
      %2821 = vmatpush1.msra.mxu0 0.0
      %2822 = vmatprep.subr.mxu0 0.0
      %2823 = vmatpush1.msra.mxu0 0.0
      %2824 = vmatprep.subr.mxu0 0.0
      %2825 = vmatpush1.msra.mxu0 0.0
      %2826 = vmatprep.subr.mxu0 0.0
      %2827 = vmatpush1.msra.mxu0 0.0
      %2828 = vmatprep.subr.mxu0 0.0
      %2829 = vmatpush1.msra.mxu0 0.0
      %2830 = vmatprep.subr.mxu0 0.0
      %2831 = vmatpush1.msra.mxu0 0.0
      %2832 = vmatprep.subr.mxu0 0.0
      %2833 = vmatpush1.msra.mxu0 0.0
      %2834 = vmatprep.subr.mxu0 0.0
      %2835 = vmatpush1.msra.mxu0 0.0
      %2836 = vmatprep.subr.mxu0 0.0
      %2837 = vmatpush1.msra.mxu0 0.0
      %2838 = vmatprep.subr.mxu0 0.0
      %2839 = vmatpush1.msra.mxu0 0.0
      %2840 = vmatprep.subr.mxu0 0.0
      %2841 = vmatpush1.msra.mxu0 0.0
      %2842 = vmatprep.subr.mxu0 0.0
      %2843 = vmatpush1.msra.mxu0 0.0
      %2844 = vmatprep.subr.mxu0 0.0
      %2845 = vmatpush1.msra.mxu0 0.0
      %2846 = vmatprep.subr.mxu0 0.0
      %2847 = vmatpush1.msra.mxu0 0.0
      %2848 = vmatprep.subr.mxu0 0.0
      %2849 = vmatpush1.msra.mxu0 0.0
      %2850 = vmatprep.subr.mxu0 0.0
      %2851 = vmatpush1.msra.mxu0 0.0
      %2852 = vmatprep.subr.mxu0 0.0
      %2853 = vmatpush1.msra.mxu0 0.0
      %2854 = vmatprep.subr.mxu0 0.0
      %2855 = vmatpush1.msra.mxu0 0.0
      %2856 = vmatprep.subr.mxu0 0.0
      %2857 = vmatpush1.msra.mxu0 0.0
      %2858 = vmatprep.subr.mxu0 0.0
      %2859 = vmatpush1.msra.mxu0 0.0
      %2860 = vmatprep.subr.mxu0 0.0
      %2861 = vmatpush1.msra.mxu0 0.0
      %2862 = vmatprep.subr.mxu0 0.0
      %2863 = vmatpush1.msra.mxu0 0.0
      %2864 = vmatprep.subr.mxu0 0.0
      %2865 = vmatpush1.msra.mxu0 0.0
      %2866 = vmatprep.mubr.f32.mxu0 0.0
      %2867 = vmatmul.mubr.f32.gmra.mrb[0].mxu0 %v2800
      %v2868 = vpop.f32.mrb[0].mxu0
      %v2869 = vadd.f32 %v2795, %v2868
      %v2870 = vpop.f32.mrb[0].mxu0
      %v2871 = vadd.f32 %v2797, %v2870
      %2872 = vdwg.mxu0
      %2873 = vrot.lane.b32.xlu0 %v2653, 15
      %v2874 = vpop.permute.xlu0 %2873
      %2875 = vrot.lane.b32.xlu0 %v2654, 15
      %v2876 = vpop.permute.xlu0 %2875
      %2877 = vrot.lane.b32.xlu0 %v2655, 15
      %v2878 = vpop.permute.xlu0 %2877
      %2879 = vrot.lane.b32.xlu0 %v2656, 15
      %v2880 = vpop.permute.xlu0 %2879
      %2881 = vrot.lane.b32.xlu0 %v1477, 15
      %v2882 = vpop.permute.xlu0 %2881
      %2883 = vrot.lane.b32.xlu0 %v1478, 15
      %v2884 = vpop.permute.xlu0 %2883
      %v2885 = vsel %vm743, %v2874, %v2876
      %v2886 = vsel %vm743, %v2878, %v2880
      %v2887 = vsel %vm743, %v2882, %v2884
      %v2894 = vsel %vm743, 0.0, %v2874
      %v2895 = vsel %vm743, 0.0, %v2878
      %v2896 = vsel %vm743, 0.0, %v2882
      %v2897 = vmul.f32 %v2894, %v754
      %v2898 = vmul.f32 %v2885, %v758
      %v2899 = vmul.f32 %v2895, %v754
      %v2900 = vmul.f32 %v2886, %v758
      %v2901 = vmul.f32 %v2896, %v754
      %v2902 = vmul.f32 %v2887, %v758
      %s2903 = scalar_lea.vmem %s8, 16
      %v2904 = vld [vmem:[%s2903] sm:$0xff]
      %v2906 = vsel %vm2724, %v2904, 0
      %2908 = vmatprep.subr.mxu0 %v2898
      %2909 = vmatpush1.msra.mxu0 %v2897
      %2910 = vmatprep.subr.mxu0 %v2900
      %2911 = vmatpush1.msra.mxu0 %v2899
      %2912 = vmatprep.subr.mxu0 %v2902
      %2913 = vmatpush1.msra.mxu0 %v2901
      %2914 = vmatprep.subr.mxu0 0.0
      %2915 = vmatpush1.msra.mxu0 0.0
      %2916 = vmatprep.subr.mxu0 0.0
      %2917 = vmatpush1.msra.mxu0 0.0
      %2918 = vmatprep.subr.mxu0 0.0
      %2919 = vmatpush1.msra.mxu0 0.0
      %2920 = vmatprep.subr.mxu0 0.0
      %2921 = vmatpush1.msra.mxu0 0.0
      %2922 = vmatprep.subr.mxu0 0.0
      %2923 = vmatpush1.msra.mxu0 0.0
      %2924 = vmatprep.subr.mxu0 0.0
      %2925 = vmatpush1.msra.mxu0 0.0
      %2926 = vmatprep.subr.mxu0 0.0
      %2927 = vmatpush1.msra.mxu0 0.0
      %2928 = vmatprep.subr.mxu0 0.0
      %2929 = vmatpush1.msra.mxu0 0.0
      %2930 = vmatprep.subr.mxu0 0.0
      %2931 = vmatpush1.msra.mxu0 0.0
      %2932 = vmatprep.subr.mxu0 0.0
      %2933 = vmatpush1.msra.mxu0 0.0
      %2934 = vmatprep.subr.mxu0 0.0
      %2935 = vmatpush1.msra.mxu0 0.0
      %2936 = vmatprep.subr.mxu0 0.0
      %2937 = vmatpush1.msra.mxu0 0.0
      %2938 = vmatprep.subr.mxu0 0.0
      %2939 = vmatpush1.msra.mxu0 0.0
      %2940 = vmatprep.subr.mxu0 0.0
      %2941 = vmatpush1.msra.mxu0 0.0
      %2942 = vmatprep.subr.mxu0 0.0
      %2943 = vmatpush1.msra.mxu0 0.0
      %2944 = vmatprep.subr.mxu0 0.0
      %2945 = vmatpush1.msra.mxu0 0.0
      %2946 = vmatprep.subr.mxu0 0.0
      %2947 = vmatpush1.msra.mxu0 0.0
      %2948 = vmatprep.subr.mxu0 0.0
      %2949 = vmatpush1.msra.mxu0 0.0
      %2950 = vmatprep.subr.mxu0 0.0
      %2951 = vmatpush1.msra.mxu0 0.0
      %2952 = vmatprep.subr.mxu0 0.0
      %2953 = vmatpush1.msra.mxu0 0.0
      %2954 = vmatprep.subr.mxu0 0.0
      %2955 = vmatpush1.msra.mxu0 0.0
      %2956 = vmatprep.subr.mxu0 0.0
      %2957 = vmatpush1.msra.mxu0 0.0
      %2958 = vmatprep.subr.mxu0 0.0
      %2959 = vmatpush1.msra.mxu0 0.0
      %2960 = vmatprep.subr.mxu0 0.0
      %2961 = vmatpush1.msra.mxu0 0.0
      %2962 = vmatprep.subr.mxu0 0.0
      %2963 = vmatpush1.msra.mxu0 0.0
      %2964 = vmatprep.subr.mxu0 0.0
      %2965 = vmatpush1.msra.mxu0 0.0
      %2966 = vmatprep.subr.mxu0 0.0
      %2967 = vmatpush1.msra.mxu0 0.0
      %2968 = vmatprep.subr.mxu0 0.0
      %2969 = vmatpush1.msra.mxu0 0.0
      %2970 = vmatprep.subr.mxu0 0.0
      %2971 = vmatpush1.msra.mxu0 0.0
      %2972 = vmatprep.mubr.f32.mxu0 0.0
      %2973 = vmatmul.mubr.f32.gmra.mrb[0].mxu0 %v2906
      %v2974 = vpop.f32.mrb[0].mxu0
      %v2975 = vadd.f32 0.0, %v2974
      %v2976 = vpop.f32.mrb[0].mxu0
      %v2977 = vadd.f32 0.0, %v2976
      %2978 = vdwg.mxu0
      %v2979 = vadd.f32 %v2869, %v2975
      %v2980 = vadd.f32 %v2871, %v2977
      %2981 = vrot.lane.b32.xlu0 %v2653, 1
      %v2982 = vpop.permute.xlu0 %2981
      %2983 = vrot.lane.b32.xlu0 %v2654, 1
      %v2984 = vpop.permute.xlu0 %2983
      %2985 = vrot.lane.b32.xlu0 %v2655, 1
      %v2986 = vpop.permute.xlu0 %2985
      %2987 = vrot.lane.b32.xlu0 %v2656, 1
      %v2988 = vpop.permute.xlu0 %2987
      %2989 = vrot.lane.b32.xlu0 %v1477, 1
      %v2990 = vpop.permute.xlu0 %2989
      %2991 = vrot.lane.b32.xlu0 %v1478, 1
      %v2992 = vpop.permute.xlu0 %2991
      %v2993 = vsel %vm851, %v2982, %v2984
      %v2994 = vsel %vm851, %v2986, %v2988
      %v2995 = vsel %vm851, %v2990, %v2992
      %v3002 = vsel %vm851, 0.0, %v2982
      %v3003 = vsel %vm851, 0.0, %v2986
      %v3004 = vsel %vm851, 0.0, %v2990
      %v3005 = vmul.f32 %v3002, %v862
      %v3006 = vmul.f32 %v2993, %v866
      %v3007 = vmul.f32 %v3003, %v862
      %v3008 = vmul.f32 %v2994, %v866
      %v3009 = vmul.f32 %v3004, %v862
      %v3010 = vmul.f32 %v2995, %v866
      %s3011 = scalar_lea.vmem %s8, 24
      %v3012 = vld [vmem:[%s3011] sm:$0xff]
      %v3014 = vsel %vm2724, %v3012, 0
      %3016 = vmatprep.subr.mxu0 %v3006
      %3017 = vmatpush1.msra.mxu0 %v3005
      %3018 = vmatprep.subr.mxu0 %v3008
      %3019 = vmatpush1.msra.mxu0 %v3007
      %3020 = vmatprep.subr.mxu0 %v3010
      %3021 = vmatpush1.msra.mxu0 %v3009
      %3022 = vmatprep.subr.mxu0 0.0
      %3023 = vmatpush1.msra.mxu0 0.0
      %3024 = vmatprep.subr.mxu0 0.0
      %3025 = vmatpush1.msra.mxu0 0.0
      %3026 = vmatprep.subr.mxu0 0.0
      %3027 = vmatpush1.msra.mxu0 0.0
      %3028 = vmatprep.subr.mxu0 0.0
      %3029 = vmatpush1.msra.mxu0 0.0
      %3030 = vmatprep.subr.mxu0 0.0
      %3031 = vmatpush1.msra.mxu0 0.0
      %3032 = vmatprep.subr.mxu0 0.0
      %3033 = vmatpush1.msra.mxu0 0.0
      %3034 = vmatprep.subr.mxu0 0.0
      %3035 = vmatpush1.msra.mxu0 0.0
      %3036 = vmatprep.subr.mxu0 0.0
      %3037 = vmatpush1.msra.mxu0 0.0
      %3038 = vmatprep.subr.mxu0 0.0
      %3039 = vmatpush1.msra.mxu0 0.0
      %3040 = vmatprep.subr.mxu0 0.0
      %3041 = vmatpush1.msra.mxu0 0.0
      %3042 = vmatprep.subr.mxu0 0.0
      %3043 = vmatpush1.msra.mxu0 0.0
      %3044 = vmatprep.subr.mxu0 0.0
      %3045 = vmatpush1.msra.mxu0 0.0
      %3046 = vmatprep.subr.mxu0 0.0
      %3047 = vmatpush1.msra.mxu0 0.0
      %3048 = vmatprep.subr.mxu0 0.0
      %3049 = vmatpush1.msra.mxu0 0.0
      %3050 = vmatprep.subr.mxu0 0.0
      %3051 = vmatpush1.msra.mxu0 0.0
      %3052 = vmatprep.subr.mxu0 0.0
      %3053 = vmatpush1.msra.mxu0 0.0
      %3054 = vmatprep.subr.mxu0 0.0
      %3055 = vmatpush1.msra.mxu0 0.0
      %3056 = vmatprep.subr.mxu0 0.0
      %3057 = vmatpush1.msra.mxu0 0.0
      %3058 = vmatprep.subr.mxu0 0.0
      %3059 = vmatpush1.msra.mxu0 0.0
      %3060 = vmatprep.subr.mxu0 0.0
      %3061 = vmatpush1.msra.mxu0 0.0
      %3062 = vmatprep.subr.mxu0 0.0
      %3063 = vmatpush1.msra.mxu0 0.0
      %3064 = vmatprep.subr.mxu0 0.0
      %3065 = vmatpush1.msra.mxu0 0.0
      %3066 = vmatprep.subr.mxu0 0.0
      %3067 = vmatpush1.msra.mxu0 0.0
      %3068 = vmatprep.subr.mxu0 0.0
      %3069 = vmatpush1.msra.mxu0 0.0
      %3070 = vmatprep.subr.mxu0 0.0
      %3071 = vmatpush1.msra.mxu0 0.0
      %3072 = vmatprep.subr.mxu0 0.0
      %3073 = vmatpush1.msra.mxu0 0.0
      %3074 = vmatprep.subr.mxu0 0.0
      %3075 = vmatpush1.msra.mxu0 0.0
      %3076 = vmatprep.subr.mxu0 0.0
      %3077 = vmatpush1.msra.mxu0 0.0
      %3078 = vmatprep.subr.mxu0 0.0
      %3079 = vmatpush1.msra.mxu0 0.0
      %3080 = vmatprep.mubr.f32.mxu0 0.0
      %3081 = vmatmul.mubr.f32.gmra.mrb[0].mxu0 %v3014
      %v3082 = vpop.f32.mrb[0].mxu0
      %v3083 = vadd.f32 0.0, %v3082
      %v3084 = vpop.f32.mrb[0].mxu0
      %v3085 = vadd.f32 0.0, %v3084
      %3086 = vdwg.mxu0
      %v3087 = vadd.f32 %v2979, %v3083
      %v3088 = vadd.f32 %v2980, %v3085
      %s3089 = scalar_lea.vmem %s8, 32
      %v3090 = vld [vmem:[%s3089] sm:$0xff]
      %v3092 = vsel %vm2724, %v3090, 0
      %3094 = vmatprep.subr.mxu0 %v2654
      %3095 = vmatpush1.msra.mxu0 %v2653
      %3096 = vmatprep.subr.mxu0 %v2656
      %3097 = vmatpush1.msra.mxu0 %v2655
      %3098 = vmatprep.subr.mxu0 %v1478
      %3099 = vmatpush1.msra.mxu0 %v1477
      %3100 = vmatprep.subr.mxu0 0.0
      %3101 = vmatpush1.msra.mxu0 0.0
      %3102 = vmatprep.subr.mxu0 0.0
      %3103 = vmatpush1.msra.mxu0 0.0
      %3104 = vmatprep.subr.mxu0 0.0
      %3105 = vmatpush1.msra.mxu0 0.0
      %3106 = vmatprep.subr.mxu0 0.0
      %3107 = vmatpush1.msra.mxu0 0.0
      %3108 = vmatprep.subr.mxu0 0.0
      %3109 = vmatpush1.msra.mxu0 0.0
      %3110 = vmatprep.subr.mxu0 0.0
      %3111 = vmatpush1.msra.mxu0 0.0
      %3112 = vmatprep.subr.mxu0 0.0
      %3113 = vmatpush1.msra.mxu0 0.0
      %3114 = vmatprep.subr.mxu0 0.0
      %3115 = vmatpush1.msra.mxu0 0.0
      %3116 = vmatprep.subr.mxu0 0.0
      %3117 = vmatpush1.msra.mxu0 0.0
      %3118 = vmatprep.subr.mxu0 0.0
      %3119 = vmatpush1.msra.mxu0 0.0
      %3120 = vmatprep.subr.mxu0 0.0
      %3121 = vmatpush1.msra.mxu0 0.0
      %3122 = vmatprep.subr.mxu0 0.0
      %3123 = vmatpush1.msra.mxu0 0.0
      %3124 = vmatprep.subr.mxu0 0.0
      %3125 = vmatpush1.msra.mxu0 0.0
      %3126 = vmatprep.subr.mxu0 0.0
      %3127 = vmatpush1.msra.mxu0 0.0
      %3128 = vmatprep.subr.mxu0 0.0
      %3129 = vmatpush1.msra.mxu0 0.0
      %3130 = vmatprep.subr.mxu0 0.0
      %3131 = vmatpush1.msra.mxu0 0.0
      %3132 = vmatprep.subr.mxu0 0.0
      %3133 = vmatpush1.msra.mxu0 0.0
      %3134 = vmatprep.subr.mxu0 0.0
      %3135 = vmatpush1.msra.mxu0 0.0
      %3136 = vmatprep.subr.mxu0 0.0
      %3137 = vmatpush1.msra.mxu0 0.0
      %3138 = vmatprep.subr.mxu0 0.0
      %3139 = vmatpush1.msra.mxu0 0.0
      %3140 = vmatprep.subr.mxu0 0.0
      %3141 = vmatpush1.msra.mxu0 0.0
      %3142 = vmatprep.subr.mxu0 0.0
      %3143 = vmatpush1.msra.mxu0 0.0
      %3144 = vmatprep.subr.mxu0 0.0
      %3145 = vmatpush1.msra.mxu0 0.0
      %3146 = vmatprep.subr.mxu0 0.0
      %3147 = vmatpush1.msra.mxu0 0.0
      %3148 = vmatprep.subr.mxu0 0.0
      %3149 = vmatpush1.msra.mxu0 0.0
      %3150 = vmatprep.subr.mxu0 0.0
      %3151 = vmatpush1.msra.mxu0 0.0
      %3152 = vmatprep.subr.mxu0 0.0
      %3153 = vmatpush1.msra.mxu0 0.0
      %3154 = vmatprep.subr.mxu0 0.0
      %3155 = vmatpush1.msra.mxu0 0.0
      %3156 = vmatprep.subr.mxu0 0.0
      %3157 = vmatpush1.msra.mxu0 0.0
      %3158 = vmatprep.mubr.f32.mxu0 0.0
      %3159 = vmatmul.mubr.f32.gmra.mrb[0].mxu0 %v3092
      %v3160 = vpop.f32.mrb[0].mxu0
      %v3161 = vadd.f32 0.0, %v3160
      %v3162 = vpop.f32.mrb[0].mxu0
      %v3163 = vadd.f32 0.0, %v3162
      %3164 = vdwg.mxu0
      %v3165 = vadd.f32 %v3087, %v3161
      %v3166 = vadd.f32 %v3088, %v3163
      %3167 = vrot.lane.b32.xlu0 %v2653, 127
      %v3168 = vpop.permute.xlu0 %3167
      %3169 = vrot.lane.b32.xlu0 %v2654, 127
      %v3170 = vpop.permute.xlu0 %3169
      %3171 = vrot.lane.b32.xlu0 %v2655, 127
      %v3172 = vpop.permute.xlu0 %3171
      %3173 = vrot.lane.b32.xlu0 %v2656, 127
      %v3174 = vpop.permute.xlu0 %3173
      %v3175 = vsel %vm1041, %v3168, %v3170
      %v3176 = vsel %vm1041, %v3172, %v3174
      %v3181 = vsel %vm1041, %v3170, 0.0
      %v3182 = vsel %vm1041, %v3174, 0.0
      %v3183 = vmul.f32 %v3175, %v1052
      %v3184 = vmul.f32 %v3181, %v1056
      %v3185 = vmul.f32 %v3176, %v1052
      %v3186 = vmul.f32 %v3182, %v1056
      %v3187 = vmul.f32 %v1485, %v1052
      %v3188 = vmul.f32 %v1488, %v1056
      %s3189 = scalar_lea.vmem %s8, 40
      %v3190 = vld [vmem:[%s3189] sm:$0xff]
      %v3192 = vsel %vm2724, %v3190, 0
      %3194 = vmatprep.subr.mxu0 %v3184
      %3195 = vmatpush1.msra.mxu0 %v3183
      %3196 = vmatprep.subr.mxu0 %v3186
      %3197 = vmatpush1.msra.mxu0 %v3185
      %3198 = vmatprep.subr.mxu0 %v3188
      %3199 = vmatpush1.msra.mxu0 %v3187
      %3200 = vmatprep.subr.mxu0 0.0
      %3201 = vmatpush1.msra.mxu0 0.0
      %3202 = vmatprep.subr.mxu0 0.0
      %3203 = vmatpush1.msra.mxu0 0.0
      %3204 = vmatprep.subr.mxu0 0.0
      %3205 = vmatpush1.msra.mxu0 0.0
      %3206 = vmatprep.subr.mxu0 0.0
      %3207 = vmatpush1.msra.mxu0 0.0
      %3208 = vmatprep.subr.mxu0 0.0
      %3209 = vmatpush1.msra.mxu0 0.0
      %3210 = vmatprep.subr.mxu0 0.0
      %3211 = vmatpush1.msra.mxu0 0.0
      %3212 = vmatprep.subr.mxu0 0.0
      %3213 = vmatpush1.msra.mxu0 0.0
      %3214 = vmatprep.subr.mxu0 0.0
      %3215 = vmatpush1.msra.mxu0 0.0
      %3216 = vmatprep.subr.mxu0 0.0
      %3217 = vmatpush1.msra.mxu0 0.0
      %3218 = vmatprep.subr.mxu0 0.0
      %3219 = vmatpush1.msra.mxu0 0.0
      %3220 = vmatprep.subr.mxu0 0.0
      %3221 = vmatpush1.msra.mxu0 0.0
      %3222 = vmatprep.subr.mxu0 0.0
      %3223 = vmatpush1.msra.mxu0 0.0
      %3224 = vmatprep.subr.mxu0 0.0
      %3225 = vmatpush1.msra.mxu0 0.0
      %3226 = vmatprep.subr.mxu0 0.0
      %3227 = vmatpush1.msra.mxu0 0.0
      %3228 = vmatprep.subr.mxu0 0.0
      %3229 = vmatpush1.msra.mxu0 0.0
      %3230 = vmatprep.subr.mxu0 0.0
      %3231 = vmatpush1.msra.mxu0 0.0
      %3232 = vmatprep.subr.mxu0 0.0
      %3233 = vmatpush1.msra.mxu0 0.0
      %3234 = vmatprep.subr.mxu0 0.0
      %3235 = vmatpush1.msra.mxu0 0.0
      %3236 = vmatprep.subr.mxu0 0.0
      %3237 = vmatpush1.msra.mxu0 0.0
      %3238 = vmatprep.subr.mxu0 0.0
      %3239 = vmatpush1.msra.mxu0 0.0
      %3240 = vmatprep.subr.mxu0 0.0
      %3241 = vmatpush1.msra.mxu0 0.0
      %3242 = vmatprep.subr.mxu0 0.0
      %3243 = vmatpush1.msra.mxu0 0.0
      %3244 = vmatprep.subr.mxu0 0.0
      %3245 = vmatpush1.msra.mxu0 0.0
      %3246 = vmatprep.subr.mxu0 0.0
      %3247 = vmatpush1.msra.mxu0 0.0
      %3248 = vmatprep.subr.mxu0 0.0
      %3249 = vmatpush1.msra.mxu0 0.0
      %3250 = vmatprep.subr.mxu0 0.0
      %3251 = vmatpush1.msra.mxu0 0.0
      %3252 = vmatprep.subr.mxu0 0.0
      %3253 = vmatpush1.msra.mxu0 0.0
      %3254 = vmatprep.subr.mxu0 0.0
      %3255 = vmatpush1.msra.mxu0 0.0
      %3256 = vmatprep.subr.mxu0 0.0
      %3257 = vmatpush1.msra.mxu0 0.0
      %3258 = vmatprep.mubr.f32.mxu0 0.0
      %3259 = vmatmul.mubr.f32.gmra.mrb[0].mxu0 %v3192
      %v3260 = vpop.f32.mrb[0].mxu0
      %v3261 = vadd.f32 0.0, %v3260
      %v3262 = vpop.f32.mrb[0].mxu0
      %v3263 = vadd.f32 0.0, %v3262
      %3264 = vdwg.mxu0
      %v3265 = vadd.f32 %v3165, %v3261
      %v3266 = vadd.f32 %v3166, %v3263
      %3267 = vrot.lane.b32.xlu0 %v2653, 113
      %v3268 = vpop.permute.xlu0 %3267
      %3269 = vrot.lane.b32.xlu0 %v2654, 113
      %v3270 = vpop.permute.xlu0 %3269
      %3271 = vrot.lane.b32.xlu0 %v2655, 113
      %v3272 = vpop.permute.xlu0 %3271
      %3273 = vrot.lane.b32.xlu0 %v2656, 113
      %v3274 = vpop.permute.xlu0 %3273
      %3275 = vrot.lane.b32.xlu0 %v1477, 113
      %v3276 = vpop.permute.xlu0 %3275
      %3277 = vrot.lane.b32.xlu0 %v1478, 113
      %v3278 = vpop.permute.xlu0 %3277
      %v3279 = vsel %vm1149, %v3268, %v3270
      %v3280 = vsel %vm1149, %v3272, %v3274
      %v3281 = vsel %vm1149, %v3276, %v3278
      %v3288 = vsel %vm1149, %v3270, 0.0
      %v3289 = vsel %vm1149, %v3274, 0.0
      %v3290 = vsel %vm1149, %v3278, 0.0
      %v3291 = vmul.f32 %v3279, %v1160
      %v3292 = vmul.f32 %v3288, %v1164
      %v3293 = vmul.f32 %v3280, %v1160
      %v3294 = vmul.f32 %v3289, %v1164
      %v3295 = vmul.f32 %v3281, %v1160
      %v3296 = vmul.f32 %v3290, %v1164
      %s3297 = scalar_lea.vmem %s8, 48
      %v3298 = vld [vmem:[%s3297] sm:$0xff]
      %v3300 = vsel %vm2724, %v3298, 0
      %3302 = vmatprep.subr.mxu0 %v3292
      %3303 = vmatpush1.msra.mxu0 %v3291
      %3304 = vmatprep.subr.mxu0 %v3294
      %3305 = vmatpush1.msra.mxu0 %v3293
      %3306 = vmatprep.subr.mxu0 %v3296
      %3307 = vmatpush1.msra.mxu0 %v3295
      %3308 = vmatprep.subr.mxu0 0.0
      %3309 = vmatpush1.msra.mxu0 0.0
      %3310 = vmatprep.subr.mxu0 0.0
      %3311 = vmatpush1.msra.mxu0 0.0
      %3312 = vmatprep.subr.mxu0 0.0
      %3313 = vmatpush1.msra.mxu0 0.0
      %3314 = vmatprep.subr.mxu0 0.0
      %3315 = vmatpush1.msra.mxu0 0.0
      %3316 = vmatprep.subr.mxu0 0.0
      %3317 = vmatpush1.msra.mxu0 0.0
      %3318 = vmatprep.subr.mxu0 0.0
      %3319 = vmatpush1.msra.mxu0 0.0
      %3320 = vmatprep.subr.mxu0 0.0
      %3321 = vmatpush1.msra.mxu0 0.0
      %3322 = vmatprep.subr.mxu0 0.0
      %3323 = vmatpush1.msra.mxu0 0.0
      %3324 = vmatprep.subr.mxu0 0.0
      %3325 = vmatpush1.msra.mxu0 0.0
      %3326 = vmatprep.subr.mxu0 0.0
      %3327 = vmatpush1.msra.mxu0 0.0
      %3328 = vmatprep.subr.mxu0 0.0
      %3329 = vmatpush1.msra.mxu0 0.0
      %3330 = vmatprep.subr.mxu0 0.0
      %3331 = vmatpush1.msra.mxu0 0.0
      %3332 = vmatprep.subr.mxu0 0.0
      %3333 = vmatpush1.msra.mxu0 0.0
      %3334 = vmatprep.subr.mxu0 0.0
      %3335 = vmatpush1.msra.mxu0 0.0
      %3336 = vmatprep.subr.mxu0 0.0
      %3337 = vmatpush1.msra.mxu0 0.0
      %3338 = vmatprep.subr.mxu0 0.0
      %3339 = vmatpush1.msra.mxu0 0.0
      %3340 = vmatprep.subr.mxu0 0.0
      %3341 = vmatpush1.msra.mxu0 0.0
      %3342 = vmatprep.subr.mxu0 0.0
      %3343 = vmatpush1.msra.mxu0 0.0
      %3344 = vmatprep.subr.mxu0 0.0
      %3345 = vmatpush1.msra.mxu0 0.0
      %3346 = vmatprep.subr.mxu0 0.0
      %3347 = vmatpush1.msra.mxu0 0.0
      %3348 = vmatprep.subr.mxu0 0.0
      %3349 = vmatpush1.msra.mxu0 0.0
      %3350 = vmatprep.subr.mxu0 0.0
      %3351 = vmatpush1.msra.mxu0 0.0
      %3352 = vmatprep.subr.mxu0 0.0
      %3353 = vmatpush1.msra.mxu0 0.0
      %3354 = vmatprep.subr.mxu0 0.0
      %3355 = vmatpush1.msra.mxu0 0.0
      %3356 = vmatprep.subr.mxu0 0.0
      %3357 = vmatpush1.msra.mxu0 0.0
      %3358 = vmatprep.subr.mxu0 0.0
      %3359 = vmatpush1.msra.mxu0 0.0
      %3360 = vmatprep.subr.mxu0 0.0
      %3361 = vmatpush1.msra.mxu0 0.0
      %3362 = vmatprep.subr.mxu0 0.0
      %3363 = vmatpush1.msra.mxu0 0.0
      %3364 = vmatprep.subr.mxu0 0.0
      %3365 = vmatpush1.msra.mxu0 0.0
      %3366 = vmatprep.mubr.f32.mxu0 0.0
      %3367 = vmatmul.mubr.f32.gmra.mrb[0].mxu0 %v3300
      %v3368 = vpop.f32.mrb[0].mxu0
      %v3369 = vadd.f32 0.0, %v3368
      %v3370 = vpop.f32.mrb[0].mxu0
      %v3371 = vadd.f32 0.0, %v3370
      %3372 = vdwg.mxu0
      %v3373 = vadd.f32 %v3265, %v3369
      %v3374 = vadd.f32 %v3266, %v3371
      %3375 = vrot.lane.b32.xlu0 %v2653, 112
      %v3376 = vpop.permute.xlu0 %3375
      %3377 = vrot.lane.b32.xlu0 %v2654, 112
      %v3378 = vpop.permute.xlu0 %3377
      %3379 = vrot.lane.b32.xlu0 %v2655, 112
      %v3380 = vpop.permute.xlu0 %3379
      %3381 = vrot.lane.b32.xlu0 %v2656, 112
      %v3382 = vpop.permute.xlu0 %3381
      %v3383 = vsel %vm1257, %v3376, %v3378
      %v3384 = vsel %vm1257, %v3380, %v3382
      %v3389 = vsel %vm1257, %v3378, 0.0
      %v3390 = vsel %vm1257, %v3382, 0.0
      %v3391 = vmul.f32 %v3383, %v1268
      %v3392 = vmul.f32 %v3389, %v1272
      %v3393 = vmul.f32 %v3384, %v1268
      %v3394 = vmul.f32 %v3390, %v1272
      %v3395 = vmul.f32 %v1495, %v1268
      %v3396 = vmul.f32 %v1498, %v1272
      %s3397 = scalar_lea.vmem %s8, 56
      %v3398 = vld [vmem:[%s3397] sm:$0xff]
      %v3400 = vsel %vm2724, %v3398, 0
      %3402 = vmatprep.subr.mxu0 %v3392
      %3403 = vmatpush1.msra.mxu0 %v3391
      %3404 = vmatprep.subr.mxu0 %v3394
      %3405 = vmatpush1.msra.mxu0 %v3393
      %3406 = vmatprep.subr.mxu0 %v3396
      %3407 = vmatpush1.msra.mxu0 %v3395
      %3408 = vmatprep.subr.mxu0 0.0
      %3409 = vmatpush1.msra.mxu0 0.0
      %3410 = vmatprep.subr.mxu0 0.0
      %3411 = vmatpush1.msra.mxu0 0.0
      %3412 = vmatprep.subr.mxu0 0.0
      %3413 = vmatpush1.msra.mxu0 0.0
      %3414 = vmatprep.subr.mxu0 0.0
      %3415 = vmatpush1.msra.mxu0 0.0
      %3416 = vmatprep.subr.mxu0 0.0
      %3417 = vmatpush1.msra.mxu0 0.0
      %3418 = vmatprep.subr.mxu0 0.0
      %3419 = vmatpush1.msra.mxu0 0.0
      %3420 = vmatprep.subr.mxu0 0.0
      %3421 = vmatpush1.msra.mxu0 0.0
      %3422 = vmatprep.subr.mxu0 0.0
      %3423 = vmatpush1.msra.mxu0 0.0
      %3424 = vmatprep.subr.mxu0 0.0
      %3425 = vmatpush1.msra.mxu0 0.0
      %3426 = vmatprep.subr.mxu0 0.0
      %3427 = vmatpush1.msra.mxu0 0.0
      %3428 = vmatprep.subr.mxu0 0.0
      %3429 = vmatpush1.msra.mxu0 0.0
      %3430 = vmatprep.subr.mxu0 0.0
      %3431 = vmatpush1.msra.mxu0 0.0
      %3432 = vmatprep.subr.mxu0 0.0
      %3433 = vmatpush1.msra.mxu0 0.0
      %3434 = vmatprep.subr.mxu0 0.0
      %3435 = vmatpush1.msra.mxu0 0.0
      %3436 = vmatprep.subr.mxu0 0.0
      %3437 = vmatpush1.msra.mxu0 0.0
      %3438 = vmatprep.subr.mxu0 0.0
      %3439 = vmatpush1.msra.mxu0 0.0
      %3440 = vmatprep.subr.mxu0 0.0
      %3441 = vmatpush1.msra.mxu0 0.0
      %3442 = vmatprep.subr.mxu0 0.0
      %3443 = vmatpush1.msra.mxu0 0.0
      %3444 = vmatprep.subr.mxu0 0.0
      %3445 = vmatpush1.msra.mxu0 0.0
      %3446 = vmatprep.subr.mxu0 0.0
      %3447 = vmatpush1.msra.mxu0 0.0
      %3448 = vmatprep.subr.mxu0 0.0
      %3449 = vmatpush1.msra.mxu0 0.0
      %3450 = vmatprep.subr.mxu0 0.0
      %3451 = vmatpush1.msra.mxu0 0.0
      %3452 = vmatprep.subr.mxu0 0.0
      %3453 = vmatpush1.msra.mxu0 0.0
      %3454 = vmatprep.subr.mxu0 0.0
      %3455 = vmatpush1.msra.mxu0 0.0
      %3456 = vmatprep.subr.mxu0 0.0
      %3457 = vmatpush1.msra.mxu0 0.0
      %3458 = vmatprep.subr.mxu0 0.0
      %3459 = vmatpush1.msra.mxu0 0.0
      %3460 = vmatprep.subr.mxu0 0.0
      %3461 = vmatpush1.msra.mxu0 0.0
      %3462 = vmatprep.subr.mxu0 0.0
      %3463 = vmatpush1.msra.mxu0 0.0
      %3464 = vmatprep.subr.mxu0 0.0
      %3465 = vmatpush1.msra.mxu0 0.0
      %3466 = vmatprep.mubr.f32.mxu0 0.0
      %3467 = vmatmul.mubr.f32.gmra.mrb[0].mxu0 %v3400
      %v3468 = vpop.f32.mrb[0].mxu0
      %v3469 = vadd.f32 0.0, %v3468
      %v3470 = vpop.f32.mrb[0].mxu0
      %v3471 = vadd.f32 0.0, %v3470
      %3472 = vdwg.mxu0
      %v3473 = vadd.f32 %v3373, %v3469
      %v3474 = vadd.f32 %v3374, %v3471
      %3475 = vrot.lane.b32.xlu0 %v2653, 111
      %v3476 = vpop.permute.xlu0 %3475
      %3477 = vrot.lane.b32.xlu0 %v2654, 111
      %v3478 = vpop.permute.xlu0 %3477
      %3479 = vrot.lane.b32.xlu0 %v2655, 111
      %v3480 = vpop.permute.xlu0 %3479
      %3481 = vrot.lane.b32.xlu0 %v2656, 111
      %v3482 = vpop.permute.xlu0 %3481
      %v3483 = vsel %vm1365, %v3476, %v3478
      %v3484 = vsel %vm1365, %v3480, %v3482
      %v3489 = vsel %vm1365, %v3478, 0.0
      %v3490 = vsel %vm1365, %v3482, 0.0
      %v3491 = vmul.f32 %v3483, %v1376
      %v3492 = vmul.f32 %v3489, %v1380
      %v3493 = vmul.f32 %v3484, %v1376
      %v3494 = vmul.f32 %v3490, %v1380
      %v3495 = vmul.f32 %v1503, %v1376
      %v3496 = vmul.f32 %v1506, %v1380
      %s3497 = scalar_lea.vmem %s8, 64
      %v3498 = vld [vmem:[%s3497] sm:$0xff]
      %v3500 = vsel %vm2724, %v3498, 0
      %3502 = vmatprep.subr.mxu0 %v3492
      %3503 = vmatpush1.msra.mxu0 %v3491
      %3504 = vmatprep.subr.mxu0 %v3494
      %3505 = vmatpush1.msra.mxu0 %v3493
      %3506 = vmatprep.subr.mxu0 %v3496
      %3507 = vmatpush1.msra.mxu0 %v3495
      %3508 = vmatprep.subr.mxu0 0.0
      %3509 = vmatpush1.msra.mxu0 0.0
      %3510 = vmatprep.subr.mxu0 0.0
      %3511 = vmatpush1.msra.mxu0 0.0
      %3512 = vmatprep.subr.mxu0 0.0
      %3513 = vmatpush1.msra.mxu0 0.0
      %3514 = vmatprep.subr.mxu0 0.0
      %3515 = vmatpush1.msra.mxu0 0.0
      %3516 = vmatprep.subr.mxu0 0.0
      %3517 = vmatpush1.msra.mxu0 0.0
      %3518 = vmatprep.subr.mxu0 0.0
      %3519 = vmatpush1.msra.mxu0 0.0
      %3520 = vmatprep.subr.mxu0 0.0
      %3521 = vmatpush1.msra.mxu0 0.0
      %3522 = vmatprep.subr.mxu0 0.0
      %3523 = vmatpush1.msra.mxu0 0.0
      %3524 = vmatprep.subr.mxu0 0.0
      %3525 = vmatpush1.msra.mxu0 0.0
      %3526 = vmatprep.subr.mxu0 0.0
      %3527 = vmatpush1.msra.mxu0 0.0
      %3528 = vmatprep.subr.mxu0 0.0
      %3529 = vmatpush1.msra.mxu0 0.0
      %3530 = vmatprep.subr.mxu0 0.0
      %3531 = vmatpush1.msra.mxu0 0.0
      %3532 = vmatprep.subr.mxu0 0.0
      %3533 = vmatpush1.msra.mxu0 0.0
      %3534 = vmatprep.subr.mxu0 0.0
      %3535 = vmatpush1.msra.mxu0 0.0
      %3536 = vmatprep.subr.mxu0 0.0
      %3537 = vmatpush1.msra.mxu0 0.0
      %3538 = vmatprep.subr.mxu0 0.0
      %3539 = vmatpush1.msra.mxu0 0.0
      %3540 = vmatprep.subr.mxu0 0.0
      %3541 = vmatpush1.msra.mxu0 0.0
      %3542 = vmatprep.subr.mxu0 0.0
      %3543 = vmatpush1.msra.mxu0 0.0
      %3544 = vmatprep.subr.mxu0 0.0
      %3545 = vmatpush1.msra.mxu0 0.0
      %3546 = vmatprep.subr.mxu0 0.0
      %3547 = vmatpush1.msra.mxu0 0.0
      %3548 = vmatprep.subr.mxu0 0.0
      %3549 = vmatpush1.msra.mxu0 0.0
      %3550 = vmatprep.subr.mxu0 0.0
      %3551 = vmatpush1.msra.mxu0 0.0
      %3552 = vmatprep.subr.mxu0 0.0
      %3553 = vmatpush1.msra.mxu0 0.0
      %3554 = vmatprep.subr.mxu0 0.0
      %3555 = vmatpush1.msra.mxu0 0.0
      %3556 = vmatprep.subr.mxu0 0.0
      %3557 = vmatpush1.msra.mxu0 0.0
      %3558 = vmatprep.subr.mxu0 0.0
      %3559 = vmatpush1.msra.mxu0 0.0
      %3560 = vmatprep.subr.mxu0 0.0
      %3561 = vmatpush1.msra.mxu0 0.0
      %3562 = vmatprep.subr.mxu0 0.0
      %3563 = vmatpush1.msra.mxu0 0.0
      %3564 = vmatprep.subr.mxu0 0.0
      %3565 = vmatpush1.msra.mxu0 0.0
      %3566 = vmatprep.mubr.f32.mxu0 0.0
      %3567 = vmatmul.mubr.f32.gmra.mrb[0].mxu0 %v3500
      %v3568 = vpop.f32.mrb[0].mxu0
      %v3569 = vadd.f32 0.0, %v3568
      %v3570 = vpop.f32.mrb[0].mxu0
      %v3571 = vadd.f32 0.0, %v3570
      %3572 = vdwg.mxu0
      %v3573 = vadd.f32 %v3473, %v3569
      %v3574 = vadd.f32 %v3474, %v3571
      %v3575 = vld [vmem:[%s9] sm:$0xff]
      %3577 = vset.pattern.permute.xlu0 0
      %3578 = vperm.xlu0 %3577, %v3575
      %v3579 = vpop.permute.xlu0 %3578
      %v3581 = vadd.f32 %v3573, %v3579
      %v3582 = vadd.f32 %v3574, %v3579
      %v3583 = vmax.f32 %v3581, 0.0
      %v3584 = vmax.f32 %v3582, 0.0
      %v3585 = vld [vmem:[%s10] sm:$0x7]
      %v3586 = vld [vmem:[%s11] sm:$0x7]
      %3588 = vset.pattern.permute.xlu0 0
      %3589 = vperm.xlu0 %3588, %v3586
      %v3590 = vpop.permute.xlu0 %3589
      %v3593 = vsel %vm1565, %v3585, 0
      %3595 = vmatprep.subr.mxu0 %v3584
      %3596 = vmatpush1.msra.mxu0 %v3583
      %3597 = vmatprep.subr.mxu0 0.0
      %3598 = vmatpush1.msra.mxu0 0.0
      %3599 = vmatprep.subr.mxu0 0.0
      %3600 = vmatpush1.msra.mxu0 0.0
      %3601 = vmatprep.subr.mxu0 0.0
      %3602 = vmatpush1.msra.mxu0 0.0
      %3603 = vmatprep.subr.mxu0 0.0
      %3604 = vmatpush1.msra.mxu0 0.0
      %3605 = vmatprep.subr.mxu0 0.0
      %3606 = vmatpush1.msra.mxu0 0.0
      %3607 = vmatprep.subr.mxu0 0.0
      %3608 = vmatpush1.msra.mxu0 0.0
      %3609 = vmatprep.subr.mxu0 0.0
      %3610 = vmatpush1.msra.mxu0 0.0
      %3611 = vmatprep.subr.mxu0 0.0
      %3612 = vmatpush1.msra.mxu0 0.0
      %3613 = vmatprep.subr.mxu0 0.0
      %3614 = vmatpush1.msra.mxu0 0.0
      %3615 = vmatprep.subr.mxu0 0.0
      %3616 = vmatpush1.msra.mxu0 0.0
      %3617 = vmatprep.subr.mxu0 0.0
      %3618 = vmatpush1.msra.mxu0 0.0
      %3619 = vmatprep.subr.mxu0 0.0
      %3620 = vmatpush1.msra.mxu0 0.0
      %3621 = vmatprep.subr.mxu0 0.0
      %3622 = vmatpush1.msra.mxu0 0.0
      %3623 = vmatprep.subr.mxu0 0.0
      %3624 = vmatpush1.msra.mxu0 0.0
      %3625 = vmatprep.subr.mxu0 0.0
      %3626 = vmatpush1.msra.mxu0 0.0
      %3627 = vmatprep.subr.mxu0 0.0
      %3628 = vmatpush1.msra.mxu0 0.0
      %3629 = vmatprep.subr.mxu0 0.0
      %3630 = vmatpush1.msra.mxu0 0.0
      %3631 = vmatprep.subr.mxu0 0.0
      %3632 = vmatpush1.msra.mxu0 0.0
      %3633 = vmatprep.subr.mxu0 0.0
      %3634 = vmatpush1.msra.mxu0 0.0
      %3635 = vmatprep.subr.mxu0 0.0
      %3636 = vmatpush1.msra.mxu0 0.0
      %3637 = vmatprep.subr.mxu0 0.0
      %3638 = vmatpush1.msra.mxu0 0.0
      %3639 = vmatprep.subr.mxu0 0.0
      %3640 = vmatpush1.msra.mxu0 0.0
      %3641 = vmatprep.subr.mxu0 0.0
      %3642 = vmatpush1.msra.mxu0 0.0
      %3643 = vmatprep.subr.mxu0 0.0
      %3644 = vmatpush1.msra.mxu0 0.0
      %3645 = vmatprep.subr.mxu0 0.0
      %3646 = vmatpush1.msra.mxu0 0.0
      %3647 = vmatprep.subr.mxu0 0.0
      %3648 = vmatpush1.msra.mxu0 0.0
      %3649 = vmatprep.subr.mxu0 0.0
      %3650 = vmatpush1.msra.mxu0 0.0
      %3651 = vmatprep.subr.mxu0 0.0
      %3652 = vmatpush1.msra.mxu0 0.0
      %3653 = vmatprep.subr.mxu0 0.0
      %3654 = vmatpush1.msra.mxu0 0.0
      %3655 = vmatprep.subr.mxu0 0.0
      %3656 = vmatpush1.msra.mxu0 0.0
      %3657 = vmatprep.subr.mxu0 0.0
      %3658 = vmatpush1.msra.mxu0 0.0
      %3659 = vmatprep.mubr.f32.mxu0 0.0
      %3660 = vmatmul.mubr.f32.gmra.mrb[0].mxu0 %v3593
      %v3661 = vpop.f32.mrb[0].mxu0
      %v3662 = vadd.f32 %v3590, %v3661
      %v3663 = vpop.f32.mrb[0].mxu0
      %v3664 = vadd.f32 %v3590, %v3663
      %3665 = vdwg.mxu0
      %v3666 = vld [vmem:[%s2] sm:$0x7]
      %3668 = vset.pattern.permute.xlu0 0
      %3669 = vperm.xlu0 %3668, %v3666
      %v3670 = vpop.permute.xlu0 %3669
      %v3672 = vmul.f32 %v3662, %v3670
      %v3673 = vmul.f32 %v3664, %v3670
      %v3674 = vadd.f32 %v3672, %v500
      %v3675 = vadd.f32 %v3673, %v500
      %v3676 = vmax.f32 %v3674, 0.0
      %v3677 = vmax.f32 %v3675, 0.0
      %v3678 = vmin.f32 %v3676, 1.0
      %v3679 = vmin.f32 %v3677, 1.0
      %v3682 = vcombine.low %v3678, %v3679
      %3684 = vst [vmem:[%s494] sm:$0x77] %v3682
      %p3685 = scmp.lt.s32.totalorder %s26, 1
      %s3686 = scalar_select %p3685, %s26, 1
      %s3687 = smul.addr %s3686, 2
      %s3688 = smul.addr %s3687, 4
      %s3689 = scalar_lea.vmem %s15, %s3688
      // Predicated region
      $region81: #{normalized_unet_forward.1} parent=79 // pred_check
        %p3690 = pneg %p364
      $region82: #{normalized_unet_forward.1} parent=79 // pred_check_branch
        %3692 = sbr.rel (%p3690) target = $region84
      $region83: #{normalized_unet_forward.1} parent=79 // pred_region
        _
      $region84: #{normalized_unet_forward.1} parent=79 // pred_fallthru
        _
    $region80: #{normalized_unet_forward.1} parent=5 // pred_fallthru
      _
    %p3693 = scmp.le.s32.totalorder 2, %s21
    // Predicated region
    $region85: #{normalized_unet_forward.1} parent=5 // pred_check
      %p3694 = pneg %p3693
    $region86: #{normalized_unet_forward.1} parent=5 // pred_check_branch
      %3696 = sbr.rel (%p3694) target = $region88
    $region87: #{normalized_unet_forward.1} parent=5 // pred_region
      %s3697 = ssub.s32 %s21, 2
      // Predicated region
      $region89: #{normalized_unet_forward.1} parent=87 // pred_check
        %p3698 = pneg %p370
      $region90: #{normalized_unet_forward.1} parent=87 // pred_check_branch
        %3700 = sbr.rel (%p3698) target = $region92
      $region91: #{normalized_unet_forward.1} parent=87 // pred_region
        %p3701 = scmp.lt.s32.totalorder %s27, 1
        %s3702 = scalar_select %p3701, %s27, 1
        %s3703 = smul.addr %s3702, 2
        %s3704 = smul.addr %s3703, 4
        %s3705 = scalar_lea.vmem %s15, %s3704
      $region92: #{normalized_unet_forward.1} parent=87 // pred_fallthru
        _
    $region88: #{normalized_unet_forward.1} parent=5 // pred_fallthru
      _
  $region6: #{normalized_unet_forward.1} parent=0 // loop_footer
    %s25 = sadd.s32 1, %s21
  $region7: #{normalized_unet_forward.1} parent=0 // loop_footer_branch
    %20 = sbr.rel target = $region3
  $region8: #{normalized_unet_forward.1} parent=0 // loop_exit
    _

</llo_original>
